<compile_context>
chip_gen: v6e
topology: v6e:2x2x1
jax: 0.10.0
libtpu: 0.0.40
codegen_flags: <defaults>
</compile_context>

<pallas_src>
import functools

import jax
import jax.numpy as jnp
from jax.experimental import pallas as pl
from jax.experimental.pallas import tpu as pltpu

EPS = 1e-5
LANE = 128


# ----------------------------------------------------------------- utilities
def _round_up(n, m):
    return ((n + m - 1) // m) * m


def _pad_to(a, axis, size):
    if a.shape[axis] == size:
        return a
    pad = [(0, 0)] * a.ndim
    pad[axis] = (0, size - a.shape[axis])
    return jnp.pad(a, pad)


def _pick_row_tile(rows, target, mult):
    """Row tile for the flattened (N*H*W, C) stages: a multiple of `mult`,
    capped at `target`.  The grid uses cdiv, so no divisibility is required."""
    t = min(target, _round_up(rows, mult))
    return max(mult, (t // mult) * mult)


def _pick_strip_rows(h, target=8):
    """Strip height for the 3x3 stage: largest divisor of H <= target."""
    best = 1
    for t in range(1, min(target, h) + 1):
        if h % t == 0:
            best = t
    return best if best >= min(4, h) else h


def _stats_to_affine(partials, gamma, beta, count):
    """Fold per-tile (sum, sumsq) partials into BN scale/shift (f32)."""
    tot = jnp.sum(partials.astype(jnp.float32), axis=0)          # (2, C)
    mu = tot[0] / count
    var = jnp.maximum(tot[1] / count - mu * mu, 0.0)             # biased var (train BN)
    scale = gamma.astype(jnp.float32) * jax.lax.rsqrt(var + EPS)
    shift = beta.astype(jnp.float32) - mu * scale
    return scale.reshape(1, -1), shift.reshape(1, -1)


# ------------------------------------------------------------------- kernels
def _conv1x1_stats_kernel(x_ref, w_ref, h_ref, st_ref, *, rows, tile_rows, tail):
    """1x1 conv (row-block matmul) + per-tile BN sum / sum-of-squares.
    The f32 -> matmul-dtype cast of the input happens here, in VMEM."""
    h = jnp.dot(x_ref[...].astype(w_ref.dtype), w_ref[...],
                preferred_element_type=jnp.float32)
    h_ref[...] = h.astype(h_ref.dtype)
    if tail:  # static: only emitted when the last row tile is partial
        rid = pl.program_id(0) * tile_rows + jax.lax.broadcasted_iota(
            jnp.int32, h.shape, 0)
        h = jnp.where(rid < rows, h, 0.0)
    st_ref[0] = jnp.concatenate(
        [jnp.sum(h, axis=0, keepdims=True),
         jnp.sum(h * h, axis=0, keepdims=True)], axis=0)          # one store


def _bn_conv1x1_stats_kernel(h_ref, s_ref, t_ref, w_ref, o_ref, st_ref, *,
                             rows, tile_rows, tail):
    """Fused BN(scale/shift)+ReLU -> 1x1 conv -> per-tile stats."""
    a = jnp.maximum(h_ref[...].astype(jnp.float32) * s_ref[...] + t_ref[...], 0.0)
    h = jnp.dot(a.astype(w_ref.dtype), w_ref[...],
                preferred_element_type=jnp.float32)
    o_ref[...] = h.astype(o_ref.dtype)
    if tail:
        rid = pl.program_id(0) * tile_rows + jax.lax.broadcasted_iota(
            jnp.int32, h.shape, 0)
        h = jnp.where(rid < rows, h, 0.0)
    st_ref[0] = jnp.concatenate(
        [jnp.sum(h, axis=0, keepdims=True),
         jnp.sum(h * h, axis=0, keepdims=True)], axis=0)          # one store


def _conv3x3_kernel(h1_ref, s1_ref, t1_ref, w_ref, o_ref, st_ref,
                    pad_ref, col_ref, acc_ref, *, th, wd, wr, n_strips):
    """One (image, row-strip) per grid step.

    BN1+ReLU is fused into the fill of a (th+2, wr+2, C) padded scratch, then
    the three dj taps are packed along K into a (th+2, wr, 3C) im2col scratch,
    and the 3x3 conv becomes 3 K=3C matmuls (one per kernel row di) accumulated
    into an f32 VMEM scratch.  wr = round_up(W, 8) keeps the (rows, K) flatten
    layout-aligned; the extra columns are dropped before writeback/stats."""
    s = pl.program_id(1)
    c = s1_ref.shape[-1]
    dt = pad_ref.dtype
    scale = s1_ref[...].reshape(1, 1, c)
    shift = t1_ref[...].reshape(1, 1, c)

    def bn_relu(v):                                   # v: (k, wd, c) f32
        return jnp.maximum(v * scale + shift, 0.0)

    # ---- padded scratch: zero the halo columns, BN1+ReLU the interior rows
    pad_ref[:, 0:1, :] = jnp.zeros((th + 2, 1, c), dt)                    # left
    pad_ref[:, wd + 1:wr + 2, :] = jnp.zeros((th + 2, wr + 1 - wd, c), dt)  # right
    r0 = s * th
    x_strip = h1_ref[0, pl.ds(r0, th), :, :].astype(jnp.float32)
    pad_ref[1:th + 1, 1:wd + 1, :] = bn_relu(x_strip).astype(dt)

    # halo rows come from the neighbouring strips (zero at the image border)
    top = bn_relu(h1_ref[0, pl.ds(jnp.maximum(r0 - 1, 0), 1), :, :]
                  .astype(jnp.float32))
    pad_ref[0:1, 1:wd + 1, :] = jnp.where(s > 0, top, 0.0).astype(dt)
    h_img = th * n_strips
    bot = bn_relu(h1_ref[0, pl.ds(jnp.minimum(r0 + th, h_img - 1), 1), :, :]
                  .astype(jnp.float32))
    pad_ref[th + 1:th + 2, 1:wd + 1, :] = jnp.where(
        s < n_strips - 1, bot, 0.0).astype(dt)

    # ---- mini-im2col along W: col[i, x, dj*C:(dj+1)*C] = pad[i, x+dj, :]
    for dj in range(3):
        col_ref[:, :, dj * c:(dj + 1) * c] = pad_ref[:, dj:dj + wr, :]

    # ---- 3 K-fused matmuls (K = 3*C) accumulated into the f32 VMEM scratch
    acc_ref[...] = jnp.dot(col_ref[0:th, :, :].reshape(th * wr, 3 * c),
                           w_ref[0], preferred_element_type=jnp.float32)
    for di in (1, 2):
        acc_ref[...] += jnp.dot(col_ref[di:di + th, :, :].reshape(th * wr, 3 * c),
                                w_ref[di], preferred_element_type=jnp.float32)

    # ---- writeback of the valid columns + per-strip BN2 partial statistics
    accv = acc_ref[...].reshape(th, wr, c)[:, :wd, :]
    o_ref[0] = accv.astype(o_ref.dtype)
    ssum = jnp.sum(jnp.sum(accv, axis=0), axis=0, keepdims=True)
    sqs = jnp.sum(jnp.sum(accv * accv, axis=0), axis=0, keepdims=True)
    st_ref[0] = jnp.concatenate([ssum, sqs], axis=0)              # one store


def _bn_residual_kernel(h_ref, x_ref, s_ref, t_ref, o_ref):
    """BN3(scale/shift) + identity residual + ReLU (f32 math, any ref dtypes)."""
    y = h_ref[...].astype(jnp.float32) * s_ref[...] + t_ref[...]
    o_ref[...] = jnp.maximum(y + x_ref[...].astype(jnp.float32),
                             0.0).astype(o_ref.dtype)


# -------------------------------------------------------------------- wrapper
def bottleneck_forward_nhwc(x, params, *, matmul_dtype=jnp.bfloat16,
                            row_tile=512, out_dtype=jnp.float32):
    """Bottleneck forward (stride=1, downsample=None -> identity residual),
    train-mode BatchNorm.  x: (N, H, W, Cin) float32 NHWC.

    When chaining blocks, pass out_dtype=bf16 so the next block reads a bf16
    residual (stage 4 casts whatever residual dtype to f32 internally)."""
    w1, g1, b1, w2, g2, b2, w3, g3, b3 = params
    N, H, W, Cin = x.shape
    P = w1.shape[1]
    assert w3.shape[1] == Cin, "identity residual requires inplanes == planes * 4"
    # TODO(synk): stride>1 / downsample branch, ResNetFeat stem (7x7 conv,
    # maxpool) and avgpool are not implemented here.

    Cp = _round_up(Cin, LANE)          # lane-dense channel padding
    Pp = _round_up(P, LANE)
    mm = jnp.dtype(matmul_dtype)

    # Zero-pad channels; padded gamma/beta are zero so padded lanes stay zero.
    xp = _pad_to(x, 3, Cp)                                          # f32
    w1p = _pad_to(_pad_to(w1, 0, Cp), 1, Pp).astype(mm)             # (Cp, Pp)
    # 3x3 weights: pack the three dj taps along K -> (3, 3*Pp, Pp)
    w2k = _pad_to(_pad_to(w2, 2, Pp), 3, Pp).reshape(3, 3 * Pp, Pp).astype(mm)
    w3p = _pad_to(_pad_to(w3, 0, Pp), 1, Cp).astype(mm)             # (Pp, Cp)
    g1p, b1p = _pad_to(g1, 0, Pp), _pad_to(b1, 0, Pp)
    g2p, b2p = _pad_to(g2, 0, Pp), _pad_to(b2, 0, Pp)
    g3p, b3p = _pad_to(g3, 0, Cp), _pad_to(b3, 0, Cp)

    R = N * H * W
    mult = 16 if mm.itemsize < 4 else 8
    TR = _pick_row_tile(R, row_tile, mult)
    nT = pl.cdiv(R, TR)
    tail = (nT * TR != R)
    x2d = xp.reshape(R, Cp)            # f32: stage-1 input AND stage-4 residual

    par1 = pltpu.CompilerParams(dimension_semantics=("parallel",))

    def row_spec(C):
        return pl.BlockSpec((TR, C), lambda i: (i, 0))

    def vec_spec(C):
        return pl.BlockSpec((1, C), lambda i: (0, 0))

    def st_spec(C):
        return pl.BlockSpec((1, 2, C), lambda i: (i, 0, 0))

    # ---- stage 1: conv1 (1x1) + BN1 statistics (input cast f32->mm in VMEM) ---
    h1, st1 = pl.pallas_call(
        functools.partial(_conv1x1_stats_kernel, rows=R, tile_rows=TR, tail=tail),
        grid=(nT,),
        in_specs=[row_spec(Cp), pl.BlockSpec((Cp, Pp), lambda i: (0, 0))],
        out_specs=(row_spec(Pp), st_spec(Pp)),
        out_shape=(jax.ShapeDtypeStruct((R, Pp), mm),
                   jax.ShapeDtypeStruct((nT, 2, Pp), jnp.float32)),
        compiler_params=par1,
    )(x2d, w1p)
    s1, t1 = _stats_to_affine(st1, g1p, b1p, R)

    # ---- stage 2: BN1+ReLU -> conv2 (3x3, pad=1), strip-tiled + BN2 stats -----
    TH = _pick_strip_rows(H)
    nS = H // TH
    Wr = _round_up(W, 8)
    par2 = pltpu.CompilerParams(
        dimension_semantics=("parallel", "parallel"),
        vmem_limit_bytes=32 * 1024 * 1024)

    h2, st2 = pl.pallas_call(
        functools.partial(_conv3x3_kernel, th=TH, wd=W, wr=Wr, n_strips=nS),
        grid=(N, nS),
        in_specs=[
            # whole image, resident across the (inner) strip axis
            pl.BlockSpec((1, H, W, Pp), lambda n, s: (n, 0, 0, 0)),
            pl.BlockSpec((1, Pp), lambda n, s: (0, 0)),
            pl.BlockSpec((1, Pp), lambda n, s: (0, 0)),
            # constant K-packed weights, revisited every step.
            # TODO(synk): single-buffer (pipeline_mode=pl.Buffered(1)) at
            # layer4-sized Pp on 64 MiB-VMEM parts.
            pl.BlockSpec((3, 3 * Pp, Pp), lambda n, s: (0, 0, 0)),
        ],
        out_specs=(pl.BlockSpec((1, TH, W, Pp), lambda n, s: (n, s, 0, 0)),
                   pl.BlockSpec((1, 2, Pp), lambda n, s: (n * nS + s, 0, 0))),
        out_shape=(jax.ShapeDtypeStruct((N, H, W, Pp), mm),
                   jax.ShapeDtypeStruct((N * nS, 2, Pp), jnp.float32)),
        scratch_shapes=[pltpu.VMEM((TH + 2, Wr + 2, Pp), mm),      # padded act
                        pltpu.VMEM((TH + 2, Wr, 3 * Pp), mm),      # im2col (dj)
                        pltpu.VMEM((TH * Wr, Pp), jnp.float32)],   # f32 acc
        compiler_params=par2,
    )(h1.reshape(N, H, W, Pp), s1, t1, w2k)
    s2, t2 = _stats_to_affine(st2, g2p, b2p, R)

    # ---- stage 3: BN2+ReLU -> conv3 (1x1) + BN3 statistics --------------------
    h3, st3 = pl.pallas_call(
        functools.partial(_bn_conv1x1_stats_kernel, rows=R, tile_rows=TR, tail=tail),
        grid=(nT,),
        in_specs=[row_spec(Pp), vec_spec(Pp), vec_spec(Pp),
                  pl.BlockSpec((Pp, Cp), lambda i: (0, 0))],
        out_specs=(row_spec(Cp), st_spec(Cp)),
        out_shape=(jax.ShapeDtypeStruct((R, Cp), mm),
                   jax.ShapeDtypeStruct((nT, 2, Cp), jnp.float32)),
        compiler_params=par1,
    )(h2.reshape(R, Pp), s2, t2, w3p)
    s3, t3 = _stats_to_affine(st3, g3p, b3p, R)

    # ---- stage 4: BN3 + identity residual + ReLU -------------------------------
    out2d = pl.pallas_call(
        _bn_residual_kernel,
        grid=(nT,),
        in_specs=[row_spec(Cp), row_spec(Cp), vec_spec(Cp), vec_spec(Cp)],
        out_specs=row_spec(Cp),
        out_shape=jax.ShapeDtypeStruct((R, Cp), out_dtype),
        compiler_params=par1,
    )(h3, x2d, s3, t3)

    return out2d.reshape(N, H, W, Cp)[..., :Cin]


def bottleneck_forward_nchw(x_nchw, params, **kw):
    """PyTorch-layout adapter only; in a full network stay NHWC to avoid the
    HBM transpose round trips."""
    out = bottleneck_forward_nhwc(jnp.transpose(x_nchw, (0, 2, 3, 1)), params, **kw)
    return jnp.transpose(out, (0, 3, 1, 2))


# ------------------------------------------------------------------ reference
def bottleneck_ref_nhwc(x, params):
    """Pure-JAX f32 reference (train-mode BN), NHWC."""
    w1, g1, b1, w2, g2, b2, w3, g3, b3 = params

    def bn(h, g, b):
        mu = jnp.mean(h, axis=(0, 1, 2), keepdims=True)
        var = jnp.mean((h - mu) ** 2, axis=(0, 1, 2), keepdims=True)
        return (h - mu) * jax.lax.rsqrt(var + EPS) * g + b

    h = jnp.einsum('nhwc,cp->nhwp', x, w1)
    h = jax.nn.relu(bn(h, g1, b1))
    h = jax.lax.conv_general_dilated(
        h, w2, (1, 1), ((1, 1), (1, 1)),
        dimension_numbers=('NHWC', 'HWIO', 'NHWC'))
    h = jax.nn.relu(bn(h, g2, b2))
    h = jnp.einsum('nhwc,cp->nhwp', h, w3)
    h = bn(h, g3, b3)
    return jax.nn.relu(h + x)


if __name__ == "__main__":
    # small shapes: planes=4, inplanes=planes*4=16, N=2, H=W=16 (NHWC)
    planes = 4
    inplanes = planes * 4
    N, H, W = 2, 16, 16

    key = jax.random.PRNGKey(0)
    ks = jax.random.split(key, 10)
    w1 = 0.1 * jax.random.normal(ks[0], (inplanes, planes), jnp.float32)
    g1 = jax.random.uniform(ks[1], (planes,), jnp.float32, 0.5, 1.5)
    b1 = 0.1 * jax.random.normal(ks[2], (planes,), jnp.float32)
    w2 = 0.1 * jax.random.normal(ks[3], (3, 3, planes, planes), jnp.float32)
    g2 = jax.random.uniform(ks[4], (planes,), jnp.float32, 0.5, 1.5)
    b2 = 0.1 * jax.random.normal(ks[5], (planes,), jnp.float32)
    w3 = 0.1 * jax.random.normal(ks[6], (planes, inplanes), jnp.float32)
    g3 = jax.random.uniform(ks[7], (inplanes,), jnp.float32, 0.5, 1.5)
    b3 = 0.1 * jax.random.normal(ks[8], (inplanes,), jnp.float32)
    params = (w1, g1, b1, w2, g2, b2, w3, g3, b3)

    x = jax.random.normal(ks[9], (N, H, W, inplanes), jnp.float32)

    ref = jax.block_until_ready(bottleneck_ref_nhwc(x, params))

    # f32-matmul path: tight check of the fused / tiled / single-pass-BN
    # structure (H=16 -> 2 row strips, so the 3x3 halo logic is exercised).
    fwd_f32 = jax.jit(functools.partial(bottleneck_forward_nhwc,
                                        matmul_dtype=jnp.float32))
    out_f32 = jax.block_until_ready(fwd_f32(x, params))
    err_f32 = float(jnp.max(jnp.abs(out_f32 - ref)))
    if err_f32 > 5e-3:
        raise AssertionError(f"f32 path mismatch vs reference, max abs err = {err_f32}")

    # f32 path with a small row tile that does NOT divide R: exercises the
    # cdiv grid + partial-tail masking of the BN statistics.
    fwd_tail = jax.jit(functools.partial(bottleneck_forward_nhwc,
                                         matmul_dtype=jnp.float32, row_tile=160))
    out_tail = jax.block_until_ready(fwd_tail(x, params))
    err_tail = float(jnp.max(jnp.abs(out_tail - ref)))
    if err_tail > 5e-3:
        raise AssertionError(f"tail-tile path mismatch vs reference, max abs err = {err_tail}")

    # bf16-matmul path (default perf path): loose check against the f32 reference.
    fwd_bf16 = jax.jit(functools.partial(bottleneck_forward_nhwc,
                                         matmul_dtype=jnp.bfloat16))
    out_bf16 = jax.block_until_ready(fwd_bf16(x, params))
    err_bf16 = float(jnp.max(jnp.abs(out_bf16 - ref)))
    if err_bf16 > 0.5:
        raise AssertionError(f"bf16 path mismatch vs reference, max abs err = {err_bf16}")

    print("KERNEL_OK")
</pallas_src>

<mosaic_0001>
module attributes {stable_mosaic.version = 11 : i64} {
  func.func @_conv1x1_stats_kernel(%arg0: i32, %arg1: memref<512x128xf32, #tpu.memory_space<vmem>>, %arg2: memref<128x128xf32, #tpu.memory_space<vmem>>, %arg3: memref<512x128xf32, #tpu.memory_space<vmem>>, %arg4: memref<1x2x128xf32, #tpu.memory_space<vmem>>) attributes {dimension_semantics = [#tpu.dimension_semantics<parallel>], iteration_bounds = array<i64: 1>, scalar_prefetch = 0 : i64, scratch_operands = 0 : i64, tpu.core_type = #tpu.core_type<tc>, window_params = [{transform_indices = @transform_0, window_bounds = array<i64: 512, 128>}, {pipeline_mode = #tpu.pipeline_mode<synchronous>, transform_indices = @transform_1, window_bounds = array<i64: 128, 128>}, {transform_indices = @transform_2, window_bounds = array<i64: 512, 128>}, {transform_indices = @transform_3, window_bounds = array<i64: 1, 2, 128>}]} {
    %c0 = arith.constant 0 : index
    %c0_0 = arith.constant 0 : index
    %0 = vector.load %arg1[%c0, %c0_0] : memref<512x128xf32, #tpu.memory_space<vmem>>, vector<512x128xf32>
    %c0_1 = arith.constant 0 : index
    %c0_2 = arith.constant 0 : index
    %1 = vector.load %arg2[%c0_1, %c0_2] : memref<128x128xf32, #tpu.memory_space<vmem>>, vector<128x128xf32>
    %cst = arith.constant dense<0.000000e+00> : vector<512x128xf32>
    %2 = tpu.matmul %0, %1, %cst {dimension_numbers = #tpu.dot_dimension_numbers<[1], [0], [0], [1], [0, 0, 1, 1], [], []>} : vector<512x128xf32>, vector<128x128xf32>, vector<512x128xf32> -> vector<512x128xf32>
    %c0_3 = arith.constant 0 : index
    %c0_4 = arith.constant 0 : index
    %3 = vector.load %arg3[%c0_3, %c0_4] : memref<512x128xf32, #tpu.memory_space<vmem>>, vector<512x128xf32>
    tpu.vector_store %arg3[%c0_3, %c0_4], %2 {strides = array<i32>} : memref<512x128xf32, #tpu.memory_space<vmem>>, vector<512x128xf32>,
    %cst_5 = arith.constant dense<0.000000e+00> : vector<128xf32>
    %4 = vector.multi_reduction <add>, %2, %cst_5 [0] : vector<512x128xf32> to vector<128xf32>
    %5 = vector.shape_cast %4 : vector<128xf32> to vector<1x128xf32>
    %6 = arith.mulf %2, %2 : vector<512x128xf32>
    %cst_6 = arith.constant dense<0.000000e+00> : vector<128xf32>
    %7 = vector.multi_reduction <add>, %6, %cst_6 [0] : vector<512x128xf32> to vector<128xf32>
    %8 = vector.shape_cast %7 : vector<128xf32> to vector<1x128xf32>
    %9 = tpu.concatenate %5, %8 in 0 : vector<1x128xf32>, vector<1x128xf32> -> vector<2x128xf32>
    %c0_7 = arith.constant 0 : index
    %c0_8 = arith.constant 0 : index
    %c0_9 = arith.constant 0 : index
    %10 = vector.load %arg4[%c0_7, %c0_8, %c0_9] : memref<1x2x128xf32, #tpu.memory_space<vmem>>, vector<1x2x128xf32>
    %11 = vector.shape_cast %10 : vector<1x2x128xf32> to vector<2x128xf32>
    %12 = vector.shape_cast %9 : vector<2x128xf32> to vector<1x2x128xf32>
    tpu.vector_store %arg4[%c0_7, %c0_8, %c0_9], %12 {strides = array<i32>} : memref<1x2x128xf32, #tpu.memory_space<vmem>>, vector<1x2x128xf32>,
    return
  }
  func.func @transform_0(%arg0: i32) -> (i32, i32) {
    %c0_i32 = arith.constant 0 : i32
    %c0_i32_0 = arith.constant 0 : i32
    return %arg0, %c0_i32 : i32, i32
  }
  func.func @transform_1(%arg0: i32) -> (i32, i32) {
    %c0_i32 = arith.constant 0 : i32
    %c0_i32_0 = arith.constant 0 : i32
    %c0_i32_1 = arith.constant 0 : i32
    return %c0_i32, %c0_i32_0 : i32, i32
  }
  func.func @transform_2(%arg0: i32) -> (i32, i32) {
    %c0_i32 = arith.constant 0 : i32
    %c0_i32_0 = arith.constant 0 : i32
    return %arg0, %c0_i32 : i32, i32
  }
  func.func @transform_3(%arg0: i32) -> (i32, i32, i32) {
    %c0_i32 = arith.constant 0 : i32
    %c0_i32_0 = arith.constant 0 : i32
    %c0_i32_1 = arith.constant 0 : i32
    return %arg0, %c0_i32, %c0_i32_0 : i32, i32, i32
  }
}

module attributes {stable_mosaic.version = 11 : i64} {
  func.func @_conv3x3_kernel(%arg0: i32, %arg1: i32, %arg2: memref<1x16x16x128xf32, #tpu.memory_space<vmem>>, %arg3: memref<1x128xf32, #tpu.memory_space<vmem>>, %arg4: memref<1x128xf32, #tpu.memory_space<vmem>>, %arg5: memref<3x384x128xf32, #tpu.memory_space<vmem>>, %arg6: memref<1x8x16x128xf32, #tpu.memory_space<vmem>>, %arg7: memref<1x2x128xf32, #tpu.memory_space<vmem>>, %arg8: memref<10x18x128xf32, #tpu.memory_space<vmem>>, %arg9: memref<10x16x384xf32, #tpu.memory_space<vmem>>, %arg10: memref<128x128xf32, #tpu.memory_space<vmem>>) attributes {dimension_semantics = [#tpu.dimension_semantics<parallel>, #tpu.dimension_semantics<parallel>], iteration_bounds = array<i64: 2, 2>, scalar_prefetch = 0 : i64, scratch_operands = 3 : i64, tpu.core_type = #tpu.core_type<tc>, window_params = [{transform_indices = @transform_0, window_bounds = array<i64: 1, 16, 16, 128>}, {pipeline_mode = #tpu.pipeline_mode<synchronous>, transform_indices = @transform_1, window_bounds = array<i64: 1, 128>}, {pipeline_mode = #tpu.pipeline_mode<synchronous>, transform_indices = @transform_2, window_bounds = array<i64: 1, 128>}, {pipeline_mode = #tpu.pipeline_mode<synchronous>, transform_indices = @transform_3, window_bounds = array<i64: 3, 384, 128>}, {transform_indices = @transform_4, window_bounds = array<i64: 1, 8, 16, 128>}, {transform_indices = @transform_5, window_bounds = array<i64: 1, 2, 128>}]} {
    %c0 = arith.constant 0 : index
    %c0_0 = arith.constant 0 : index
    %0 = vector.load %arg3[%c0, %c0_0] : memref<1x128xf32, #tpu.memory_space<vmem>>, vector<1x128xf32>
    %1 = vector.shape_cast %0 : vector<1x128xf32> to vector<1x1x128xf32>
    %c0_1 = arith.constant 0 : index
    %c0_2 = arith.constant 0 : index
    %2 = vector.load %arg4[%c0_1, %c0_2] : memref<1x128xf32, #tpu.memory_space<vmem>>, vector<1x128xf32>
    %3 = vector.shape_cast %2 : vector<1x128xf32> to vector<1x1x128xf32>
    %cst = arith.constant 0.000000e+00 : f32
    %4 = vector.broadcast %cst : f32 to vector<10x1x128xf32>
    %c0_3 = arith.constant 0 : index
    %c0_4 = arith.constant 0 : index
    %c0_5 = arith.constant 0 : index
    %5 = vector.load %arg8[%c0_3, %c0_4, %c0_5] : memref<10x18x128xf32, #tpu.memory_space<vmem>>, vector<10x1x128xf32>
    tpu.vector_store %arg8[%c0_3, %c0_4, %c0_5], %4 {strides = array<i32>} : memref<10x18x128xf32, #tpu.memory_space<vmem>>, vector<10x1x128xf32>,
    %cst_6 = arith.constant 0.000000e+00 : f32
    %6 = vector.broadcast %cst_6 : f32 to vector<10x1x128xf32>
    %c0_7 = arith.constant 0 : index
    %c17 = arith.constant 17 : index
    %c0_8 = arith.constant 0 : index
    %7 = vector.load %arg8[%c0_7, %c17, %c0_8] : memref<10x18x128xf32, #tpu.memory_space<vmem>>, vector<10x1x128xf32>
    tpu.vector_store %arg8[%c0_7, %c17, %c0_8], %6 {strides = array<i32>} : memref<10x18x128xf32, #tpu.memory_space<vmem>>, vector<10x1x128xf32>,
    %c8_i32 = arith.constant 8 : i32
    %8 = arith.muli %arg1, %c8_i32 : i32
    %c0_9 = arith.constant 0 : index
    %9 = arith.index_cast %8 : i32 to index
    %c0_10 = arith.constant 0 : index
    %c0_11 = arith.constant 0 : index
    %10 = vector.load %arg2[%c0_9, %9, %c0_10, %c0_11] : memref<1x16x16x128xf32, #tpu.memory_space<vmem>>, vector<1x8x16x128xf32>
    %11 = vector.shape_cast %10 : vector<1x8x16x128xf32> to vector<8x16x128xf32>
    %12 = vector.broadcast %1 : vector<1x1x128xf32> to vector<8x16x128xf32>
    %13 = arith.mulf %11, %12 : vector<8x16x128xf32>
    %14 = vector.broadcast %3 : vector<1x1x128xf32> to vector<8x16x128xf32>
    %15 = arith.addf %13, %14 : vector<8x16x128xf32>
    %cst_12 = arith.constant 0.000000e+00 : f32
    %16 = vector.broadcast %cst_12 : f32 to vector<8x16x128xf32>
    %17 = arith.maximumf %15, %16 : vector<8x16x128xf32>
    %c1 = arith.constant 1 : index
    %c1_13 = arith.constant 1 : index
    %c0_14 = arith.constant 0 : index
    %18 = vector.load %arg8[%c1, %c1_13, %c0_14] : memref<10x18x128xf32, #tpu.memory_space<vmem>>, vector<8x16x128xf32>
    tpu.vector_store %arg8[%c1, %c1_13, %c0_14], %17 {strides = array<i32>} : memref<10x18x128xf32, #tpu.memory_space<vmem>>, vector<8x16x128xf32>,
    %c1_i32 = arith.constant 1 : i32
    %19 = arith.subi %8, %c1_i32 : i32
    %c0_i32 = arith.constant 0 : i32
    %20 = arith.maxsi %19, %c0_i32 : i32
    %c0_15 = arith.constant 0 : index
    %21 = arith.index_cast %20 : i32 to index
    %c0_16 = arith.constant 0 : index
    %c0_17 = arith.constant 0 : index
    %22 = vector.load %arg2[%c0_15, %21, %c0_16, %c0_17] : memref<1x16x16x128xf32, #tpu.memory_space<vmem>>, vector<1x1x16x128xf32>
    %23 = vector.shape_cast %22 : vector<1x1x16x128xf32> to vector<1x16x128xf32>
    %24 = vector.broadcast %1 : vector<1x1x128xf32> to vector<1x16x128xf32>
    %25 = arith.mulf %23, %24 : vector<1x16x128xf32>
    %26 = vector.broadcast %3 : vector<1x1x128xf32> to vector<1x16x128xf32>
    %27 = arith.addf %25, %26 : vector<1x16x128xf32>
    %cst_18 = arith.constant 0.000000e+00 : f32
    %28 = vector.broadcast %cst_18 : f32 to vector<1x16x128xf32>
    %29 = arith.maximumf %27, %28 : vector<1x16x128xf32>
    %c0_i32_19 = arith.constant 0 : i32
    %30 = arith.cmpi sgt, %arg1, %c0_i32_19 : i32
    %cst_20 = arith.constant 0.000000e+00 : f32
    %31 = vector.broadcast %cst_20 : f32 to vector<1x16x128xf32>
    %32 = arith.select %30, %29, %31 : vector<1x16x128xf32>
    %c0_21 = arith.constant 0 : index
    %c1_22 = arith.constant 1 : index
    %c0_23 = arith.constant 0 : index
    %33 = vector.load %arg8[%c0_21, %c1_22, %c0_23] : memref<10x18x128xf32, #tpu.memory_space<vmem>>, vector<1x16x128xf32>
    tpu.vector_store %arg8[%c0_21, %c1_22, %c0_23], %32 {strides = array<i32>} : memref<10x18x128xf32, #tpu.memory_space<vmem>>, vector<1x16x128xf32>,
    %c8_i32_24 = arith.constant 8 : i32
    %34 = arith.addi %8, %c8_i32_24 : i32
    %c15_i32 = arith.constant 15 : i32
    %35 = arith.minsi %34, %c15_i32 : i32
    %c0_25 = arith.constant 0 : index
    %36 = arith.index_cast %35 : i32 to index
    %c0_26 = arith.constant 0 : index
    %c0_27 = arith.constant 0 : index
    %37 = vector.load %arg2[%c0_25, %36, %c0_26, %c0_27] : memref<1x16x16x128xf32, #tpu.memory_space<vmem>>, vector<1x1x16x128xf32>
    %38 = vector.shape_cast %37 : vector<1x1x16x128xf32> to vector<1x16x128xf32>
    %39 = vector.broadcast %1 : vector<1x1x128xf32> to vector<1x16x128xf32>
    %40 = arith.mulf %38, %39 : vector<1x16x128xf32>
    %41 = vector.broadcast %3 : vector<1x1x128xf32> to vector<1x16x128xf32>
    %42 = arith.addf %40, %41 : vector<1x16x128xf32>
    %cst_28 = arith.constant 0.000000e+00 : f32
    %43 = vector.broadcast %cst_28 : f32 to vector<1x16x128xf32>
    %44 = arith.maximumf %42, %43 : vector<1x16x128xf32>
    %c1_i32_29 = arith.constant 1 : i32
    %45 = arith.cmpi slt, %arg1, %c1_i32_29 : i32
    %cst_30 = arith.constant 0.000000e+00 : f32
    %46 = vector.broadcast %cst_30 : f32 to vector<1x16x128xf32>
    %47 = arith.select %45, %44, %46 : vector<1x16x128xf32>
    %c9 = arith.constant 9 : index
    %c1_31 = arith.constant 1 : index
    %c0_32 = arith.constant 0 : index
    %48 = vector.load %arg8[%c9, %c1_31, %c0_32] : memref<10x18x128xf32, #tpu.memory_space<vmem>>, vector<1x16x128xf32>
    tpu.vector_store %arg8[%c9, %c1_31, %c0_32], %47 {strides = array<i32>} : memref<10x18x128xf32, #tpu.memory_space<vmem>>, vector<1x16x128xf32>,
    %c0_33 = arith.constant 0 : index
    %c0_34 = arith.constant 0 : index
    %c0_35 = arith.constant 0 : index
    %49 = vector.load %arg8[%c0_33, %c0_34, %c0_35] : memref<10x18x128xf32, #tpu.memory_space<vmem>>, vector<10x16x128xf32>
    %c0_36 = arith.constant 0 : index
    %c0_37 = arith.constant 0 : index
    %c0_38 = arith.constant 0 : index
    %50 = vector.load %arg9[%c0_36, %c0_37, %c0_38] : memref<10x16x384xf32, #tpu.memory_space<vmem>>, vector<10x16x128xf32>
    tpu.vector_store %arg9[%c0_36, %c0_37, %c0_38], %49 {strides = array<i32>} : memref<10x16x384xf32, #tpu.memory_space<vmem>>, vector<10x16x128xf32>,
    %c0_39 = arith.constant 0 : index
    %c1_40 = arith.constant 1 : index
    %c0_41 = arith.constant 0 : index
    %51 = vector.load %arg8[%c0_39, %c1_40, %c0_41] : memref<10x18x128xf32, #tpu.memory_space<vmem>>, vector<10x16x128xf32>
    %c0_42 = arith.constant 0 : index
    %c0_43 = arith.constant 0 : index
    %c128 = arith.constant 128 : index
    %52 = vector.load %arg9[%c0_42, %c0_43, %c128] : memref<10x16x384xf32, #tpu.memory_space<vmem>>, vector<10x16x128xf32>
    tpu.vector_store %arg9[%c0_42, %c0_43, %c128], %51 {strides = array<i32>} : memref<10x16x384xf32, #tpu.memory_space<vmem>>, vector<10x16x128xf32>,
    %c0_44 = arith.constant 0 : index
    %c2 = arith.constant 2 : index
    %c0_45 = arith.constant 0 : index
    %53 = vector.load %arg8[%c0_44, %c2, %c0_45] : memref<10x18x128xf32, #tpu.memory_space<vmem>>, vector<10x16x128xf32>
    %c0_46 = arith.constant 0 : index
    %c0_47 = arith.constant 0 : index
    %c256 = arith.constant 256 : index
    %54 = vector.load %arg9[%c0_46, %c0_47, %c256] : memref<10x16x384xf32, #tpu.memory_space<vmem>>, vector<10x16x128xf32>
    tpu.vector_store %arg9[%c0_46, %c0_47, %c256], %53 {strides = array<i32>} : memref<10x16x384xf32, #tpu.memory_space<vmem>>, vector<10x16x128xf32>,
    %c0_48 = arith.constant 0 : index
    %c0_49 = arith.constant 0 : index
    %c0_50 = arith.constant 0 : index
    %55 = vector.load %arg9[%c0_48, %c0_49, %c0_50] : memref<10x16x384xf32, #tpu.memory_space<vmem>>, vector<8x16x384xf32>
    %56 = vector.shape_cast %55 : vector<8x16x384xf32> to vector<128x384xf32>
    %c0_51 = arith.constant 0 : index
    %c0_52 = arith.constant 0 : index
    %c0_53 = arith.constant 0 : index
    %57 = vector.load %arg5[%c0_51, %c0_52, %c0_53] : memref<3x384x128xf32, #tpu.memory_space<vmem>>, vector<1x384x128xf32>
    %58 = vector.shape_cast %57 : vector<1x384x128xf32> to vector<384x128xf32>
    %cst_54 = arith.constant dense<0.000000e+00> : vector<128x128xf32>
    %59 = tpu.matmul %56, %58, %cst_54 {dimension_numbers = #tpu.dot_dimension_numbers<[1], [0], [0], [1], [0, 0, 1, 1], [], []>} : vector<128x384xf32>, vector<384x128xf32>, vector<128x128xf32> -> vector<128x128xf32>
    %c0_55 = arith.constant 0 : index
    %c0_56 = arith.constant 0 : index
    %60 = vector.load %arg10[%c0_55, %c0_56] : memref<128x128xf32, #tpu.memory_space<vmem>>, vector<128x128xf32>
    tpu.vector_store %arg10[%c0_55, %c0_56], %59 {strides = array<i32>} : memref<128x128xf32, #tpu.memory_space<vmem>>, vector<128x128xf32>,
    %c0_57 = arith.constant 0 : index
    %c0_58 = arith.constant 0 : index
    %61 = vector.load %arg10[%c0_57, %c0_58] : memref<128x128xf32, #tpu.memory_space<vmem>>, vector<128x128xf32>
    %c1_59 = arith.constant 1 : index
    %c0_60 = arith.constant 0 : index
    %c0_61 = arith.constant 0 : index
    %62 = vector.load %arg9[%c1_59, %c0_60, %c0_61] : memref<10x16x384xf32, #tpu.memory_space<vmem>>, vector<8x16x384xf32>
    %63 = vector.shape_cast %62 : vector<8x16x384xf32> to vector<128x384xf32>
    %c1_62 = arith.constant 1 : index
    %c0_63 = arith.constant 0 : index
    %c0_64 = arith.constant 0 : index
    %64 = vector.load %arg5[%c1_62, %c0_63, %c0_64] : memref<3x384x128xf32, #tpu.memory_space<vmem>>, vector<1x384x128xf32>
    %65 = vector.shape_cast %64 : vector<1x384x128xf32> to vector<384x128xf32>
    %cst_65 = arith.constant dense<0.000000e+00> : vector<128x128xf32>
    %66 = tpu.matmul %63, %65, %cst_65 {dimension_numbers = #tpu.dot_dimension_numbers<[1], [0], [0], [1], [0, 0, 1, 1], [], []>} : vector<128x384xf32>, vector<384x128xf32>, vector<128x128xf32> -> vector<128x128xf32>
    %67 = arith.addf %61, %66 : vector<128x128xf32>
    %c0_66 = arith.constant 0 : index
    %c0_67 = arith.constant 0 : index
    %68 = vector.load %arg10[%c0_66, %c0_67] : memref<128x128xf32, #tpu.memory_space<vmem>>, vector<128x128xf32>
    tpu.vector_store %arg10[%c0_66, %c0_67], %67 {strides = array<i32>} : memref<128x128xf32, #tpu.memory_space<vmem>>, vector<128x128xf32>,
    %c0_68 = arith.constant 0 : index
    %c0_69 = arith.constant 0 : index
    %69 = vector.load %arg10[%c0_68, %c0_69] : memref<128x128xf32, #tpu.memory_space<vmem>>, vector<128x128xf32>
    %c2_70 = arith.constant 2 : index
    %c0_71 = arith.constant 0 : index
    %c0_72 = arith.constant 0 : index
    %70 = vector.load %arg9[%c2_70, %c0_71, %c0_72] : memref<10x16x384xf32, #tpu.memory_space<vmem>>, vector<8x16x384xf32>
    %71 = vector.shape_cast %70 : vector<8x16x384xf32> to vector<128x384xf32>
    %c2_73 = arith.constant 2 : index
    %c0_74 = arith.constant 0 : index
    %c0_75 = arith.constant 0 : index
    %72 = vector.load %arg5[%c2_73, %c0_74, %c0_75] : memref<3x384x128xf32, #tpu.memory_space<vmem>>, vector<1x384x128xf32>
    %73 = vector.shape_cast %72 : vector<1x384x128xf32> to vector<384x128xf32>
    %cst_76 = arith.constant dense<0.000000e+00> : vector<128x128xf32>
    %74 = tpu.matmul %71, %73, %cst_76 {dimension_numbers = #tpu.dot_dimension_numbers<[1], [0], [0], [1], [0, 0, 1, 1], [], []>} : vector<128x384xf32>, vector<384x128xf32>, vector<128x128xf32> -> vector<128x128xf32>
    %75 = arith.addf %69, %74 : vector<128x128xf32>
    %c0_77 = arith.constant 0 : index
    %c0_78 = arith.constant 0 : index
    %76 = vector.load %arg10[%c0_77, %c0_78] : memref<128x128xf32, #tpu.memory_space<vmem>>, vector<128x128xf32>
    tpu.vector_store %arg10[%c0_77, %c0_78], %75 {strides = array<i32>} : memref<128x128xf32, #tpu.memory_space<vmem>>, vector<128x128xf32>,
    %c0_79 = arith.constant 0 : index
    %c0_80 = arith.constant 0 : index
    %77 = vector.load %arg10[%c0_79, %c0_80] : memref<128x128xf32, #tpu.memory_space<vmem>>, vector<128x128xf32>
    %78 = vector.shape_cast %77 : vector<128x128xf32> to vector<8x16x128xf32>
    %c0_81 = arith.constant 0 : index
    %c0_82 = arith.constant 0 : index
    %c0_83 = arith.constant 0 : index
    %c0_84 = arith.constant 0 : index
    %79 = vector.load %arg6[%c0_81, %c0_82, %c0_83, %c0_84] : memref<1x8x16x128xf32, #tpu.memory_space<vmem>>, vector<1x8x16x128xf32>
    %80 = vector.shape_cast %79 : vector<1x8x16x128xf32> to vector<8x16x128xf32>
    %81 = vector.shape_cast %78 : vector<8x16x128xf32> to vector<1x8x16x128xf32>
    tpu.vector_store %arg6[%c0_81, %c0_82, %c0_83, %c0_84], %81 {strides = array<i32>} : memref<1x8x16x128xf32, #tpu.memory_space<vmem>>, vector<1x8x16x128xf32>,
    %cst_85 = arith.constant dense<0.000000e+00> : vector<16x128xf32>
    %82 = vector.multi_reduction <add>, %78, %cst_85 [0] : vector<8x16x128xf32> to vector<16x128xf32>
    %cst_86 = arith.constant dense<0.000000e+00> : vector<128xf32>
    %83 = vector.multi_reduction <add>, %82, %cst_86 [0] : vector<16x128xf32> to vector<128xf32>
    %84 = vector.shape_cast %83 : vector<128xf32> to vector<1x128xf32>
    %85 = arith.mulf %78, %78 : vector<8x16x128xf32>
    %cst_87 = arith.constant dense<0.000000e+00> : vector<16x128xf32>
    %86 = vector.multi_reduction <add>, %85, %cst_87 [0] : vector<8x16x128xf32> to vector<16x128xf32>
    %cst_88 = arith.constant dense<0.000000e+00> : vector<128xf32>
    %87 = vector.multi_reduction <add>, %86, %cst_88 [0] : vector<16x128xf32> to vector<128xf32>
    %88 = vector.shape_cast %87 : vector<128xf32> to vector<1x128xf32>
    %89 = tpu.concatenate %84, %88 in 0 : vector<1x128xf32>, vector<1x128xf32> -> vector<2x128xf32>
    %c0_89 = arith.constant 0 : index
    %c0_90 = arith.constant 0 : index
    %c0_91 = arith.constant 0 : index
    %90 = vector.load %arg7[%c0_89, %c0_90, %c0_91] : memref<1x2x128xf32, #tpu.memory_space<vmem>>, vector<1x2x128xf32>
    %91 = vector.shape_cast %90 : vector<1x2x128xf32> to vector<2x128xf32>
    %92 = vector.shape_cast %89 : vector<2x128xf32> to vector<1x2x128xf32>
    tpu.vector_store %arg7[%c0_89, %c0_90, %c0_91], %92 {strides = array<i32>} : memref<1x2x128xf32, #tpu.memory_space<vmem>>, vector<1x2x128xf32>,
    return
  }
  func.func @transform_0(%arg0: i32, %arg1: i32) -> (i32, i32, i32, i32) {
    %c0_i32 = arith.constant 0 : i32
    %c0_i32_0 = arith.constant 0 : i32
    %c0_i32_1 = arith.constant 0 : i32
    %c0_i32_2 = arith.constant 0 : i32
    return %arg0, %c0_i32, %c0_i32_0, %c0_i32_1 : i32, i32, i32, i32
  }
  func.func @transform_1(%arg0: i32, %arg1: i32) -> (i32, i32) {
    %c0_i32 = arith.constant 0 : i32
    %c0_i32_0 = arith.constant 0 : i32
    %c0_i32_1 = arith.constant 0 : i32
    return %c0_i32, %c0_i32_0 : i32, i32
  }
  func.func @transform_2(%arg0: i32, %arg1: i32) -> (i32, i32) {
    %c0_i32 = arith.constant 0 : i32
    %c0_i32_0 = arith.constant 0 : i32
    %c0_i32_1 = arith.constant 0 : i32
    return %c0_i32, %c0_i32_0 : i32, i32
  }
  func.func @transform_3(%arg0: i32, %arg1: i32) -> (i32, i32, i32) {
    %c0_i32 = arith.constant 0 : i32
    %c0_i32_0 = arith.constant 0 : i32
    %c0_i32_1 = arith.constant 0 : i32
    %c0_i32_2 = arith.constant 0 : i32
    return %c0_i32, %c0_i32_0, %c0_i32_1 : i32, i32, i32
  }
  func.func @transform_4(%arg0: i32, %arg1: i32) -> (i32, i32, i32, i32) {
    %c0_i32 = arith.constant 0 : i32
    %c0_i32_0 = arith.constant 0 : i32
    %c0_i32_1 = arith.constant 0 : i32
    return %arg0, %arg1, %c0_i32, %c0_i32_0 : i32, i32, i32, i32
  }
  func.func @transform_5(%arg0: i32, %arg1: i32) -> (i32, i32, i32) {
    %c2_i32 = arith.constant 2 : i32
    %0 = arith.muli %arg0, %c2_i32 : i32
    %1 = arith.addi %0, %arg1 : i32
    %c0_i32 = arith.constant 0 : i32
    %c0_i32_0 = arith.constant 0 : i32
    %c0_i32_1 = arith.constant 0 : i32
    return %1, %c0_i32, %c0_i32_0 : i32, i32, i32
  }
}

module attributes {stable_mosaic.version = 11 : i64} {
  func.func @_bn_conv1x1_stats_kernel(%arg0: i32, %arg1: memref<512x128xf32, #tpu.memory_space<vmem>>, %arg2: memref<1x128xf32, #tpu.memory_space<vmem>>, %arg3: memref<1x128xf32, #tpu.memory_space<vmem>>, %arg4: memref<128x128xf32, #tpu.memory_space<vmem>>, %arg5: memref<512x128xf32, #tpu.memory_space<vmem>>, %arg6: memref<1x2x128xf32, #tpu.memory_space<vmem>>) attributes {dimension_semantics = [#tpu.dimension_semantics<parallel>], iteration_bounds = array<i64: 1>, scalar_prefetch = 0 : i64, scratch_operands = 0 : i64, tpu.core_type = #tpu.core_type<tc>, window_params = [{transform_indices = @transform_0, window_bounds = array<i64: 512, 128>}, {pipeline_mode = #tpu.pipeline_mode<synchronous>, transform_indices = @transform_1, window_bounds = array<i64: 1, 128>}, {pipeline_mode = #tpu.pipeline_mode<synchronous>, transform_indices = @transform_2, window_bounds = array<i64: 1, 128>}, {pipeline_mode = #tpu.pipeline_mode<synchronous>, transform_indices = @transform_3, window_bounds = array<i64: 128, 128>}, {transform_indices = @transform_4, window_bounds = array<i64: 512, 128>}, {transform_indices = @transform_5, window_bounds = array<i64: 1, 2, 128>}]} {
    %c0 = arith.constant 0 : index
    %c0_0 = arith.constant 0 : index
    %0 = vector.load %arg1[%c0, %c0_0] : memref<512x128xf32, #tpu.memory_space<vmem>>, vector<512x128xf32>
    %c0_1 = arith.constant 0 : index
    %c0_2 = arith.constant 0 : index
    %1 = vector.load %arg2[%c0_1, %c0_2] : memref<1x128xf32, #tpu.memory_space<vmem>>, vector<1x128xf32>
    %2 = vector.broadcast %1 : vector<1x128xf32> to vector<512x128xf32>
    %3 = arith.mulf %0, %2 : vector<512x128xf32>
    %c0_3 = arith.constant 0 : index
    %c0_4 = arith.constant 0 : index
    %4 = vector.load %arg3[%c0_3, %c0_4] : memref<1x128xf32, #tpu.memory_space<vmem>>, vector<1x128xf32>
    %5 = vector.broadcast %4 : vector<1x128xf32> to vector<512x128xf32>
    %6 = arith.addf %3, %5 : vector<512x128xf32>
    %cst = arith.constant 0.000000e+00 : f32
    %7 = vector.broadcast %cst : f32 to vector<512x128xf32>
    %8 = arith.maximumf %6, %7 : vector<512x128xf32>
    %c0_5 = arith.constant 0 : index
    %c0_6 = arith.constant 0 : index
    %9 = vector.load %arg4[%c0_5, %c0_6] : memref<128x128xf32, #tpu.memory_space<vmem>>, vector<128x128xf32>
    %cst_7 = arith.constant dense<0.000000e+00> : vector<512x128xf32>
    %10 = tpu.matmul %8, %9, %cst_7 {dimension_numbers = #tpu.dot_dimension_numbers<[1], [0], [0], [1], [0, 0, 1, 1], [], []>} : vector<512x128xf32>, vector<128x128xf32>, vector<512x128xf32> -> vector<512x128xf32>
    %c0_8 = arith.constant 0 : index
    %c0_9 = arith.constant 0 : index
    %11 = vector.load %arg5[%c0_8, %c0_9] : memref<512x128xf32, #tpu.memory_space<vmem>>, vector<512x128xf32>
    tpu.vector_store %arg5[%c0_8, %c0_9], %10 {strides = array<i32>} : memref<512x128xf32, #tpu.memory_space<vmem>>, vector<512x128xf32>,
    %cst_10 = arith.constant dense<0.000000e+00> : vector<128xf32>
    %12 = vector.multi_reduction <add>, %10, %cst_10 [0] : vector<512x128xf32> to vector<128xf32>
    %13 = vector.shape_cast %12 : vector<128xf32> to vector<1x128xf32>
    %14 = arith.mulf %10, %10 : vector<512x128xf32>
    %cst_11 = arith.constant dense<0.000000e+00> : vector<128xf32>
    %15 = vector.multi_reduction <add>, %14, %cst_11 [0] : vector<512x128xf32> to vector<128xf32>
    %16 = vector.shape_cast %15 : vector<128xf32> to vector<1x128xf32>
    %17 = tpu.concatenate %13, %16 in 0 : vector<1x128xf32>, vector<1x128xf32> -> vector<2x128xf32>
    %c0_12 = arith.constant 0 : index
    %c0_13 = arith.constant 0 : index
    %c0_14 = arith.constant 0 : index
    %18 = vector.load %arg6[%c0_12, %c0_13, %c0_14] : memref<1x2x128xf32, #tpu.memory_space<vmem>>, vector<1x2x128xf32>
    %19 = vector.shape_cast %18 : vector<1x2x128xf32> to vector<2x128xf32>
    %20 = vector.shape_cast %17 : vector<2x128xf32> to vector<1x2x128xf32>
    tpu.vector_store %arg6[%c0_12, %c0_13, %c0_14], %20 {strides = array<i32>} : memref<1x2x128xf32, #tpu.memory_space<vmem>>, vector<1x2x128xf32>,
    return
  }
  func.func @transform_0(%arg0: i32) -> (i32, i32) {
    %c0_i32 = arith.constant 0 : i32
    %c0_i32_0 = arith.constant 0 : i32
    return %arg0, %c0_i32 : i32, i32
  }
  func.func @transform_1(%arg0: i32) -> (i32, i32) {
    %c0_i32 = arith.constant 0 : i32
    %c0_i32_0 = arith.constant 0 : i32
    %c0_i32_1 = arith.constant 0 : i32
    return %c0_i32, %c0_i32_0 : i32, i32
  }
  func.func @transform_2(%arg0: i32) -> (i32, i32) {
    %c0_i32 = arith.constant 0 : i32
    %c0_i32_0 = arith.constant 0 : i32
    %c0_i32_1 = arith.constant 0 : i32
    return %c0_i32, %c0_i32_0 : i32, i32
  }
  func.func @transform_3(%arg0: i32) -> (i32, i32) {
    %c0_i32 = arith.constant 0 : i32
    %c0_i32_0 = arith.constant 0 : i32
    %c0_i32_1 = arith.constant 0 : i32
    return %c0_i32, %c0_i32_0 : i32, i32
  }
  func.func @transform_4(%arg0: i32) -> (i32, i32) {
    %c0_i32 = arith.constant 0 : i32
    %c0_i32_0 = arith.constant 0 : i32
    return %arg0, %c0_i32 : i32, i32
  }
  func.func @transform_5(%arg0: i32) -> (i32, i32, i32) {
    %c0_i32 = arith.constant 0 : i32
    %c0_i32_0 = arith.constant 0 : i32
    %c0_i32_1 = arith.constant 0 : i32
    return %arg0, %c0_i32, %c0_i32_0 : i32, i32, i32
  }
}

module attributes {stable_mosaic.version = 11 : i64} {
  func.func @_bn_residual_kernel(%arg0: i32, %arg1: memref<512x128xf32, #tpu.memory_space<vmem>>, %arg2: memref<512x128xf32, #tpu.memory_space<vmem>>, %arg3: memref<1x128xf32, #tpu.memory_space<vmem>>, %arg4: memref<1x128xf32, #tpu.memory_space<vmem>>, %arg5: memref<512x128xf32, #tpu.memory_space<vmem>>) attributes {dimension_semantics = [#tpu.dimension_semantics<parallel>], iteration_bounds = array<i64: 1>, scalar_prefetch = 0 : i64, scratch_operands = 0 : i64, tpu.core_type = #tpu.core_type<tc>, window_params = [{transform_indices = @transform_0, window_bounds = array<i64: 512, 128>}, {transform_indices = @transform_1, window_bounds = array<i64: 512, 128>}, {pipeline_mode = #tpu.pipeline_mode<synchronous>, transform_indices = @transform_2, window_bounds = array<i64: 1, 128>}, {pipeline_mode = #tpu.pipeline_mode<synchronous>, transform_indices = @transform_3, window_bounds = array<i64: 1, 128>}, {transform_indices = @transform_4, window_bounds = array<i64: 512, 128>}]} {
    %c0 = arith.constant 0 : index
    %c0_0 = arith.constant 0 : index
    %0 = vector.load %arg1[%c0, %c0_0] : memref<512x128xf32, #tpu.memory_space<vmem>>, vector<512x128xf32>
    %c0_1 = arith.constant 0 : index
    %c0_2 = arith.constant 0 : index
    %1 = vector.load %arg3[%c0_1, %c0_2] : memref<1x128xf32, #tpu.memory_space<vmem>>, vector<1x128xf32>
    %2 = vector.broadcast %1 : vector<1x128xf32> to vector<512x128xf32>
    %3 = arith.mulf %0, %2 : vector<512x128xf32>
    %c0_3 = arith.constant 0 : index
    %c0_4 = arith.constant 0 : index
    %4 = vector.load %arg4[%c0_3, %c0_4] : memref<1x128xf32, #tpu.memory_space<vmem>>, vector<1x128xf32>
    %5 = vector.broadcast %4 : vector<1x128xf32> to vector<512x128xf32>
    %6 = arith.addf %3, %5 : vector<512x128xf32>
    %c0_5 = arith.constant 0 : index
    %c0_6 = arith.constant 0 : index
    %7 = vector.load %arg2[%c0_5, %c0_6] : memref<512x128xf32, #tpu.memory_space<vmem>>, vector<512x128xf32>
    %8 = arith.addf %6, %7 : vector<512x128xf32>
    %cst = arith.constant 0.000000e+00 : f32
    %9 = vector.broadcast %cst : f32 to vector<512x128xf32>
    %10 = arith.maximumf %8, %9 : vector<512x128xf32>
    %c0_7 = arith.constant 0 : index
    %c0_8 = arith.constant 0 : index
    %11 = vector.load %arg5[%c0_7, %c0_8] : memref<512x128xf32, #tpu.memory_space<vmem>>, vector<512x128xf32>
    tpu.vector_store %arg5[%c0_7, %c0_8], %10 {strides = array<i32>} : memref<512x128xf32, #tpu.memory_space<vmem>>, vector<512x128xf32>,
    return
  }
  func.func @transform_0(%arg0: i32) -> (i32, i32) {
    %c0_i32 = arith.constant 0 : i32
    %c0_i32_0 = arith.constant 0 : i32
    return %arg0, %c0_i32 : i32, i32
  }
  func.func @transform_1(%arg0: i32) -> (i32, i32) {
    %c0_i32 = arith.constant 0 : i32
    %c0_i32_0 = arith.constant 0 : i32
    return %arg0, %c0_i32 : i32, i32
  }
  func.func @transform_2(%arg0: i32) -> (i32, i32) {
    %c0_i32 = arith.constant 0 : i32
    %c0_i32_0 = arith.constant 0 : i32
    %c0_i32_1 = arith.constant 0 : i32
    return %c0_i32, %c0_i32_0 : i32, i32
  }
  func.func @transform_3(%arg0: i32) -> (i32, i32) {
    %c0_i32 = arith.constant 0 : i32
    %c0_i32_0 = arith.constant 0 : i32
    %c0_i32_1 = arith.constant 0 : i32
    return %c0_i32, %c0_i32_0 : i32, i32
  }
  func.func @transform_4(%arg0: i32) -> (i32, i32) {
    %c0_i32 = arith.constant 0 : i32
    %c0_i32_0 = arith.constant 0 : i32
    return %arg0, %c0_i32 : i32, i32
  }
}

</mosaic_0001>

<llo_original>
// kernel: bottleneck_forward_nhwc.4
$region0: #{bottleneck_forward_nhwc.4}
  #allocation0 [shape = 'u32[]', space=smem, size = 0x4, offset = 0x4, fixed_abs, tag = 'smem constant byte address 0x4 - core index']
  #allocation1 [shape = 'u32[144,128]{1,0:T(1,128)}', space=vmem, size = 0x12000, scoped, tag = 'internal scratch']
  %s0 = inlined_call_operand.vmem [shape: f32[512,128], index: 0, kind: input, shape index: {}]
  %s1 = inlined_call_operand.vmem [shape: f32[128,128], index: 1, kind: input, shape index: {}]
  %s2 = inlined_call_operand.vmem [shape: f32[512,128], index: 2, kind: output, shape index: {0}]
  %s3 = inlined_call_operand.vmem [shape: f32[1,2,128], index: 3, kind: output, shape index: {1}]
  %4 = xla_tuple %s2, %s3
  %s5 = sld [smem:[#allocation0]]
  $region26: #{bottleneck_forward_nhwc.4} parent=0
    _
  %s7 = ssub.s32 1, %s5
  %s8 = scalar_select 0, %s7, %s5
  // Predicated region
  $region2: #{bottleneck_forward_nhwc.4} parent=0 // pred_check
    _
  $region3: #{bottleneck_forward_nhwc.4} parent=0 // pred_check_branch
    %10 = sbr.rel (0) target = $region5
  $region4: #{bottleneck_forward_nhwc.4} parent=0 // pred_region
    _
  $region5: #{bottleneck_forward_nhwc.4} parent=0 // pred_fallthru
    _
  // Predicated region
  $region6: #{bottleneck_forward_nhwc.4} parent=0 // pred_check
    _
  $region7: #{bottleneck_forward_nhwc.4} parent=0 // pred_check_branch
    %12 = sbr.rel (0) target = $region9
  $region8: #{bottleneck_forward_nhwc.4} parent=0 // pred_region
    _
  $region9: #{bottleneck_forward_nhwc.4} parent=0 // pred_fallthru
    _
  %v13 = vld [vmem:[%s0] sm:$0xff]
  %v14 = vld [vmem:[%s0 + $0x8] sm:$0xff]
  %v15 = vld [vmem:[%s0 + $0x10] sm:$0xff]
  %v16 = vld [vmem:[%s0 + $0x18] sm:$0xff]
  %v17 = vld [vmem:[%s0 + $0x20] sm:$0xff]
  %v18 = vld [vmem:[%s0 + $0x28] sm:$0xff]
  %v19 = vld [vmem:[%s0 + $0x30] sm:$0xff]
  %v20 = vld [vmem:[%s0 + $0x38] sm:$0xff]
  %v21 = vld [vmem:[%s0 + $0x40] sm:$0xff]
  %v22 = vld [vmem:[%s0 + $0x48] sm:$0xff]
  %v23 = vld [vmem:[%s0 + $0x50] sm:$0xff]
  %v24 = vld [vmem:[%s0 + $0x58] sm:$0xff]
  %v25 = vld [vmem:[%s0 + $0x60] sm:$0xff]
  %v26 = vld [vmem:[%s0 + $0x68] sm:$0xff]
  %v27 = vld [vmem:[%s0 + $0x70] sm:$0xff]
  %v28 = vld [vmem:[%s0 + $0x78] sm:$0xff]
  %v29 = vld [vmem:[%s0 + $0x80] sm:$0xff]
  %v30 = vld [vmem:[%s0 + $0x88] sm:$0xff]
  %v31 = vld [vmem:[%s0 + $0x90] sm:$0xff]
  %v32 = vld [vmem:[%s0 + $0x98] sm:$0xff]
  %v33 = vld [vmem:[%s0 + $0xa0] sm:$0xff]
  %v34 = vld [vmem:[%s0 + $0xa8] sm:$0xff]
  %v35 = vld [vmem:[%s0 + $0xb0] sm:$0xff]
  %v36 = vld [vmem:[%s0 + $0xb8] sm:$0xff]
  %v37 = vld [vmem:[%s0 + $0xc0] sm:$0xff]
  %v38 = vld [vmem:[%s0 + $0xc8] sm:$0xff]
  %v39 = vld [vmem:[%s0 + $0xd0] sm:$0xff]
  %v40 = vld [vmem:[%s0 + $0xd8] sm:$0xff]
  %v41 = vld [vmem:[%s0 + $0xe0] sm:$0xff]
  %v42 = vld [vmem:[%s0 + $0xe8] sm:$0xff]
  %v43 = vld [vmem:[%s0 + $0xf0] sm:$0xff]
  %v44 = vld [vmem:[%s0 + $0xf8] sm:$0xff]
  %v45 = vld [vmem:[%s0 + $0x100] sm:$0xff]
  %v46 = vld [vmem:[%s0 + $0x108] sm:$0xff]
  %v47 = vld [vmem:[%s0 + $0x110] sm:$0xff]
  %v48 = vld [vmem:[%s0 + $0x118] sm:$0xff]
  %v49 = vld [vmem:[%s0 + $0x120] sm:$0xff]
  %v50 = vld [vmem:[%s0 + $0x128] sm:$0xff]
  %v51 = vld [vmem:[%s0 + $0x130] sm:$0xff]
  %v52 = vld [vmem:[%s0 + $0x138] sm:$0xff]
  %v53 = vld [vmem:[%s0 + $0x140] sm:$0xff]
  %v54 = vld [vmem:[%s0 + $0x148] sm:$0xff]
  %v55 = vld [vmem:[%s0 + $0x150] sm:$0xff]
  %v56 = vld [vmem:[%s0 + $0x158] sm:$0xff]
  %v57 = vld [vmem:[%s0 + $0x160] sm:$0xff]
  %v58 = vld [vmem:[%s0 + $0x168] sm:$0xff]
  %v59 = vld [vmem:[%s0 + $0x170] sm:$0xff]
  %v60 = vld [vmem:[%s0 + $0x178] sm:$0xff]
  %v61 = vld [vmem:[%s0 + $0x180] sm:$0xff]
  %v62 = vld [vmem:[%s0 + $0x188] sm:$0xff]
  %v63 = vld [vmem:[%s0 + $0x190] sm:$0xff]
  %v64 = vld [vmem:[%s0 + $0x198] sm:$0xff]
  %v65 = vld [vmem:[%s0 + $0x1a0] sm:$0xff]
  %v66 = vld [vmem:[%s0 + $0x1a8] sm:$0xff]
  %v67 = vld [vmem:[%s0 + $0x1b0] sm:$0xff]
  %v68 = vld [vmem:[%s0 + $0x1b8] sm:$0xff]
  %v69 = vld [vmem:[%s0 + $0x1c0] sm:$0xff]
  %v70 = vld [vmem:[%s0 + $0x1c8] sm:$0xff]
  %v71 = vld [vmem:[%s0 + $0x1d0] sm:$0xff]
  %v72 = vld [vmem:[%s0 + $0x1d8] sm:$0xff]
  %v73 = vld [vmem:[%s0 + $0x1e0] sm:$0xff]
  %v74 = vld [vmem:[%s0 + $0x1e8] sm:$0xff]
  %v75 = vld [vmem:[%s0 + $0x1f0] sm:$0xff]
  %v76 = vld [vmem:[%s0 + $0x1f8] sm:$0xff]
  %v77 = vld [vmem:[%s1] sm:$0xff]
  %v78 = vld [vmem:[%s1 + $0x8] sm:$0xff]
  %v79 = vld [vmem:[%s1 + $0x10] sm:$0xff]
  %v80 = vld [vmem:[%s1 + $0x18] sm:$0xff]
  %v81 = vld [vmem:[%s1 + $0x20] sm:$0xff]
  %v82 = vld [vmem:[%s1 + $0x28] sm:$0xff]
  %v83 = vld [vmem:[%s1 + $0x30] sm:$0xff]
  %v84 = vld [vmem:[%s1 + $0x38] sm:$0xff]
  %v85 = vld [vmem:[%s1 + $0x40] sm:$0xff]
  %v86 = vld [vmem:[%s1 + $0x48] sm:$0xff]
  %v87 = vld [vmem:[%s1 + $0x50] sm:$0xff]
  %v88 = vld [vmem:[%s1 + $0x58] sm:$0xff]
  %v89 = vld [vmem:[%s1 + $0x60] sm:$0xff]
  %v90 = vld [vmem:[%s1 + $0x68] sm:$0xff]
  %v91 = vld [vmem:[%s1 + $0x70] sm:$0xff]
  %v92 = vld [vmem:[%s1 + $0x78] sm:$0xff]
  %93 = vmatprep.subr.mxu0 0.0
  %94 = vmatpush1.msra.mxu0 %v92
  %95 = vmatprep.subr.mxu0 0.0
  %96 = vmatpush1.msra.mxu0 %v91
  %97 = vmatprep.subr.mxu0 0.0
  %98 = vmatpush1.msra.mxu0 %v90
  %99 = vmatprep.subr.mxu0 0.0
  %100 = vmatpush1.msra.mxu0 %v89
  %101 = vmatprep.subr.mxu0 0.0
  %102 = vmatpush1.msra.mxu0 %v88
  %103 = vmatprep.subr.mxu0 0.0
  %104 = vmatpush1.msra.mxu0 %v87
  %105 = vmatprep.subr.mxu0 0.0
  %106 = vmatpush1.msra.mxu0 %v86
  %107 = vmatprep.subr.mxu0 0.0
  %108 = vmatpush1.msra.mxu0 %v85
  %109 = vmatprep.subr.mxu0 0.0
  %110 = vmatpush1.msra.mxu0 %v84
  %111 = vmatprep.subr.mxu0 0.0
  %112 = vmatpush1.msra.mxu0 %v83
  %113 = vmatprep.subr.mxu0 0.0
  %114 = vmatpush1.msra.mxu0 %v82
  %115 = vmatprep.subr.mxu0 0.0
  %116 = vmatpush1.msra.mxu0 %v81
  %117 = vmatprep.subr.mxu0 0.0
  %118 = vmatpush1.msra.mxu0 %v80
  %119 = vmatprep.subr.mxu0 0.0
  %120 = vmatpush1.msra.mxu0 %v79
  %121 = vmatprep.subr.mxu0 0.0
  %122 = vmatpush1.msra.mxu0 %v78
  %123 = vmatprep.subr.mxu0 0.0
  %124 = vmatpush1.msra.mxu0 %v77
  %125 = vmatprep.subr.mxu0 0.0
  %126 = vmatpush2.msra.mxu0 0.0
  %127 = vmatprep.subr.mxu0 0.0
  %128 = vmatpush2.msra.mxu0 0.0
  %129 = vmatprep.subr.mxu0 0.0
  %130 = vmatpush2.msra.mxu0 0.0
  %131 = vmatprep.subr.mxu0 0.0
  %132 = vmatpush2.msra.mxu0 0.0
  %133 = vmatprep.subr.mxu0 0.0
  %134 = vmatpush2.msra.mxu0 0.0
  %135 = vmatprep.subr.mxu0 0.0
  %136 = vmatpush2.msra.mxu0 0.0
  %137 = vmatprep.subr.mxu0 0.0
  %138 = vmatpush2.msra.mxu0 0.0
  %139 = vmatprep.subr.mxu0 0.0
  %140 = vmatpush2.msra.mxu0 0.0
  %141 = vmatprep.subr.mxu0 0.0
  %142 = vmatpush2.msra.mxu0 0.0
  %143 = vmatprep.subr.mxu0 0.0
  %144 = vmatpush2.msra.mxu0 0.0
  %145 = vmatprep.subr.mxu0 0.0
  %146 = vmatpush2.msra.mxu0 0.0
  %147 = vmatprep.subr.mxu0 0.0
  %148 = vmatpush2.msra.mxu0 0.0
  %149 = vmatprep.subr.mxu0 0.0
  %150 = vmatpush2.msra.mxu0 0.0
  %151 = vmatprep.subr.mxu0 0.0
  %152 = vmatpush2.msra.mxu0 0.0
  %153 = vmatprep.subr.mxu0 0.0
  %154 = vmatpush2.msra.mxu0 0.0
  %155 = vmatprep.subr.mxu0 0.0
  %156 = vmatpush2.msra.mxu0 0.0
  %157 = vmatprep.mubr.f32.mxu0 0.0
  %158 = vmatmul.mubr.f32.gmra.mxu0 %v13
  %v159 = vpop.f32.mrf.mxu0
  %v160 = vadd.f32 0.0, %v159
  %v161 = vpop.f32.mrf.mxu0
  %162 = vmatprep.mubr.f32.mxu0 0.0
  %163 = vmatmul.mubr.f32.gmra.mxu0 %v14
  %v164 = vpop.f32.mrf.mxu0
  %v165 = vadd.f32 0.0, %v164
  %v166 = vpop.f32.mrf.mxu0
  %167 = vmatprep.mubr.f32.mxu0 0.0
  %168 = vmatmul.mubr.f32.gmra.mxu0 %v15
  %v169 = vpop.f32.mrf.mxu0
  %v170 = vadd.f32 0.0, %v169
  %v171 = vpop.f32.mrf.mxu0
  %172 = vmatprep.mubr.f32.mxu0 0.0
  %173 = vmatmul.mubr.f32.gmra.mxu0 %v16
  %v174 = vpop.f32.mrf.mxu0
  %v175 = vadd.f32 0.0, %v174
  %v176 = vpop.f32.mrf.mxu0
  %177 = vmatprep.mubr.f32.mxu0 0.0
  %178 = vmatmul.mubr.f32.gmra.mxu0 %v17
  %v179 = vpop.f32.mrf.mxu0
  %v180 = vadd.f32 0.0, %v179
  %v181 = vpop.f32.mrf.mxu0
  %182 = vmatprep.mubr.f32.mxu0 0.0
  %183 = vmatmul.mubr.f32.gmra.mxu0 %v18
  %v184 = vpop.f32.mrf.mxu0
  %v185 = vadd.f32 0.0, %v184
  %v186 = vpop.f32.mrf.mxu0
  %187 = vmatprep.mubr.f32.mxu0 0.0
  %188 = vmatmul.mubr.f32.gmra.mxu0 %v19
  %v189 = vpop.f32.mrf.mxu0
  %v190 = vadd.f32 0.0, %v189
  %v191 = vpop.f32.mrf.mxu0
  %192 = vmatprep.mubr.f32.mxu0 0.0
  %193 = vmatmul.mubr.f32.gmra.mxu0 %v20
  %v194 = vpop.f32.mrf.mxu0
  %v195 = vadd.f32 0.0, %v194
  %v196 = vpop.f32.mrf.mxu0
  %197 = vmatprep.mubr.f32.mxu0 0.0
  %198 = vmatmul.mubr.f32.gmra.mxu0 %v21
  %v199 = vpop.f32.mrf.mxu0
  %v200 = vadd.f32 0.0, %v199
  %v201 = vpop.f32.mrf.mxu0
  %202 = vmatprep.mubr.f32.mxu0 0.0
  %203 = vmatmul.mubr.f32.gmra.mxu0 %v22
  %v204 = vpop.f32.mrf.mxu0
  %v205 = vadd.f32 0.0, %v204
  %v206 = vpop.f32.mrf.mxu0
  %207 = vmatprep.mubr.f32.mxu0 0.0
  %208 = vmatmul.mubr.f32.gmra.mxu0 %v23
  %v209 = vpop.f32.mrf.mxu0
  %v210 = vadd.f32 0.0, %v209
  %v211 = vpop.f32.mrf.mxu0
  %212 = vmatprep.mubr.f32.mxu0 0.0
  %213 = vmatmul.mubr.f32.gmra.mxu0 %v24
  %v214 = vpop.f32.mrf.mxu0
  %v215 = vadd.f32 0.0, %v214
  %v216 = vpop.f32.mrf.mxu0
  %217 = vmatprep.mubr.f32.mxu0 0.0
  %218 = vmatmul.mubr.f32.gmra.mxu0 %v25
  %v219 = vpop.f32.mrf.mxu0
  %v220 = vadd.f32 0.0, %v219
  %v221 = vpop.f32.mrf.mxu0
  %222 = vmatprep.mubr.f32.mxu0 0.0
  %223 = vmatmul.mubr.f32.gmra.mxu0 %v26
  %v224 = vpop.f32.mrf.mxu0
  %v225 = vadd.f32 0.0, %v224
  %v226 = vpop.f32.mrf.mxu0
  %227 = vmatprep.mubr.f32.mxu0 0.0
  %228 = vmatmul.mubr.f32.gmra.mxu0 %v27
  %v229 = vpop.f32.mrf.mxu0
  %v230 = vadd.f32 0.0, %v229
  %v231 = vpop.f32.mrf.mxu0
  %232 = vmatprep.mubr.f32.mxu0 0.0
  %233 = vmatmul.mubr.f32.gmra.mxu0 %v28
  %v234 = vpop.f32.mrf.mxu0
  %v235 = vadd.f32 0.0, %v234
  %v236 = vpop.f32.mrf.mxu0
  %237 = vmatprep.mubr.f32.mxu0 0.0
  %238 = vmatmul.mubr.f32.gmra.mxu0 %v29
  %v239 = vpop.f32.mrf.mxu0
  %v240 = vadd.f32 0.0, %v239
  %v241 = vpop.f32.mrf.mxu0
  %242 = vmatprep.mubr.f32.mxu0 0.0
  %243 = vmatmul.mubr.f32.gmra.mxu0 %v30
  %v244 = vpop.f32.mrf.mxu0
  %v245 = vadd.f32 0.0, %v244
  %v246 = vpop.f32.mrf.mxu0
  %247 = vmatprep.mubr.f32.mxu0 0.0
  %248 = vmatmul.mubr.f32.gmra.mxu0 %v31
  %v249 = vpop.f32.mrf.mxu0
  %v250 = vadd.f32 0.0, %v249
  %v251 = vpop.f32.mrf.mxu0
  %252 = vmatprep.mubr.f32.mxu0 0.0
  %253 = vmatmul.mubr.f32.gmra.mxu0 %v32
  %v254 = vpop.f32.mrf.mxu0
  %v255 = vadd.f32 0.0, %v254
  %v256 = vpop.f32.mrf.mxu0
  %257 = vmatprep.mubr.f32.mxu0 0.0
  %258 = vmatmul.mubr.f32.gmra.mxu0 %v33
  %v259 = vpop.f32.mrf.mxu0
  %v260 = vadd.f32 0.0, %v259
  %v261 = vpop.f32.mrf.mxu0
  %262 = vmatprep.mubr.f32.mxu0 0.0
  %263 = vmatmul.mubr.f32.gmra.mxu0 %v34
  %v264 = vpop.f32.mrf.mxu0
  %v265 = vadd.f32 0.0, %v264
  %v266 = vpop.f32.mrf.mxu0
  %267 = vmatprep.mubr.f32.mxu0 0.0
  %268 = vmatmul.mubr.f32.gmra.mxu0 %v35
  %v269 = vpop.f32.mrf.mxu0
  %v270 = vadd.f32 0.0, %v269
  %v271 = vpop.f32.mrf.mxu0
  %272 = vmatprep.mubr.f32.mxu0 0.0
  %273 = vmatmul.mubr.f32.gmra.mxu0 %v36
  %v274 = vpop.f32.mrf.mxu0
  %v275 = vadd.f32 0.0, %v274
  %v276 = vpop.f32.mrf.mxu0
  %277 = vmatprep.mubr.f32.mxu0 0.0
  %278 = vmatmul.mubr.f32.gmra.mxu0 %v37
  %v279 = vpop.f32.mrf.mxu0
  %v280 = vadd.f32 0.0, %v279
  %v281 = vpop.f32.mrf.mxu0
  %282 = vmatprep.mubr.f32.mxu0 0.0
  %283 = vmatmul.mubr.f32.gmra.mxu0 %v38
  %v284 = vpop.f32.mrf.mxu0
  %v285 = vadd.f32 0.0, %v284
  %v286 = vpop.f32.mrf.mxu0
  %287 = vmatprep.mubr.f32.mxu0 0.0
  %288 = vmatmul.mubr.f32.gmra.mxu0 %v39
  %v289 = vpop.f32.mrf.mxu0
  %v290 = vadd.f32 0.0, %v289
  %v291 = vpop.f32.mrf.mxu0
  %292 = vmatprep.mubr.f32.mxu0 0.0
  %293 = vmatmul.mubr.f32.gmra.mxu0 %v40
  %v294 = vpop.f32.mrf.mxu0
  %v295 = vadd.f32 0.0, %v294
  %v296 = vpop.f32.mrf.mxu0
  %297 = vmatprep.mubr.f32.mxu0 0.0
  %298 = vmatmul.mubr.f32.gmra.mxu0 %v41
  %v299 = vpop.f32.mrf.mxu0
  %v300 = vadd.f32 0.0, %v299
  %v301 = vpop.f32.mrf.mxu0
  %302 = vmatprep.mubr.f32.mxu0 0.0
  %303 = vmatmul.mubr.f32.gmra.mxu0 %v42
  %v304 = vpop.f32.mrf.mxu0
  %v305 = vadd.f32 0.0, %v304
  %v306 = vpop.f32.mrf.mxu0
  %307 = vmatprep.mubr.f32.mxu0 0.0
  %308 = vmatmul.mubr.f32.gmra.mxu0 %v43
  %v309 = vpop.f32.mrf.mxu0
  %v310 = vadd.f32 0.0, %v309
  %v311 = vpop.f32.mrf.mxu0
  %312 = vmatprep.mubr.f32.mxu0 0.0
  %313 = vmatmul.mubr.f32.gmra.mxu0 %v44
  %v314 = vpop.f32.mrf.mxu0
  %v315 = vadd.f32 0.0, %v314
  %v316 = vpop.f32.mrf.mxu0
  %317 = vmatprep.mubr.f32.mxu0 0.0
  %318 = vmatmul.mubr.f32.gmra.mxu0 %v45
  %v319 = vpop.f32.mrf.mxu0
  %v320 = vadd.f32 0.0, %v319
  %v321 = vpop.f32.mrf.mxu0
  %322 = vmatprep.mubr.f32.mxu0 0.0
  %323 = vmatmul.mubr.f32.gmra.mxu0 %v46
  %v324 = vpop.f32.mrf.mxu0
  %v325 = vadd.f32 0.0, %v324
  %v326 = vpop.f32.mrf.mxu0
  %327 = vmatprep.mubr.f32.mxu0 0.0
  %328 = vmatmul.mubr.f32.gmra.mxu0 %v47
  %v329 = vpop.f32.mrf.mxu0
  %v330 = vadd.f32 0.0, %v329
  %v331 = vpop.f32.mrf.mxu0
  %332 = vmatprep.mubr.f32.mxu0 0.0
  %333 = vmatmul.mubr.f32.gmra.mxu0 %v48
  %v334 = vpop.f32.mrf.mxu0
  %v335 = vadd.f32 0.0, %v334
  %v336 = vpop.f32.mrf.mxu0
  %337 = vmatprep.mubr.f32.mxu0 0.0
  %338 = vmatmul.mubr.f32.gmra.mxu0 %v49
  %v339 = vpop.f32.mrf.mxu0
  %v340 = vadd.f32 0.0, %v339
  %v341 = vpop.f32.mrf.mxu0
  %342 = vmatprep.mubr.f32.mxu0 0.0
  %343 = vmatmul.mubr.f32.gmra.mxu0 %v50
  %v344 = vpop.f32.mrf.mxu0
  %v345 = vadd.f32 0.0, %v344
  %v346 = vpop.f32.mrf.mxu0
  %347 = vmatprep.mubr.f32.mxu0 0.0
  %348 = vmatmul.mubr.f32.gmra.mxu0 %v51
  %v349 = vpop.f32.mrf.mxu0
  %v350 = vadd.f32 0.0, %v349
  %v351 = vpop.f32.mrf.mxu0
  %352 = vmatprep.mubr.f32.mxu0 0.0
  %353 = vmatmul.mubr.f32.gmra.mxu0 %v52
  %v354 = vpop.f32.mrf.mxu0
  %v355 = vadd.f32 0.0, %v354
  %v356 = vpop.f32.mrf.mxu0
  %357 = vmatprep.mubr.f32.mxu0 0.0
  %358 = vmatmul.mubr.f32.gmra.mxu0 %v53
  %v359 = vpop.f32.mrf.mxu0
  %v360 = vadd.f32 0.0, %v359
  %v361 = vpop.f32.mrf.mxu0
  %362 = vmatprep.mubr.f32.mxu0 0.0
  %363 = vmatmul.mubr.f32.gmra.mxu0 %v54
  %v364 = vpop.f32.mrf.mxu0
  %v365 = vadd.f32 0.0, %v364
  %v366 = vpop.f32.mrf.mxu0
  %367 = vmatprep.mubr.f32.mxu0 0.0
  %368 = vmatmul.mubr.f32.gmra.mxu0 %v55
  %v369 = vpop.f32.mrf.mxu0
  %v370 = vadd.f32 0.0, %v369
  %v371 = vpop.f32.mrf.mxu0
  %372 = vmatprep.mubr.f32.mxu0 0.0
  %373 = vmatmul.mubr.f32.gmra.mxu0 %v56
  %v374 = vpop.f32.mrf.mxu0
  %v375 = vadd.f32 0.0, %v374
  %v376 = vpop.f32.mrf.mxu0
  %377 = vmatprep.mubr.f32.mxu0 0.0
  %378 = vmatmul.mubr.f32.gmra.mxu0 %v57
  %v379 = vpop.f32.mrf.mxu0
  %v380 = vadd.f32 0.0, %v379
  %v381 = vpop.f32.mrf.mxu0
  %382 = vmatprep.mubr.f32.mxu0 0.0
  %383 = vmatmul.mubr.f32.gmra.mxu0 %v58
  %v384 = vpop.f32.mrf.mxu0
  %v385 = vadd.f32 0.0, %v384
  %v386 = vpop.f32.mrf.mxu0
  %387 = vmatprep.mubr.f32.mxu0 0.0
  %388 = vmatmul.mubr.f32.gmra.mxu0 %v59
  %v389 = vpop.f32.mrf.mxu0
  %v390 = vadd.f32 0.0, %v389
  %v391 = vpop.f32.mrf.mxu0
  %392 = vmatprep.mubr.f32.mxu0 0.0
  %393 = vmatmul.mubr.f32.gmra.mxu0 %v60
  %v394 = vpop.f32.mrf.mxu0
  %v395 = vadd.f32 0.0, %v394
  %v396 = vpop.f32.mrf.mxu0
  %397 = vmatprep.mubr.f32.mxu0 0.0
  %398 = vmatmul.mubr.f32.gmra.mxu0 %v61
  %v399 = vpop.f32.mrf.mxu0
  %v400 = vadd.f32 0.0, %v399
  %v401 = vpop.f32.mrf.mxu0
  %402 = vmatprep.mubr.f32.mxu0 0.0
  %403 = vmatmul.mubr.f32.gmra.mxu0 %v62
  %v404 = vpop.f32.mrf.mxu0
  %v405 = vadd.f32 0.0, %v404
  %v406 = vpop.f32.mrf.mxu0
  %407 = vmatprep.mubr.f32.mxu0 0.0
  %408 = vmatmul.mubr.f32.gmra.mxu0 %v63
  %v409 = vpop.f32.mrf.mxu0
  %v410 = vadd.f32 0.0, %v409
  %v411 = vpop.f32.mrf.mxu0
  %412 = vmatprep.mubr.f32.mxu0 0.0
  %413 = vmatmul.mubr.f32.gmra.mxu0 %v64
  %v414 = vpop.f32.mrf.mxu0
  %v415 = vadd.f32 0.0, %v414
  %v416 = vpop.f32.mrf.mxu0
  %417 = vmatprep.mubr.f32.mxu0 0.0
  %418 = vmatmul.mubr.f32.gmra.mxu0 %v65
  %v419 = vpop.f32.mrf.mxu0
  %v420 = vadd.f32 0.0, %v419
  %v421 = vpop.f32.mrf.mxu0
  %422 = vmatprep.mubr.f32.mxu0 0.0
  %423 = vmatmul.mubr.f32.gmra.mxu0 %v66
  %v424 = vpop.f32.mrf.mxu0
  %v425 = vadd.f32 0.0, %v424
  %v426 = vpop.f32.mrf.mxu0
  %427 = vmatprep.mubr.f32.mxu0 0.0
  %428 = vmatmul.mubr.f32.gmra.mxu0 %v67
  %v429 = vpop.f32.mrf.mxu0
  %v430 = vadd.f32 0.0, %v429
  %v431 = vpop.f32.mrf.mxu0
  %432 = vmatprep.mubr.f32.mxu0 0.0
  %433 = vmatmul.mubr.f32.gmra.mxu0 %v68
  %v434 = vpop.f32.mrf.mxu0
  %v435 = vadd.f32 0.0, %v434
  %v436 = vpop.f32.mrf.mxu0
  %437 = vmatprep.mubr.f32.mxu0 0.0
  %438 = vmatmul.mubr.f32.gmra.mxu0 %v69
  %v439 = vpop.f32.mrf.mxu0
  %v440 = vadd.f32 0.0, %v439
  %v441 = vpop.f32.mrf.mxu0
  %442 = vmatprep.mubr.f32.mxu0 0.0
  %443 = vmatmul.mubr.f32.gmra.mxu0 %v70
  %v444 = vpop.f32.mrf.mxu0
  %v445 = vadd.f32 0.0, %v444
  %v446 = vpop.f32.mrf.mxu0
  %447 = vmatprep.mubr.f32.mxu0 0.0
  %448 = vmatmul.mubr.f32.gmra.mxu0 %v71
  %v449 = vpop.f32.mrf.mxu0
  %v450 = vadd.f32 0.0, %v449
  %v451 = vpop.f32.mrf.mxu0
  %452 = vmatprep.mubr.f32.mxu0 0.0
  %453 = vmatmul.mubr.f32.gmra.mxu0 %v72
  %v454 = vpop.f32.mrf.mxu0
  %v455 = vadd.f32 0.0, %v454
  %v456 = vpop.f32.mrf.mxu0
  %457 = vmatprep.mubr.f32.mxu0 0.0
  %458 = vmatmul.mubr.f32.gmra.mxu0 %v73
  %v459 = vpop.f32.mrf.mxu0
  %v460 = vadd.f32 0.0, %v459
  %v461 = vpop.f32.mrf.mxu0
  %462 = vmatprep.mubr.f32.mxu0 0.0
  %463 = vmatmul.mubr.f32.gmra.mxu0 %v74
  %v464 = vpop.f32.mrf.mxu0
  %v465 = vadd.f32 0.0, %v464
  %v466 = vpop.f32.mrf.mxu0
  %467 = vmatprep.mubr.f32.mxu0 0.0
  %468 = vmatmul.mubr.f32.gmra.mxu0 %v75
  %v469 = vpop.f32.mrf.mxu0
  %v470 = vadd.f32 0.0, %v469
  %v471 = vpop.f32.mrf.mxu0
  %472 = vmatprep.mubr.f32.mxu0 0.0
  %473 = vmatmul.mubr.f32.gmra.mxu0 %v76
  %v474 = vpop.f32.mrf.mxu0
  %v475 = vadd.f32 0.0, %v474
  %v476 = vpop.f32.mrf.mxu0
  %477 = vdwg.mxu0
  %478 = vst [vmem:[%s2] sm:$0xff] %v160
  %479 = vst [vmem:[%s2 + $0x8] sm:$0xff] %v165
  %480 = vst [vmem:[%s2 + $0x10] sm:$0xff] %v170
  %481 = vst [vmem:[%s2 + $0x18] sm:$0xff] %v175
  %482 = vst [vmem:[%s2 + $0x20] sm:$0xff] %v180
  %483 = vst [vmem:[%s2 + $0x28] sm:$0xff] %v185
  %484 = vst [vmem:[%s2 + $0x30] sm:$0xff] %v190
  %485 = vst [vmem:[%s2 + $0x38] sm:$0xff] %v195
  %486 = vst [vmem:[%s2 + $0x40] sm:$0xff] %v200
  %487 = vst [vmem:[%s2 + $0x48] sm:$0xff] %v205
  %488 = vst [vmem:[%s2 + $0x50] sm:$0xff] %v210
  %489 = vst [vmem:[%s2 + $0x58] sm:$0xff] %v215
  %490 = vst [vmem:[%s2 + $0x60] sm:$0xff] %v220
  %491 = vst [vmem:[%s2 + $0x68] sm:$0xff] %v225
  %492 = vst [vmem:[%s2 + $0x70] sm:$0xff] %v230
  %493 = vst [vmem:[%s2 + $0x78] sm:$0xff] %v235
  %494 = vst [vmem:[%s2 + $0x80] sm:$0xff] %v240
  %495 = vst [vmem:[%s2 + $0x88] sm:$0xff] %v245
  %496 = vst [vmem:[%s2 + $0x90] sm:$0xff] %v250
  %497 = vst [vmem:[%s2 + $0x98] sm:$0xff] %v255
  %498 = vst [vmem:[%s2 + $0xa0] sm:$0xff] %v260
  %499 = vst [vmem:[%s2 + $0xa8] sm:$0xff] %v265
  %500 = vst [vmem:[%s2 + $0xb0] sm:$0xff] %v270
  %501 = vst [vmem:[%s2 + $0xb8] sm:$0xff] %v275
  %502 = vst [vmem:[%s2 + $0xc0] sm:$0xff] %v280
  %503 = vst [vmem:[%s2 + $0xc8] sm:$0xff] %v285
  %504 = vst [vmem:[%s2 + $0xd0] sm:$0xff] %v290
  %505 = vst [vmem:[%s2 + $0xd8] sm:$0xff] %v295
  %506 = vst [vmem:[%s2 + $0xe0] sm:$0xff] %v300
  %507 = vst [vmem:[%s2 + $0xe8] sm:$0xff] %v305
  %508 = vst [vmem:[%s2 + $0xf0] sm:$0xff] %v310
  %509 = vst [vmem:[%s2 + $0xf8] sm:$0xff] %v315
  %510 = vst [vmem:[%s2 + $0x100] sm:$0xff] %v320
  %511 = vst [vmem:[%s2 + $0x108] sm:$0xff] %v325
  %512 = vst [vmem:[%s2 + $0x110] sm:$0xff] %v330
  %513 = vst [vmem:[%s2 + $0x118] sm:$0xff] %v335
  %514 = vst [vmem:[%s2 + $0x120] sm:$0xff] %v340
  %515 = vst [vmem:[%s2 + $0x128] sm:$0xff] %v345
  %516 = vst [vmem:[%s2 + $0x130] sm:$0xff] %v350
  %517 = vst [vmem:[%s2 + $0x138] sm:$0xff] %v355
  %518 = vst [vmem:[%s2 + $0x140] sm:$0xff] %v360
  %519 = vst [vmem:[%s2 + $0x148] sm:$0xff] %v365
  %520 = vst [vmem:[%s2 + $0x150] sm:$0xff] %v370
  %521 = vst [vmem:[%s2 + $0x158] sm:$0xff] %v375
  %522 = vst [vmem:[%s2 + $0x160] sm:$0xff] %v380
  %523 = vst [vmem:[%s2 + $0x168] sm:$0xff] %v385
  %524 = vst [vmem:[%s2 + $0x170] sm:$0xff] %v390
  %525 = vst [vmem:[%s2 + $0x178] sm:$0xff] %v395
  %526 = vst [vmem:[%s2 + $0x180] sm:$0xff] %v400
  %527 = vst [vmem:[%s2 + $0x188] sm:$0xff] %v405
  %528 = vst [vmem:[%s2 + $0x190] sm:$0xff] %v410
  %529 = vst [vmem:[%s2 + $0x198] sm:$0xff] %v415
  %530 = vst [vmem:[%s2 + $0x1a0] sm:$0xff] %v420
  %531 = vst [vmem:[%s2 + $0x1a8] sm:$0xff] %v425
  %532 = vst [vmem:[%s2 + $0x1b0] sm:$0xff] %v430
  %533 = vst [vmem:[%s2 + $0x1b8] sm:$0xff] %v435
  %534 = vst [vmem:[%s2 + $0x1c0] sm:$0xff] %v440
  %535 = vst [vmem:[%s2 + $0x1c8] sm:$0xff] %v445
  %536 = vst [vmem:[%s2 + $0x1d0] sm:$0xff] %v450
  %537 = vst [vmem:[%s2 + $0x1d8] sm:$0xff] %v455
  %538 = vst [vmem:[%s2 + $0x1e0] sm:$0xff] %v460
  %539 = vst [vmem:[%s2 + $0x1e8] sm:$0xff] %v465
  %540 = vst [vmem:[%s2 + $0x1f0] sm:$0xff] %v470
  %541 = vst [vmem:[%s2 + $0x1f8] sm:$0xff] %v475
  %v542 = vadd.f32 %v160, %v165
  %v543 = vadd.f32 %v542, %v170
  %v544 = vadd.f32 %v543, %v175
  %v545 = vadd.f32 %v544, %v180
  %v546 = vadd.f32 %v545, %v185
  %v547 = vadd.f32 %v546, %v190
  %v548 = vadd.f32 %v547, %v195
  %v549 = vadd.f32 %v548, %v200
  %v550 = vadd.f32 %v549, %v205
  %v551 = vadd.f32 %v550, %v210
  %v552 = vadd.f32 %v551, %v215
  %v553 = vadd.f32 %v552, %v220
  %v554 = vadd.f32 %v553, %v225
  %v555 = vadd.f32 %v554, %v230
  %v556 = vadd.f32 %v555, %v235
  %v557 = vadd.f32 %v556, %v240
  %v558 = vadd.f32 %v557, %v245
  %v559 = vadd.f32 %v558, %v250
  %v560 = vadd.f32 %v559, %v255
  %v561 = vadd.f32 %v560, %v260
  %v562 = vadd.f32 %v561, %v265
  %v563 = vadd.f32 %v562, %v270
  %v564 = vadd.f32 %v563, %v275
  %v565 = vadd.f32 %v564, %v280
  %v566 = vadd.f32 %v565, %v285
  %v567 = vadd.f32 %v566, %v290
  %v568 = vadd.f32 %v567, %v295
  %v569 = vadd.f32 %v568, %v300
  %v570 = vadd.f32 %v569, %v305
  %v571 = vadd.f32 %v570, %v310
  %v572 = vadd.f32 %v571, %v315
  %v573 = vadd.f32 %v572, %v320
  %v574 = vadd.f32 %v573, %v325
  %v575 = vadd.f32 %v574, %v330
  %v576 = vadd.f32 %v575, %v335
  %v577 = vadd.f32 %v576, %v340
  %v578 = vadd.f32 %v577, %v345
  %v579 = vadd.f32 %v578, %v350
  %v580 = vadd.f32 %v579, %v355
  %v581 = vadd.f32 %v580, %v360
  %v582 = vadd.f32 %v581, %v365
  %v583 = vadd.f32 %v582, %v370
  %v584 = vadd.f32 %v583, %v375
  %v585 = vadd.f32 %v584, %v380
  %v586 = vadd.f32 %v585, %v385
  %v587 = vadd.f32 %v586, %v390
  %v588 = vadd.f32 %v587, %v395
  %v589 = vadd.f32 %v588, %v400
  %v590 = vadd.f32 %v589, %v405
  %v591 = vadd.f32 %v590, %v410
  %v592 = vadd.f32 %v591, %v415
  %v593 = vadd.f32 %v592, %v420
  %v594 = vadd.f32 %v593, %v425
  %v595 = vadd.f32 %v594, %v430
  %v596 = vadd.f32 %v595, %v435
  %v597 = vadd.f32 %v596, %v440
  %v598 = vadd.f32 %v597, %v445
  %v599 = vadd.f32 %v598, %v450
  %v600 = vadd.f32 %v599, %v455
  %v601 = vadd.f32 %v600, %v460
  %v602 = vadd.f32 %v601, %v465
  %v603 = vadd.f32 %v602, %v470
  %v604 = vadd.f32 %v603, %v475
  %v605 = vrot.slane %v604, 4
  %v606 = vadd.f32 %v604, %v605
  %v607 = vrot.slane %v606, 2
  %v608 = vadd.f32 %v606, %v607
  %v609 = vrot.slane %v608, 1
  %v610 = vadd.f32 %v608, %v609
  %v611 = vmul.f32 %v160, %v160
  %v612 = vmul.f32 %v165, %v165
  %v613 = vmul.f32 %v170, %v170
  %v614 = vmul.f32 %v175, %v175
  %v615 = vmul.f32 %v180, %v180
  %v616 = vmul.f32 %v185, %v185
  %v617 = vmul.f32 %v190, %v190
  %v618 = vmul.f32 %v195, %v195
  %v619 = vmul.f32 %v200, %v200
  %v620 = vmul.f32 %v205, %v205
  %v621 = vmul.f32 %v210, %v210
  %v622 = vmul.f32 %v215, %v215
  %v623 = vmul.f32 %v220, %v220
  %v624 = vmul.f32 %v225, %v225
  %v625 = vmul.f32 %v230, %v230
  %v626 = vmul.f32 %v235, %v235
  %v627 = vmul.f32 %v240, %v240
  %v628 = vmul.f32 %v245, %v245
  %v629 = vmul.f32 %v250, %v250
  %v630 = vmul.f32 %v255, %v255
  %v631 = vmul.f32 %v260, %v260
  %v632 = vmul.f32 %v265, %v265
  %v633 = vmul.f32 %v270, %v270
  %v634 = vmul.f32 %v275, %v275
  %v635 = vmul.f32 %v280, %v280
  %v636 = vmul.f32 %v285, %v285
  %v637 = vmul.f32 %v290, %v290
  %v638 = vmul.f32 %v295, %v295
  %v639 = vmul.f32 %v300, %v300
  %v640 = vmul.f32 %v305, %v305
  %v641 = vmul.f32 %v310, %v310
  %v642 = vmul.f32 %v315, %v315
  %v643 = vmul.f32 %v320, %v320
  %v644 = vmul.f32 %v325, %v325
  %v645 = vmul.f32 %v330, %v330
  %v646 = vmul.f32 %v335, %v335
  %v647 = vmul.f32 %v340, %v340
  %v648 = vmul.f32 %v345, %v345
  %v649 = vmul.f32 %v350, %v350
  %v650 = vmul.f32 %v355, %v355
  %v651 = vmul.f32 %v360, %v360
  %v652 = vmul.f32 %v365, %v365
  %v653 = vmul.f32 %v370, %v370
  %v654 = vmul.f32 %v375, %v375
  %v655 = vmul.f32 %v380, %v380
  %v656 = vmul.f32 %v385, %v385
  %v657 = vmul.f32 %v390, %v390
  %v658 = vmul.f32 %v395, %v395
  %v659 = vmul.f32 %v400, %v400
  %v660 = vmul.f32 %v405, %v405
  %v661 = vmul.f32 %v410, %v410
  %v662 = vmul.f32 %v415, %v415
  %v663 = vmul.f32 %v420, %v420
  %v664 = vmul.f32 %v425, %v425
  %v665 = vmul.f32 %v430, %v430
  %v666 = vmul.f32 %v435, %v435
  %v667 = vmul.f32 %v440, %v440
  %v668 = vmul.f32 %v445, %v445
  %v669 = vmul.f32 %v450, %v450
  %v670 = vmul.f32 %v455, %v455
  %v671 = vmul.f32 %v460, %v460
  %v672 = vmul.f32 %v465, %v465
  %v673 = vmul.f32 %v470, %v470
  %v674 = vmul.f32 %v475, %v475
  %v675 = vadd.f32 %v611, %v612
  %v676 = vadd.f32 %v675, %v613
  %v677 = vadd.f32 %v676, %v614
  %v678 = vadd.f32 %v677, %v615
  %v679 = vadd.f32 %v678, %v616
  %v680 = vadd.f32 %v679, %v617
  %v681 = vadd.f32 %v680, %v618
  %v682 = vadd.f32 %v681, %v619
  %v683 = vadd.f32 %v682, %v620
  %v684 = vadd.f32 %v683, %v621
  %v685 = vadd.f32 %v684, %v622
  %v686 = vadd.f32 %v685, %v623
  %v687 = vadd.f32 %v686, %v624
  %v688 = vadd.f32 %v687, %v625
  %v689 = vadd.f32 %v688, %v626
  %v690 = vadd.f32 %v689, %v627
  %v691 = vadd.f32 %v690, %v628
  %v692 = vadd.f32 %v691, %v629
  %v693 = vadd.f32 %v692, %v630
  %v694 = vadd.f32 %v693, %v631
  %v695 = vadd.f32 %v694, %v632
  %v696 = vadd.f32 %v695, %v633
  %v697 = vadd.f32 %v696, %v634
  %v698 = vadd.f32 %v697, %v635
  %v699 = vadd.f32 %v698, %v636
  %v700 = vadd.f32 %v699, %v637
  %v701 = vadd.f32 %v700, %v638
  %v702 = vadd.f32 %v701, %v639
  %v703 = vadd.f32 %v702, %v640
  %v704 = vadd.f32 %v703, %v641
  %v705 = vadd.f32 %v704, %v642
  %v706 = vadd.f32 %v705, %v643
  %v707 = vadd.f32 %v706, %v644
  %v708 = vadd.f32 %v707, %v645
  %v709 = vadd.f32 %v708, %v646
  %v710 = vadd.f32 %v709, %v647
  %v711 = vadd.f32 %v710, %v648
  %v712 = vadd.f32 %v711, %v649
  %v713 = vadd.f32 %v712, %v650
  %v714 = vadd.f32 %v713, %v651
  %v715 = vadd.f32 %v714, %v652
  %v716 = vadd.f32 %v715, %v653
  %v717 = vadd.f32 %v716, %v654
  %v718 = vadd.f32 %v717, %v655
  %v719 = vadd.f32 %v718, %v656
  %v720 = vadd.f32 %v719, %v657
  %v721 = vadd.f32 %v720, %v658
  %v722 = vadd.f32 %v721, %v659
  %v723 = vadd.f32 %v722, %v660
  %v724 = vadd.f32 %v723, %v661
  %v725 = vadd.f32 %v724, %v662
  %v726 = vadd.f32 %v725, %v663
  %v727 = vadd.f32 %v726, %v664
  %v728 = vadd.f32 %v727, %v665
  %v729 = vadd.f32 %v728, %v666
  %v730 = vadd.f32 %v729, %v667
  %v731 = vadd.f32 %v730, %v668
  %v732 = vadd.f32 %v731, %v669
  %v733 = vadd.f32 %v732, %v670
  %v734 = vadd.f32 %v733, %v671
  %v735 = vadd.f32 %v734, %v672
  %v736 = vadd.f32 %v735, %v673
  %v737 = vadd.f32 %v736, %v674
  %v738 = vrot.slane %v737, 4
  %v739 = vadd.f32 %v737, %v738
  %v740 = vrot.slane %v739, 2
  %v741 = vadd.f32 %v739, %v740
  %v742 = vrot.slane %v741, 1
  %v743 = vadd.f32 %v741, %v742
  %vm744 = vcmask 1040384
  %v745 = vsel %vm744, %v610, %v743
  %746 = vst [vmem:[%s3] sm:$0x3] %v745
  // Predicated region
  $region10: #{bottleneck_forward_nhwc.4} parent=0 // pred_check
    _
  $region11: #{bottleneck_forward_nhwc.4} parent=0 // pred_check_branch
    %748 = sbr.rel (0) target = $region13
  $region12: #{bottleneck_forward_nhwc.4} parent=0 // pred_region
    _
  $region13: #{bottleneck_forward_nhwc.4} parent=0 // pred_fallthru
    _
  // Predicated region
  $region14: #{bottleneck_forward_nhwc.4} parent=0 // pred_check
    _
  $region15: #{bottleneck_forward_nhwc.4} parent=0 // pred_check_branch
    %750 = sbr.rel (0) target = $region17
  $region16: #{bottleneck_forward_nhwc.4} parent=0 // pred_region
    _
  $region17: #{bottleneck_forward_nhwc.4} parent=0 // pred_fallthru
    _
  // Predicated region
  $region18: #{bottleneck_forward_nhwc.4} parent=0 // pred_check
    _
  $region19: #{bottleneck_forward_nhwc.4} parent=0 // pred_check_branch
    %752 = sbr.rel (0) target = $region21
  $region20: #{bottleneck_forward_nhwc.4} parent=0 // pred_region
    _
  $region21: #{bottleneck_forward_nhwc.4} parent=0 // pred_fallthru
    _
  // Predicated region
  $region22: #{bottleneck_forward_nhwc.4} parent=0 // pred_check
    _
  $region23: #{bottleneck_forward_nhwc.4} parent=0 // pred_check_branch
    %754 = sbr.rel (0) target = $region25
  $region24: #{bottleneck_forward_nhwc.4} parent=0 // pred_region
    _
  $region25: #{bottleneck_forward_nhwc.4} parent=0 // pred_fallthru
    _

// kernel: bottleneck_forward_nhwc.7
$region0: #{bottleneck_forward_nhwc.7}
  #allocation0 [shape = 'u32[]', space=smem, size = 0x4, offset = 0x4, fixed_abs, tag = 'smem constant byte address 0x4 - core index']
  #allocation1 [shape = 'u32[144,128]{1,0:T(1,128)}', space=vmem, size = 0x12000, scoped, tag = 'internal scratch']
  %s0 = inlined_call_operand.vmem [shape: f32[512,128], index: 0, kind: input, shape index: {}]
  %s1 = inlined_call_operand.vmem [shape: f32[512,128], index: 1, kind: input, shape index: {}]
  %s2 = inlined_call_operand.vmem [shape: f32[1,128], index: 2, kind: input, shape index: {}]
  %s3 = inlined_call_operand.vmem [shape: f32[1,128], index: 3, kind: input, shape index: {}]
  %s4 = inlined_call_operand.hbm [shape: f32[512,128], index: 4, kind: output, shape index: {}]
  %s5 = sld [smem:[#allocation0]]
  $region26: #{bottleneck_forward_nhwc.7} parent=0
    _
  %s7 = ssub.s32 1, %s5
  %s8 = scalar_select 0, %s7, %s5
  $region1: #{bottleneck_forward_nhwc.7} parent=0
    #allocation2 [shape = 'u8[262144]{0}', space=vmem, size = 0x40000, scoped, tag = 'output window, operand 0, single buffered']
    #allocation3 [shape = 's32[1]{0}', space=sflag, size = 0x4, scoped, tag = 'scoped memory for bottleneck_forward_nhwc.7']
    %9 = vsyncpa [#allocation3], 0
    // Predicated region
    $region2: #{bottleneck_forward_nhwc.7} parent=1 // pred_check
      _
    $region3: #{bottleneck_forward_nhwc.7} parent=1 // pred_check_branch
      %11 = sbr.rel (0) target = $region5
    $region4: #{bottleneck_forward_nhwc.7} parent=1 // pred_region
      _
    $region5: #{bottleneck_forward_nhwc.7} parent=1 // pred_fallthru
      _
    // Predicated region
    $region6: #{bottleneck_forward_nhwc.7} parent=1 // pred_check
      _
    $region7: #{bottleneck_forward_nhwc.7} parent=1 // pred_check_branch
      %13 = sbr.rel (0) target = $region9
    $region8: #{bottleneck_forward_nhwc.7} parent=1 // pred_region
      _
    $region9: #{bottleneck_forward_nhwc.7} parent=1 // pred_fallthru
      _
    // Predicated region
    $region10: #{bottleneck_forward_nhwc.7} parent=1 // pred_check
      _
    $region11: #{bottleneck_forward_nhwc.7} parent=1 // pred_check_branch
      %15 = sbr.rel (0) target = $region13
    $region12: #{bottleneck_forward_nhwc.7} parent=1 // pred_region
      _
    $region13: #{bottleneck_forward_nhwc.7} parent=1 // pred_fallthru
      _
    // Predicated region
    $region14: #{bottleneck_forward_nhwc.7} parent=1 // pred_check
      _
    $region15: #{bottleneck_forward_nhwc.7} parent=1 // pred_check_branch
      %17 = sbr.rel (0) target = $region17
    $region16: #{bottleneck_forward_nhwc.7} parent=1 // pred_region
      _
    $region17: #{bottleneck_forward_nhwc.7} parent=1 // pred_fallthru
      _
    %v18 = vld [vmem:[%s0] sm:$0xff]
    %v19 = vld [vmem:[%s0 + $0x8] sm:$0xff]
    %v20 = vld [vmem:[%s0 + $0x10] sm:$0xff]
    %v21 = vld [vmem:[%s0 + $0x18] sm:$0xff]
    %v22 = vld [vmem:[%s0 + $0x20] sm:$0xff]
    %v23 = vld [vmem:[%s0 + $0x28] sm:$0xff]
    %v24 = vld [vmem:[%s0 + $0x30] sm:$0xff]
    %v25 = vld [vmem:[%s0 + $0x38] sm:$0xff]
    %v26 = vld [vmem:[%s0 + $0x40] sm:$0xff]
    %v27 = vld [vmem:[%s0 + $0x48] sm:$0xff]
    %v28 = vld [vmem:[%s0 + $0x50] sm:$0xff]
    %v29 = vld [vmem:[%s0 + $0x58] sm:$0xff]
    %v30 = vld [vmem:[%s0 + $0x60] sm:$0xff]
    %v31 = vld [vmem:[%s0 + $0x68] sm:$0xff]
    %v32 = vld [vmem:[%s0 + $0x70] sm:$0xff]
    %v33 = vld [vmem:[%s0 + $0x78] sm:$0xff]
    %v34 = vld [vmem:[%s0 + $0x80] sm:$0xff]
    %v35 = vld [vmem:[%s0 + $0x88] sm:$0xff]
    %v36 = vld [vmem:[%s0 + $0x90] sm:$0xff]
    %v37 = vld [vmem:[%s0 + $0x98] sm:$0xff]
    %v38 = vld [vmem:[%s0 + $0xa0] sm:$0xff]
    %v39 = vld [vmem:[%s0 + $0xa8] sm:$0xff]
    %v40 = vld [vmem:[%s0 + $0xb0] sm:$0xff]
    %v41 = vld [vmem:[%s0 + $0xb8] sm:$0xff]
    %v42 = vld [vmem:[%s0 + $0xc0] sm:$0xff]
    %v43 = vld [vmem:[%s0 + $0xc8] sm:$0xff]
    %v44 = vld [vmem:[%s0 + $0xd0] sm:$0xff]
    %v45 = vld [vmem:[%s0 + $0xd8] sm:$0xff]
    %v46 = vld [vmem:[%s0 + $0xe0] sm:$0xff]
    %v47 = vld [vmem:[%s0 + $0xe8] sm:$0xff]
    %v48 = vld [vmem:[%s0 + $0xf0] sm:$0xff]
    %v49 = vld [vmem:[%s0 + $0xf8] sm:$0xff]
    %v50 = vld [vmem:[%s0 + $0x100] sm:$0xff]
    %v51 = vld [vmem:[%s0 + $0x108] sm:$0xff]
    %v52 = vld [vmem:[%s0 + $0x110] sm:$0xff]
    %v53 = vld [vmem:[%s0 + $0x118] sm:$0xff]
    %v54 = vld [vmem:[%s0 + $0x120] sm:$0xff]
    %v55 = vld [vmem:[%s0 + $0x128] sm:$0xff]
    %v56 = vld [vmem:[%s0 + $0x130] sm:$0xff]
    %v57 = vld [vmem:[%s0 + $0x138] sm:$0xff]
    %v58 = vld [vmem:[%s0 + $0x140] sm:$0xff]
    %v59 = vld [vmem:[%s0 + $0x148] sm:$0xff]
    %v60 = vld [vmem:[%s0 + $0x150] sm:$0xff]
    %v61 = vld [vmem:[%s0 + $0x158] sm:$0xff]
    %v62 = vld [vmem:[%s0 + $0x160] sm:$0xff]
    %v63 = vld [vmem:[%s0 + $0x168] sm:$0xff]
    %v64 = vld [vmem:[%s0 + $0x170] sm:$0xff]
    %v65 = vld [vmem:[%s0 + $0x178] sm:$0xff]
    %v66 = vld [vmem:[%s0 + $0x180] sm:$0xff]
    %v67 = vld [vmem:[%s0 + $0x188] sm:$0xff]
    %v68 = vld [vmem:[%s0 + $0x190] sm:$0xff]
    %v69 = vld [vmem:[%s0 + $0x198] sm:$0xff]
    %v70 = vld [vmem:[%s0 + $0x1a0] sm:$0xff]
    %v71 = vld [vmem:[%s0 + $0x1a8] sm:$0xff]
    %v72 = vld [vmem:[%s0 + $0x1b0] sm:$0xff]
    %v73 = vld [vmem:[%s0 + $0x1b8] sm:$0xff]
    %v74 = vld [vmem:[%s0 + $0x1c0] sm:$0xff]
    %v75 = vld [vmem:[%s0 + $0x1c8] sm:$0xff]
    %v76 = vld [vmem:[%s0 + $0x1d0] sm:$0xff]
    %v77 = vld [vmem:[%s0 + $0x1d8] sm:$0xff]
    %v78 = vld [vmem:[%s0 + $0x1e0] sm:$0xff]
    %v79 = vld [vmem:[%s0 + $0x1e8] sm:$0xff]
    %v80 = vld [vmem:[%s0 + $0x1f0] sm:$0xff]
    %v81 = vld [vmem:[%s0 + $0x1f8] sm:$0xff]
    %v82 = vld [vmem:[%s2] sm:$0x1]
    %v84 = vlaneseq
    %v85 = vshrl.u32 %v84, 7
    %v86 = vsub.s32 0, %v85
    %v87 = vrot.slane %v82, %v86
    %v89 = vmul.f32 %v18, %v87
    %v90 = vmul.f32 %v19, %v87
    %v91 = vmul.f32 %v20, %v87
    %v92 = vmul.f32 %v21, %v87
    %v93 = vmul.f32 %v22, %v87
    %v94 = vmul.f32 %v23, %v87
    %v95 = vmul.f32 %v24, %v87
    %v96 = vmul.f32 %v25, %v87
    %v97 = vmul.f32 %v26, %v87
    %v98 = vmul.f32 %v27, %v87
    %v99 = vmul.f32 %v28, %v87
    %v100 = vmul.f32 %v29, %v87
    %v101 = vmul.f32 %v30, %v87
    %v102 = vmul.f32 %v31, %v87
    %v103 = vmul.f32 %v32, %v87
    %v104 = vmul.f32 %v33, %v87
    %v105 = vmul.f32 %v34, %v87
    %v106 = vmul.f32 %v35, %v87
    %v107 = vmul.f32 %v36, %v87
    %v108 = vmul.f32 %v37, %v87
    %v109 = vmul.f32 %v38, %v87
    %v110 = vmul.f32 %v39, %v87
    %v111 = vmul.f32 %v40, %v87
    %v112 = vmul.f32 %v41, %v87
    %v113 = vmul.f32 %v42, %v87
    %v114 = vmul.f32 %v43, %v87
    %v115 = vmul.f32 %v44, %v87
    %v116 = vmul.f32 %v45, %v87
    %v117 = vmul.f32 %v46, %v87
    %v118 = vmul.f32 %v47, %v87
    %v119 = vmul.f32 %v48, %v87
    %v120 = vmul.f32 %v49, %v87
    %v121 = vmul.f32 %v50, %v87
    %v122 = vmul.f32 %v51, %v87
    %v123 = vmul.f32 %v52, %v87
    %v124 = vmul.f32 %v53, %v87
    %v125 = vmul.f32 %v54, %v87
    %v126 = vmul.f32 %v55, %v87
    %v127 = vmul.f32 %v56, %v87
    %v128 = vmul.f32 %v57, %v87
    %v129 = vmul.f32 %v58, %v87
    %v130 = vmul.f32 %v59, %v87
    %v131 = vmul.f32 %v60, %v87
    %v132 = vmul.f32 %v61, %v87
    %v133 = vmul.f32 %v62, %v87
    %v134 = vmul.f32 %v63, %v87
    %v135 = vmul.f32 %v64, %v87
    %v136 = vmul.f32 %v65, %v87
    %v137 = vmul.f32 %v66, %v87
    %v138 = vmul.f32 %v67, %v87
    %v139 = vmul.f32 %v68, %v87
    %v140 = vmul.f32 %v69, %v87
    %v141 = vmul.f32 %v70, %v87
    %v142 = vmul.f32 %v71, %v87
    %v143 = vmul.f32 %v72, %v87
    %v144 = vmul.f32 %v73, %v87
    %v145 = vmul.f32 %v74, %v87
    %v146 = vmul.f32 %v75, %v87
    %v147 = vmul.f32 %v76, %v87
    %v148 = vmul.f32 %v77, %v87
    %v149 = vmul.f32 %v78, %v87
    %v150 = vmul.f32 %v79, %v87
    %v151 = vmul.f32 %v80, %v87
    %v152 = vmul.f32 %v81, %v87
    %v153 = vld [vmem:[%s3] sm:$0x1]
    %v155 = vlaneseq
    %v156 = vshrl.u32 %v155, 7
    %v157 = vsub.s32 0, %v156
    %v158 = vrot.slane %v153, %v157
    %v160 = vadd.f32 %v89, %v158
    %v161 = vadd.f32 %v90, %v158
    %v162 = vadd.f32 %v91, %v158
    %v163 = vadd.f32 %v92, %v158
    %v164 = vadd.f32 %v93, %v158
    %v165 = vadd.f32 %v94, %v158
    %v166 = vadd.f32 %v95, %v158
    %v167 = vadd.f32 %v96, %v158
    %v168 = vadd.f32 %v97, %v158
    %v169 = vadd.f32 %v98, %v158
    %v170 = vadd.f32 %v99, %v158
    %v171 = vadd.f32 %v100, %v158
    %v172 = vadd.f32 %v101, %v158
    %v173 = vadd.f32 %v102, %v158
    %v174 = vadd.f32 %v103, %v158
    %v175 = vadd.f32 %v104, %v158
    %v176 = vadd.f32 %v105, %v158
    %v177 = vadd.f32 %v106, %v158
    %v178 = vadd.f32 %v107, %v158
    %v179 = vadd.f32 %v108, %v158
    %v180 = vadd.f32 %v109, %v158
    %v181 = vadd.f32 %v110, %v158
    %v182 = vadd.f32 %v111, %v158
    %v183 = vadd.f32 %v112, %v158
    %v184 = vadd.f32 %v113, %v158
    %v185 = vadd.f32 %v114, %v158
    %v186 = vadd.f32 %v115, %v158
    %v187 = vadd.f32 %v116, %v158
    %v188 = vadd.f32 %v117, %v158
    %v189 = vadd.f32 %v118, %v158
    %v190 = vadd.f32 %v119, %v158
    %v191 = vadd.f32 %v120, %v158
    %v192 = vadd.f32 %v121, %v158
    %v193 = vadd.f32 %v122, %v158
    %v194 = vadd.f32 %v123, %v158
    %v195 = vadd.f32 %v124, %v158
    %v196 = vadd.f32 %v125, %v158
    %v197 = vadd.f32 %v126, %v158
    %v198 = vadd.f32 %v127, %v158
    %v199 = vadd.f32 %v128, %v158
    %v200 = vadd.f32 %v129, %v158
    %v201 = vadd.f32 %v130, %v158
    %v202 = vadd.f32 %v131, %v158
    %v203 = vadd.f32 %v132, %v158
    %v204 = vadd.f32 %v133, %v158
    %v205 = vadd.f32 %v134, %v158
    %v206 = vadd.f32 %v135, %v158
    %v207 = vadd.f32 %v136, %v158
    %v208 = vadd.f32 %v137, %v158
    %v209 = vadd.f32 %v138, %v158
    %v210 = vadd.f32 %v139, %v158
    %v211 = vadd.f32 %v140, %v158
    %v212 = vadd.f32 %v141, %v158
    %v213 = vadd.f32 %v142, %v158
    %v214 = vadd.f32 %v143, %v158
    %v215 = vadd.f32 %v144, %v158
    %v216 = vadd.f32 %v145, %v158
    %v217 = vadd.f32 %v146, %v158
    %v218 = vadd.f32 %v147, %v158
    %v219 = vadd.f32 %v148, %v158
    %v220 = vadd.f32 %v149, %v158
    %v221 = vadd.f32 %v150, %v158
    %v222 = vadd.f32 %v151, %v158
    %v223 = vadd.f32 %v152, %v158
    %v224 = vld [vmem:[%s1] sm:$0xff]
    %v225 = vld [vmem:[%s1 + $0x8] sm:$0xff]
    %v226 = vld [vmem:[%s1 + $0x10] sm:$0xff]
    %v227 = vld [vmem:[%s1 + $0x18] sm:$0xff]
    %v228 = vld [vmem:[%s1 + $0x20] sm:$0xff]
    %v229 = vld [vmem:[%s1 + $0x28] sm:$0xff]
    %v230 = vld [vmem:[%s1 + $0x30] sm:$0xff]
    %v231 = vld [vmem:[%s1 + $0x38] sm:$0xff]
    %v232 = vld [vmem:[%s1 + $0x40] sm:$0xff]
    %v233 = vld [vmem:[%s1 + $0x48] sm:$0xff]
    %v234 = vld [vmem:[%s1 + $0x50] sm:$0xff]
    %v235 = vld [vmem:[%s1 + $0x58] sm:$0xff]
    %v236 = vld [vmem:[%s1 + $0x60] sm:$0xff]
    %v237 = vld [vmem:[%s1 + $0x68] sm:$0xff]
    %v238 = vld [vmem:[%s1 + $0x70] sm:$0xff]
    %v239 = vld [vmem:[%s1 + $0x78] sm:$0xff]
    %v240 = vld [vmem:[%s1 + $0x80] sm:$0xff]
    %v241 = vld [vmem:[%s1 + $0x88] sm:$0xff]
    %v242 = vld [vmem:[%s1 + $0x90] sm:$0xff]
    %v243 = vld [vmem:[%s1 + $0x98] sm:$0xff]
    %v244 = vld [vmem:[%s1 + $0xa0] sm:$0xff]
    %v245 = vld [vmem:[%s1 + $0xa8] sm:$0xff]
    %v246 = vld [vmem:[%s1 + $0xb0] sm:$0xff]
    %v247 = vld [vmem:[%s1 + $0xb8] sm:$0xff]
    %v248 = vld [vmem:[%s1 + $0xc0] sm:$0xff]
    %v249 = vld [vmem:[%s1 + $0xc8] sm:$0xff]
    %v250 = vld [vmem:[%s1 + $0xd0] sm:$0xff]
    %v251 = vld [vmem:[%s1 + $0xd8] sm:$0xff]
    %v252 = vld [vmem:[%s1 + $0xe0] sm:$0xff]
    %v253 = vld [vmem:[%s1 + $0xe8] sm:$0xff]
    %v254 = vld [vmem:[%s1 + $0xf0] sm:$0xff]
    %v255 = vld [vmem:[%s1 + $0xf8] sm:$0xff]
    %v256 = vld [vmem:[%s1 + $0x100] sm:$0xff]
    %v257 = vld [vmem:[%s1 + $0x108] sm:$0xff]
    %v258 = vld [vmem:[%s1 + $0x110] sm:$0xff]
    %v259 = vld [vmem:[%s1 + $0x118] sm:$0xff]
    %v260 = vld [vmem:[%s1 + $0x120] sm:$0xff]
    %v261 = vld [vmem:[%s1 + $0x128] sm:$0xff]
    %v262 = vld [vmem:[%s1 + $0x130] sm:$0xff]
    %v263 = vld [vmem:[%s1 + $0x138] sm:$0xff]
    %v264 = vld [vmem:[%s1 + $0x140] sm:$0xff]
    %v265 = vld [vmem:[%s1 + $0x148] sm:$0xff]
    %v266 = vld [vmem:[%s1 + $0x150] sm:$0xff]
    %v267 = vld [vmem:[%s1 + $0x158] sm:$0xff]
    %v268 = vld [vmem:[%s1 + $0x160] sm:$0xff]
    %v269 = vld [vmem:[%s1 + $0x168] sm:$0xff]
    %v270 = vld [vmem:[%s1 + $0x170] sm:$0xff]
    %v271 = vld [vmem:[%s1 + $0x178] sm:$0xff]
    %v272 = vld [vmem:[%s1 + $0x180] sm:$0xff]
    %v273 = vld [vmem:[%s1 + $0x188] sm:$0xff]
    %v274 = vld [vmem:[%s1 + $0x190] sm:$0xff]
    %v275 = vld [vmem:[%s1 + $0x198] sm:$0xff]
    %v276 = vld [vmem:[%s1 + $0x1a0] sm:$0xff]
    %v277 = vld [vmem:[%s1 + $0x1a8] sm:$0xff]
    %v278 = vld [vmem:[%s1 + $0x1b0] sm:$0xff]
    %v279 = vld [vmem:[%s1 + $0x1b8] sm:$0xff]
    %v280 = vld [vmem:[%s1 + $0x1c0] sm:$0xff]
    %v281 = vld [vmem:[%s1 + $0x1c8] sm:$0xff]
    %v282 = vld [vmem:[%s1 + $0x1d0] sm:$0xff]
    %v283 = vld [vmem:[%s1 + $0x1d8] sm:$0xff]
    %v284 = vld [vmem:[%s1 + $0x1e0] sm:$0xff]
    %v285 = vld [vmem:[%s1 + $0x1e8] sm:$0xff]
    %v286 = vld [vmem:[%s1 + $0x1f0] sm:$0xff]
    %v287 = vld [vmem:[%s1 + $0x1f8] sm:$0xff]
    %v288 = vadd.f32 %v160, %v224
    %v289 = vadd.f32 %v161, %v225
    %v290 = vadd.f32 %v162, %v226
    %v291 = vadd.f32 %v163, %v227
    %v292 = vadd.f32 %v164, %v228
    %v293 = vadd.f32 %v165, %v229
    %v294 = vadd.f32 %v166, %v230
    %v295 = vadd.f32 %v167, %v231
    %v296 = vadd.f32 %v168, %v232
    %v297 = vadd.f32 %v169, %v233
    %v298 = vadd.f32 %v170, %v234
    %v299 = vadd.f32 %v171, %v235
    %v300 = vadd.f32 %v172, %v236
    %v301 = vadd.f32 %v173, %v237
    %v302 = vadd.f32 %v174, %v238
    %v303 = vadd.f32 %v175, %v239
    %v304 = vadd.f32 %v176, %v240
    %v305 = vadd.f32 %v177, %v241
    %v306 = vadd.f32 %v178, %v242
    %v307 = vadd.f32 %v179, %v243
    %v308 = vadd.f32 %v180, %v244
    %v309 = vadd.f32 %v181, %v245
    %v310 = vadd.f32 %v182, %v246
    %v311 = vadd.f32 %v183, %v247
    %v312 = vadd.f32 %v184, %v248
    %v313 = vadd.f32 %v185, %v249
    %v314 = vadd.f32 %v186, %v250
    %v315 = vadd.f32 %v187, %v251
    %v316 = vadd.f32 %v188, %v252
    %v317 = vadd.f32 %v189, %v253
    %v318 = vadd.f32 %v190, %v254
    %v319 = vadd.f32 %v191, %v255
    %v320 = vadd.f32 %v192, %v256
    %v321 = vadd.f32 %v193, %v257
    %v322 = vadd.f32 %v194, %v258
    %v323 = vadd.f32 %v195, %v259
    %v324 = vadd.f32 %v196, %v260
    %v325 = vadd.f32 %v197, %v261
    %v326 = vadd.f32 %v198, %v262
    %v327 = vadd.f32 %v199, %v263
    %v328 = vadd.f32 %v200, %v264
    %v329 = vadd.f32 %v201, %v265
    %v330 = vadd.f32 %v202, %v266
    %v331 = vadd.f32 %v203, %v267
    %v332 = vadd.f32 %v204, %v268
    %v333 = vadd.f32 %v205, %v269
    %v334 = vadd.f32 %v206, %v270
    %v335 = vadd.f32 %v207, %v271
    %v336 = vadd.f32 %v208, %v272
    %v337 = vadd.f32 %v209, %v273
    %v338 = vadd.f32 %v210, %v274
    %v339 = vadd.f32 %v211, %v275
    %v340 = vadd.f32 %v212, %v276
    %v341 = vadd.f32 %v213, %v277
    %v342 = vadd.f32 %v214, %v278
    %v343 = vadd.f32 %v215, %v279
    %v344 = vadd.f32 %v216, %v280
    %v345 = vadd.f32 %v217, %v281
    %v346 = vadd.f32 %v218, %v282
    %v347 = vadd.f32 %v219, %v283
    %v348 = vadd.f32 %v220, %v284
    %v349 = vadd.f32 %v221, %v285
    %v350 = vadd.f32 %v222, %v286
    %v351 = vadd.f32 %v223, %v287
    %v352 = vmax.f32 %v288, 0.0
    %v353 = vmax.f32 %v289, 0.0
    %v354 = vmax.f32 %v290, 0.0
    %v355 = vmax.f32 %v291, 0.0
    %v356 = vmax.f32 %v292, 0.0
    %v357 = vmax.f32 %v293, 0.0
    %v358 = vmax.f32 %v294, 0.0
    %v359 = vmax.f32 %v295, 0.0
    %v360 = vmax.f32 %v296, 0.0
    %v361 = vmax.f32 %v297, 0.0
    %v362 = vmax.f32 %v298, 0.0
    %v363 = vmax.f32 %v299, 0.0
    %v364 = vmax.f32 %v300, 0.0
    %v365 = vmax.f32 %v301, 0.0
    %v366 = vmax.f32 %v302, 0.0
    %v367 = vmax.f32 %v303, 0.0
    %v368 = vmax.f32 %v304, 0.0
    %v369 = vmax.f32 %v305, 0.0
    %v370 = vmax.f32 %v306, 0.0
    %v371 = vmax.f32 %v307, 0.0
    %v372 = vmax.f32 %v308, 0.0
    %v373 = vmax.f32 %v309, 0.0
    %v374 = vmax.f32 %v310, 0.0
    %v375 = vmax.f32 %v311, 0.0
    %v376 = vmax.f32 %v312, 0.0
    %v377 = vmax.f32 %v313, 0.0
    %v378 = vmax.f32 %v314, 0.0
    %v379 = vmax.f32 %v315, 0.0
    %v380 = vmax.f32 %v316, 0.0
    %v381 = vmax.f32 %v317, 0.0
    %v382 = vmax.f32 %v318, 0.0
    %v383 = vmax.f32 %v319, 0.0
    %v384 = vmax.f32 %v320, 0.0
    %v385 = vmax.f32 %v321, 0.0
    %v386 = vmax.f32 %v322, 0.0
    %v387 = vmax.f32 %v323, 0.0
    %v388 = vmax.f32 %v324, 0.0
    %v389 = vmax.f32 %v325, 0.0
    %v390 = vmax.f32 %v326, 0.0
    %v391 = vmax.f32 %v327, 0.0
    %v392 = vmax.f32 %v328, 0.0
    %v393 = vmax.f32 %v329, 0.0
    %v394 = vmax.f32 %v330, 0.0
    %v395 = vmax.f32 %v331, 0.0
    %v396 = vmax.f32 %v332, 0.0
    %v397 = vmax.f32 %v333, 0.0
    %v398 = vmax.f32 %v334, 0.0
    %v399 = vmax.f32 %v335, 0.0
    %v400 = vmax.f32 %v336, 0.0
    %v401 = vmax.f32 %v337, 0.0
    %v402 = vmax.f32 %v338, 0.0
    %v403 = vmax.f32 %v339, 0.0
    %v404 = vmax.f32 %v340, 0.0
    %v405 = vmax.f32 %v341, 0.0
    %v406 = vmax.f32 %v342, 0.0
    %v407 = vmax.f32 %v343, 0.0
    %v408 = vmax.f32 %v344, 0.0
    %v409 = vmax.f32 %v345, 0.0
    %v410 = vmax.f32 %v346, 0.0
    %v411 = vmax.f32 %v347, 0.0
    %v412 = vmax.f32 %v348, 0.0
    %v413 = vmax.f32 %v349, 0.0
    %v414 = vmax.f32 %v350, 0.0
    %v415 = vmax.f32 %v351, 0.0
    %416 = vst [vmem:[#allocation2] sm:$0xff] %v352
    %417 = vst [vmem:[#allocation2 + $0x8] sm:$0xff] %v353
    %418 = vst [vmem:[#allocation2 + $0x10] sm:$0xff] %v354
    %419 = vst [vmem:[#allocation2 + $0x18] sm:$0xff] %v355
    %420 = vst [vmem:[#allocation2 + $0x20] sm:$0xff] %v356
    %421 = vst [vmem:[#allocation2 + $0x28] sm:$0xff] %v357
    %422 = vst [vmem:[#allocation2 + $0x30] sm:$0xff] %v358
    %423 = vst [vmem:[#allocation2 + $0x38] sm:$0xff] %v359
    %424 = vst [vmem:[#allocation2 + $0x40] sm:$0xff] %v360
    %425 = vst [vmem:[#allocation2 + $0x48] sm:$0xff] %v361
    %426 = vst [vmem:[#allocation2 + $0x50] sm:$0xff] %v362
    %427 = vst [vmem:[#allocation2 + $0x58] sm:$0xff] %v363
    %428 = vst [vmem:[#allocation2 + $0x60] sm:$0xff] %v364
    %429 = vst [vmem:[#allocation2 + $0x68] sm:$0xff] %v365
    %430 = vst [vmem:[#allocation2 + $0x70] sm:$0xff] %v366
    %431 = vst [vmem:[#allocation2 + $0x78] sm:$0xff] %v367
    %432 = vst [vmem:[#allocation2 + $0x80] sm:$0xff] %v368
    %433 = vst [vmem:[#allocation2 + $0x88] sm:$0xff] %v369
    %434 = vst [vmem:[#allocation2 + $0x90] sm:$0xff] %v370
    %435 = vst [vmem:[#allocation2 + $0x98] sm:$0xff] %v371
    %436 = vst [vmem:[#allocation2 + $0xa0] sm:$0xff] %v372
    %437 = vst [vmem:[#allocation2 + $0xa8] sm:$0xff] %v373
    %438 = vst [vmem:[#allocation2 + $0xb0] sm:$0xff] %v374
    %439 = vst [vmem:[#allocation2 + $0xb8] sm:$0xff] %v375
    %440 = vst [vmem:[#allocation2 + $0xc0] sm:$0xff] %v376
    %441 = vst [vmem:[#allocation2 + $0xc8] sm:$0xff] %v377
    %442 = vst [vmem:[#allocation2 + $0xd0] sm:$0xff] %v378
    %443 = vst [vmem:[#allocation2 + $0xd8] sm:$0xff] %v379
    %444 = vst [vmem:[#allocation2 + $0xe0] sm:$0xff] %v380
    %445 = vst [vmem:[#allocation2 + $0xe8] sm:$0xff] %v381
    %446 = vst [vmem:[#allocation2 + $0xf0] sm:$0xff] %v382
    %447 = vst [vmem:[#allocation2 + $0xf8] sm:$0xff] %v383
    %448 = vst [vmem:[#allocation2 + $0x100] sm:$0xff] %v384
    %449 = vst [vmem:[#allocation2 + $0x108] sm:$0xff] %v385
    %450 = vst [vmem:[#allocation2 + $0x110] sm:$0xff] %v386
    %451 = vst [vmem:[#allocation2 + $0x118] sm:$0xff] %v387
    %452 = vst [vmem:[#allocation2 + $0x120] sm:$0xff] %v388
    %453 = vst [vmem:[#allocation2 + $0x128] sm:$0xff] %v389
    %454 = vst [vmem:[#allocation2 + $0x130] sm:$0xff] %v390
    %455 = vst [vmem:[#allocation2 + $0x138] sm:$0xff] %v391
    %456 = vst [vmem:[#allocation2 + $0x140] sm:$0xff] %v392
    %457 = vst [vmem:[#allocation2 + $0x148] sm:$0xff] %v393
    %458 = vst [vmem:[#allocation2 + $0x150] sm:$0xff] %v394
    %459 = vst [vmem:[#allocation2 + $0x158] sm:$0xff] %v395
    %460 = vst [vmem:[#allocation2 + $0x160] sm:$0xff] %v396
    %461 = vst [vmem:[#allocation2 + $0x168] sm:$0xff] %v397
    %462 = vst [vmem:[#allocation2 + $0x170] sm:$0xff] %v398
    %463 = vst [vmem:[#allocation2 + $0x178] sm:$0xff] %v399
    %464 = vst [vmem:[#allocation2 + $0x180] sm:$0xff] %v400
    %465 = vst [vmem:[#allocation2 + $0x188] sm:$0xff] %v401
    %466 = vst [vmem:[#allocation2 + $0x190] sm:$0xff] %v402
    %467 = vst [vmem:[#allocation2 + $0x198] sm:$0xff] %v403
    %468 = vst [vmem:[#allocation2 + $0x1a0] sm:$0xff] %v404
    %469 = vst [vmem:[#allocation2 + $0x1a8] sm:$0xff] %v405
    %470 = vst [vmem:[#allocation2 + $0x1b0] sm:$0xff] %v406
    %471 = vst [vmem:[#allocation2 + $0x1b8] sm:$0xff] %v407
    %472 = vst [vmem:[#allocation2 + $0x1c0] sm:$0xff] %v408
    %473 = vst [vmem:[#allocation2 + $0x1c8] sm:$0xff] %v409
    %474 = vst [vmem:[#allocation2 + $0x1d0] sm:$0xff] %v410
    %475 = vst [vmem:[#allocation2 + $0x1d8] sm:$0xff] %v411
    %476 = vst [vmem:[#allocation2 + $0x1e0] sm:$0xff] %v412
    %477 = vst [vmem:[#allocation2 + $0x1e8] sm:$0xff] %v413
    %478 = vst [vmem:[#allocation2 + $0x1f0] sm:$0xff] %v414
    %479 = vst [vmem:[#allocation2 + $0x1f8] sm:$0xff] %v415
    // Predicated region
    $region18: #{bottleneck_forward_nhwc.7} parent=1 // pred_check
      _
    $region19: #{bottleneck_forward_nhwc.7} parent=1 // pred_check_branch
      %481 = sbr.rel (0) target = $region21
    $region20: #{bottleneck_forward_nhwc.7} parent=1 // pred_region
      %s483 = ssub.s32 8192, 8192
      %484 = vsyncadd [#allocation3], %s483
      %s485 = sshll.u32 [#allocation2], 4
      %s486 = int_to_ptr.vmem [resolvable:$true] %s485
      %491 = dma.vmem_to_hbm [thread:$0]  %s486, 8192, %s4, [#allocation3], 128, 128, 8
    $region21: #{bottleneck_forward_nhwc.7} parent=1 // pred_fallthru
      _
    // Predicated region
    $region22: #{bottleneck_forward_nhwc.7} parent=1 // pred_check
      _
    $region23: #{bottleneck_forward_nhwc.7} parent=1 // pred_check_branch
      %493 = sbr.rel (0) target = $region25
    $region24: #{bottleneck_forward_nhwc.7} parent=1 // pred_region
      %494 = dma.done [#allocation3], 8192
    $region25: #{bottleneck_forward_nhwc.7} parent=1 // pred_fallthru
      _
    %495 = vsyncpa [#allocation3], 1

// kernel: bottleneck_forward_nhwc.6
$region0: #{bottleneck_forward_nhwc.6}
  #allocation0 [shape = 'u32[]', space=smem, size = 0x4, offset = 0x4, fixed_abs, tag = 'smem constant byte address 0x4 - core index']
  #allocation1 [shape = 'u32[144,128]{1,0:T(1,128)}', space=vmem, size = 0x12000, scoped, tag = 'internal scratch']
  %s0 = inlined_call_operand.vmem [shape: f32[512,128], index: 0, kind: input, shape index: {}]
  %s1 = inlined_call_operand.vmem [shape: f32[1,128], index: 1, kind: input, shape index: {}]
  %s2 = inlined_call_operand.vmem [shape: f32[1,128], index: 2, kind: input, shape index: {}]
  %s3 = inlined_call_operand.vmem [shape: f32[128,128], index: 3, kind: input, shape index: {}]
  %s4 = inlined_call_operand.vmem [shape: f32[512,128], index: 4, kind: output, shape index: {0}]
  %s5 = inlined_call_operand.vmem [shape: f32[1,2,128], index: 5, kind: output, shape index: {1}]
  %6 = xla_tuple %s4, %s5
  %s7 = sld [smem:[#allocation0]]
  $region34: #{bottleneck_forward_nhwc.6} parent=0
    _
  %s9 = ssub.s32 1, %s7
  %s10 = scalar_select 0, %s9, %s7
  // Predicated region
  $region2: #{bottleneck_forward_nhwc.6} parent=0 // pred_check
    _
  $region3: #{bottleneck_forward_nhwc.6} parent=0 // pred_check_branch
    %12 = sbr.rel (0) target = $region5
  $region4: #{bottleneck_forward_nhwc.6} parent=0 // pred_region
    _
  $region5: #{bottleneck_forward_nhwc.6} parent=0 // pred_fallthru
    _
  // Predicated region
  $region6: #{bottleneck_forward_nhwc.6} parent=0 // pred_check
    _
  $region7: #{bottleneck_forward_nhwc.6} parent=0 // pred_check_branch
    %14 = sbr.rel (0) target = $region9
  $region8: #{bottleneck_forward_nhwc.6} parent=0 // pred_region
    _
  $region9: #{bottleneck_forward_nhwc.6} parent=0 // pred_fallthru
    _
  // Predicated region
  $region10: #{bottleneck_forward_nhwc.6} parent=0 // pred_check
    _
  $region11: #{bottleneck_forward_nhwc.6} parent=0 // pred_check_branch
    %16 = sbr.rel (0) target = $region13
  $region12: #{bottleneck_forward_nhwc.6} parent=0 // pred_region
    _
  $region13: #{bottleneck_forward_nhwc.6} parent=0 // pred_fallthru
    _
  // Predicated region
  $region14: #{bottleneck_forward_nhwc.6} parent=0 // pred_check
    _
  $region15: #{bottleneck_forward_nhwc.6} parent=0 // pred_check_branch
    %18 = sbr.rel (0) target = $region17
  $region16: #{bottleneck_forward_nhwc.6} parent=0 // pred_region
    _
  $region17: #{bottleneck_forward_nhwc.6} parent=0 // pred_fallthru
    _
  %v19 = vld [vmem:[%s0] sm:$0xff]
  %v20 = vld [vmem:[%s0 + $0x8] sm:$0xff]
  %v21 = vld [vmem:[%s0 + $0x10] sm:$0xff]
  %v22 = vld [vmem:[%s0 + $0x18] sm:$0xff]
  %v23 = vld [vmem:[%s0 + $0x20] sm:$0xff]
  %v24 = vld [vmem:[%s0 + $0x28] sm:$0xff]
  %v25 = vld [vmem:[%s0 + $0x30] sm:$0xff]
  %v26 = vld [vmem:[%s0 + $0x38] sm:$0xff]
  %v27 = vld [vmem:[%s0 + $0x40] sm:$0xff]
  %v28 = vld [vmem:[%s0 + $0x48] sm:$0xff]
  %v29 = vld [vmem:[%s0 + $0x50] sm:$0xff]
  %v30 = vld [vmem:[%s0 + $0x58] sm:$0xff]
  %v31 = vld [vmem:[%s0 + $0x60] sm:$0xff]
  %v32 = vld [vmem:[%s0 + $0x68] sm:$0xff]
  %v33 = vld [vmem:[%s0 + $0x70] sm:$0xff]
  %v34 = vld [vmem:[%s0 + $0x78] sm:$0xff]
  %v35 = vld [vmem:[%s0 + $0x80] sm:$0xff]
  %v36 = vld [vmem:[%s0 + $0x88] sm:$0xff]
  %v37 = vld [vmem:[%s0 + $0x90] sm:$0xff]
  %v38 = vld [vmem:[%s0 + $0x98] sm:$0xff]
  %v39 = vld [vmem:[%s0 + $0xa0] sm:$0xff]
  %v40 = vld [vmem:[%s0 + $0xa8] sm:$0xff]
  %v41 = vld [vmem:[%s0 + $0xb0] sm:$0xff]
  %v42 = vld [vmem:[%s0 + $0xb8] sm:$0xff]
  %v43 = vld [vmem:[%s0 + $0xc0] sm:$0xff]
  %v44 = vld [vmem:[%s0 + $0xc8] sm:$0xff]
  %v45 = vld [vmem:[%s0 + $0xd0] sm:$0xff]
  %v46 = vld [vmem:[%s0 + $0xd8] sm:$0xff]
  %v47 = vld [vmem:[%s0 + $0xe0] sm:$0xff]
  %v48 = vld [vmem:[%s0 + $0xe8] sm:$0xff]
  %v49 = vld [vmem:[%s0 + $0xf0] sm:$0xff]
  %v50 = vld [vmem:[%s0 + $0xf8] sm:$0xff]
  %v51 = vld [vmem:[%s0 + $0x100] sm:$0xff]
  %v52 = vld [vmem:[%s0 + $0x108] sm:$0xff]
  %v53 = vld [vmem:[%s0 + $0x110] sm:$0xff]
  %v54 = vld [vmem:[%s0 + $0x118] sm:$0xff]
  %v55 = vld [vmem:[%s0 + $0x120] sm:$0xff]
  %v56 = vld [vmem:[%s0 + $0x128] sm:$0xff]
  %v57 = vld [vmem:[%s0 + $0x130] sm:$0xff]
  %v58 = vld [vmem:[%s0 + $0x138] sm:$0xff]
  %v59 = vld [vmem:[%s0 + $0x140] sm:$0xff]
  %v60 = vld [vmem:[%s0 + $0x148] sm:$0xff]
  %v61 = vld [vmem:[%s0 + $0x150] sm:$0xff]
  %v62 = vld [vmem:[%s0 + $0x158] sm:$0xff]
  %v63 = vld [vmem:[%s0 + $0x160] sm:$0xff]
  %v64 = vld [vmem:[%s0 + $0x168] sm:$0xff]
  %v65 = vld [vmem:[%s0 + $0x170] sm:$0xff]
  %v66 = vld [vmem:[%s0 + $0x178] sm:$0xff]
  %v67 = vld [vmem:[%s0 + $0x180] sm:$0xff]
  %v68 = vld [vmem:[%s0 + $0x188] sm:$0xff]
  %v69 = vld [vmem:[%s0 + $0x190] sm:$0xff]
  %v70 = vld [vmem:[%s0 + $0x198] sm:$0xff]
  %v71 = vld [vmem:[%s0 + $0x1a0] sm:$0xff]
  %v72 = vld [vmem:[%s0 + $0x1a8] sm:$0xff]
  %v73 = vld [vmem:[%s0 + $0x1b0] sm:$0xff]
  %v74 = vld [vmem:[%s0 + $0x1b8] sm:$0xff]
  %v75 = vld [vmem:[%s0 + $0x1c0] sm:$0xff]
  %v76 = vld [vmem:[%s0 + $0x1c8] sm:$0xff]
  %v77 = vld [vmem:[%s0 + $0x1d0] sm:$0xff]
  %v78 = vld [vmem:[%s0 + $0x1d8] sm:$0xff]
  %v79 = vld [vmem:[%s0 + $0x1e0] sm:$0xff]
  %v80 = vld [vmem:[%s0 + $0x1e8] sm:$0xff]
  %v81 = vld [vmem:[%s0 + $0x1f0] sm:$0xff]
  %v82 = vld [vmem:[%s0 + $0x1f8] sm:$0xff]
  %v83 = vld [vmem:[%s1] sm:$0x1]
  %v85 = vlaneseq
  %v86 = vshrl.u32 %v85, 7
  %v87 = vsub.s32 0, %v86
  %v88 = vrot.slane %v83, %v87
  %v90 = vmul.f32 %v19, %v88
  %v91 = vmul.f32 %v20, %v88
  %v92 = vmul.f32 %v21, %v88
  %v93 = vmul.f32 %v22, %v88
  %v94 = vmul.f32 %v23, %v88
  %v95 = vmul.f32 %v24, %v88
  %v96 = vmul.f32 %v25, %v88
  %v97 = vmul.f32 %v26, %v88
  %v98 = vmul.f32 %v27, %v88
  %v99 = vmul.f32 %v28, %v88
  %v100 = vmul.f32 %v29, %v88
  %v101 = vmul.f32 %v30, %v88
  %v102 = vmul.f32 %v31, %v88
  %v103 = vmul.f32 %v32, %v88
  %v104 = vmul.f32 %v33, %v88
  %v105 = vmul.f32 %v34, %v88
  %v106 = vmul.f32 %v35, %v88
  %v107 = vmul.f32 %v36, %v88
  %v108 = vmul.f32 %v37, %v88
  %v109 = vmul.f32 %v38, %v88
  %v110 = vmul.f32 %v39, %v88
  %v111 = vmul.f32 %v40, %v88
  %v112 = vmul.f32 %v41, %v88
  %v113 = vmul.f32 %v42, %v88
  %v114 = vmul.f32 %v43, %v88
  %v115 = vmul.f32 %v44, %v88
  %v116 = vmul.f32 %v45, %v88
  %v117 = vmul.f32 %v46, %v88
  %v118 = vmul.f32 %v47, %v88
  %v119 = vmul.f32 %v48, %v88
  %v120 = vmul.f32 %v49, %v88
  %v121 = vmul.f32 %v50, %v88
  %v122 = vmul.f32 %v51, %v88
  %v123 = vmul.f32 %v52, %v88
  %v124 = vmul.f32 %v53, %v88
  %v125 = vmul.f32 %v54, %v88
  %v126 = vmul.f32 %v55, %v88
  %v127 = vmul.f32 %v56, %v88
  %v128 = vmul.f32 %v57, %v88
  %v129 = vmul.f32 %v58, %v88
  %v130 = vmul.f32 %v59, %v88
  %v131 = vmul.f32 %v60, %v88
  %v132 = vmul.f32 %v61, %v88
  %v133 = vmul.f32 %v62, %v88
  %v134 = vmul.f32 %v63, %v88
  %v135 = vmul.f32 %v64, %v88
  %v136 = vmul.f32 %v65, %v88
  %v137 = vmul.f32 %v66, %v88
  %v138 = vmul.f32 %v67, %v88
  %v139 = vmul.f32 %v68, %v88
  %v140 = vmul.f32 %v69, %v88
  %v141 = vmul.f32 %v70, %v88
  %v142 = vmul.f32 %v71, %v88
  %v143 = vmul.f32 %v72, %v88
  %v144 = vmul.f32 %v73, %v88
  %v145 = vmul.f32 %v74, %v88
  %v146 = vmul.f32 %v75, %v88
  %v147 = vmul.f32 %v76, %v88
  %v148 = vmul.f32 %v77, %v88
  %v149 = vmul.f32 %v78, %v88
  %v150 = vmul.f32 %v79, %v88
  %v151 = vmul.f32 %v80, %v88
  %v152 = vmul.f32 %v81, %v88
  %v153 = vmul.f32 %v82, %v88
  %v154 = vld [vmem:[%s2] sm:$0x1]
  %v156 = vlaneseq
  %v157 = vshrl.u32 %v156, 7
  %v158 = vsub.s32 0, %v157
  %v159 = vrot.slane %v154, %v158
  %v161 = vadd.f32 %v90, %v159
  %v162 = vadd.f32 %v91, %v159
  %v163 = vadd.f32 %v92, %v159
  %v164 = vadd.f32 %v93, %v159
  %v165 = vadd.f32 %v94, %v159
  %v166 = vadd.f32 %v95, %v159
  %v167 = vadd.f32 %v96, %v159
  %v168 = vadd.f32 %v97, %v159
  %v169 = vadd.f32 %v98, %v159
  %v170 = vadd.f32 %v99, %v159
  %v171 = vadd.f32 %v100, %v159
  %v172 = vadd.f32 %v101, %v159
  %v173 = vadd.f32 %v102, %v159
  %v174 = vadd.f32 %v103, %v159
  %v175 = vadd.f32 %v104, %v159
  %v176 = vadd.f32 %v105, %v159
  %v177 = vadd.f32 %v106, %v159
  %v178 = vadd.f32 %v107, %v159
  %v179 = vadd.f32 %v108, %v159
  %v180 = vadd.f32 %v109, %v159
  %v181 = vadd.f32 %v110, %v159
  %v182 = vadd.f32 %v111, %v159
  %v183 = vadd.f32 %v112, %v159
  %v184 = vadd.f32 %v113, %v159
  %v185 = vadd.f32 %v114, %v159
  %v186 = vadd.f32 %v115, %v159
  %v187 = vadd.f32 %v116, %v159
  %v188 = vadd.f32 %v117, %v159
  %v189 = vadd.f32 %v118, %v159
  %v190 = vadd.f32 %v119, %v159
  %v191 = vadd.f32 %v120, %v159
  %v192 = vadd.f32 %v121, %v159
  %v193 = vadd.f32 %v122, %v159
  %v194 = vadd.f32 %v123, %v159
  %v195 = vadd.f32 %v124, %v159
  %v196 = vadd.f32 %v125, %v159
  %v197 = vadd.f32 %v126, %v159
  %v198 = vadd.f32 %v127, %v159
  %v199 = vadd.f32 %v128, %v159
  %v200 = vadd.f32 %v129, %v159
  %v201 = vadd.f32 %v130, %v159
  %v202 = vadd.f32 %v131, %v159
  %v203 = vadd.f32 %v132, %v159
  %v204 = vadd.f32 %v133, %v159
  %v205 = vadd.f32 %v134, %v159
  %v206 = vadd.f32 %v135, %v159
  %v207 = vadd.f32 %v136, %v159
  %v208 = vadd.f32 %v137, %v159
  %v209 = vadd.f32 %v138, %v159
  %v210 = vadd.f32 %v139, %v159
  %v211 = vadd.f32 %v140, %v159
  %v212 = vadd.f32 %v141, %v159
  %v213 = vadd.f32 %v142, %v159
  %v214 = vadd.f32 %v143, %v159
  %v215 = vadd.f32 %v144, %v159
  %v216 = vadd.f32 %v145, %v159
  %v217 = vadd.f32 %v146, %v159
  %v218 = vadd.f32 %v147, %v159
  %v219 = vadd.f32 %v148, %v159
  %v220 = vadd.f32 %v149, %v159
  %v221 = vadd.f32 %v150, %v159
  %v222 = vadd.f32 %v151, %v159
  %v223 = vadd.f32 %v152, %v159
  %v224 = vadd.f32 %v153, %v159
  %v225 = vmax.f32 %v161, 0.0
  %v226 = vmax.f32 %v162, 0.0
  %v227 = vmax.f32 %v163, 0.0
  %v228 = vmax.f32 %v164, 0.0
  %v229 = vmax.f32 %v165, 0.0
  %v230 = vmax.f32 %v166, 0.0
  %v231 = vmax.f32 %v167, 0.0
  %v232 = vmax.f32 %v168, 0.0
  %v233 = vmax.f32 %v169, 0.0
  %v234 = vmax.f32 %v170, 0.0
  %v235 = vmax.f32 %v171, 0.0
  %v236 = vmax.f32 %v172, 0.0
  %v237 = vmax.f32 %v173, 0.0
  %v238 = vmax.f32 %v174, 0.0
  %v239 = vmax.f32 %v175, 0.0
  %v240 = vmax.f32 %v176, 0.0
  %v241 = vmax.f32 %v177, 0.0
  %v242 = vmax.f32 %v178, 0.0
  %v243 = vmax.f32 %v179, 0.0
  %v244 = vmax.f32 %v180, 0.0
  %v245 = vmax.f32 %v181, 0.0
  %v246 = vmax.f32 %v182, 0.0
  %v247 = vmax.f32 %v183, 0.0
  %v248 = vmax.f32 %v184, 0.0
  %v249 = vmax.f32 %v185, 0.0
  %v250 = vmax.f32 %v186, 0.0
  %v251 = vmax.f32 %v187, 0.0
  %v252 = vmax.f32 %v188, 0.0
  %v253 = vmax.f32 %v189, 0.0
  %v254 = vmax.f32 %v190, 0.0
  %v255 = vmax.f32 %v191, 0.0
  %v256 = vmax.f32 %v192, 0.0
  %v257 = vmax.f32 %v193, 0.0
  %v258 = vmax.f32 %v194, 0.0
  %v259 = vmax.f32 %v195, 0.0
  %v260 = vmax.f32 %v196, 0.0
  %v261 = vmax.f32 %v197, 0.0
  %v262 = vmax.f32 %v198, 0.0
  %v263 = vmax.f32 %v199, 0.0
  %v264 = vmax.f32 %v200, 0.0
  %v265 = vmax.f32 %v201, 0.0
  %v266 = vmax.f32 %v202, 0.0
  %v267 = vmax.f32 %v203, 0.0
  %v268 = vmax.f32 %v204, 0.0
  %v269 = vmax.f32 %v205, 0.0
  %v270 = vmax.f32 %v206, 0.0
  %v271 = vmax.f32 %v207, 0.0
  %v272 = vmax.f32 %v208, 0.0
  %v273 = vmax.f32 %v209, 0.0
  %v274 = vmax.f32 %v210, 0.0
  %v275 = vmax.f32 %v211, 0.0
  %v276 = vmax.f32 %v212, 0.0
  %v277 = vmax.f32 %v213, 0.0
  %v278 = vmax.f32 %v214, 0.0
  %v279 = vmax.f32 %v215, 0.0
  %v280 = vmax.f32 %v216, 0.0
  %v281 = vmax.f32 %v217, 0.0
  %v282 = vmax.f32 %v218, 0.0
  %v283 = vmax.f32 %v219, 0.0
  %v284 = vmax.f32 %v220, 0.0
  %v285 = vmax.f32 %v221, 0.0
  %v286 = vmax.f32 %v222, 0.0
  %v287 = vmax.f32 %v223, 0.0
  %v288 = vmax.f32 %v224, 0.0
  %v289 = vld [vmem:[%s3] sm:$0xff]
  %v290 = vld [vmem:[%s3 + $0x8] sm:$0xff]
  %v291 = vld [vmem:[%s3 + $0x10] sm:$0xff]
  %v292 = vld [vmem:[%s3 + $0x18] sm:$0xff]
  %v293 = vld [vmem:[%s3 + $0x20] sm:$0xff]
  %v294 = vld [vmem:[%s3 + $0x28] sm:$0xff]
  %v295 = vld [vmem:[%s3 + $0x30] sm:$0xff]
  %v296 = vld [vmem:[%s3 + $0x38] sm:$0xff]
  %v297 = vld [vmem:[%s3 + $0x40] sm:$0xff]
  %v298 = vld [vmem:[%s3 + $0x48] sm:$0xff]
  %v299 = vld [vmem:[%s3 + $0x50] sm:$0xff]
  %v300 = vld [vmem:[%s3 + $0x58] sm:$0xff]
  %v301 = vld [vmem:[%s3 + $0x60] sm:$0xff]
  %v302 = vld [vmem:[%s3 + $0x68] sm:$0xff]
  %v303 = vld [vmem:[%s3 + $0x70] sm:$0xff]
  %v304 = vld [vmem:[%s3 + $0x78] sm:$0xff]
  %305 = vmatprep.subr.mxu0 0.0
  %306 = vmatpush1.msra.mxu0 %v304
  %307 = vmatprep.subr.mxu0 0.0
  %308 = vmatpush1.msra.mxu0 %v303
  %309 = vmatprep.subr.mxu0 0.0
  %310 = vmatpush1.msra.mxu0 %v302
  %311 = vmatprep.subr.mxu0 0.0
  %312 = vmatpush1.msra.mxu0 %v301
  %313 = vmatprep.subr.mxu0 0.0
  %314 = vmatpush1.msra.mxu0 %v300
  %315 = vmatprep.subr.mxu0 0.0
  %316 = vmatpush1.msra.mxu0 %v299
  %317 = vmatprep.subr.mxu0 0.0
  %318 = vmatpush1.msra.mxu0 %v298
  %319 = vmatprep.subr.mxu0 0.0
  %320 = vmatpush1.msra.mxu0 %v297
  %321 = vmatprep.subr.mxu0 0.0
  %322 = vmatpush1.msra.mxu0 %v296
  %323 = vmatprep.subr.mxu0 0.0
  %324 = vmatpush1.msra.mxu0 %v295
  %325 = vmatprep.subr.mxu0 0.0
  %326 = vmatpush1.msra.mxu0 %v294
  %327 = vmatprep.subr.mxu0 0.0
  %328 = vmatpush1.msra.mxu0 %v293
  %329 = vmatprep.subr.mxu0 0.0
  %330 = vmatpush1.msra.mxu0 %v292
  %331 = vmatprep.subr.mxu0 0.0
  %332 = vmatpush1.msra.mxu0 %v291
  %333 = vmatprep.subr.mxu0 0.0
  %334 = vmatpush1.msra.mxu0 %v290
  %335 = vmatprep.subr.mxu0 0.0
  %336 = vmatpush1.msra.mxu0 %v289
  %337 = vmatprep.subr.mxu0 0.0
  %338 = vmatpush2.msra.mxu0 0.0
  %339 = vmatprep.subr.mxu0 0.0
  %340 = vmatpush2.msra.mxu0 0.0
  %341 = vmatprep.subr.mxu0 0.0
  %342 = vmatpush2.msra.mxu0 0.0
  %343 = vmatprep.subr.mxu0 0.0
  %344 = vmatpush2.msra.mxu0 0.0
  %345 = vmatprep.subr.mxu0 0.0
  %346 = vmatpush2.msra.mxu0 0.0
  %347 = vmatprep.subr.mxu0 0.0
  %348 = vmatpush2.msra.mxu0 0.0
  %349 = vmatprep.subr.mxu0 0.0
  %350 = vmatpush2.msra.mxu0 0.0
  %351 = vmatprep.subr.mxu0 0.0
  %352 = vmatpush2.msra.mxu0 0.0
  %353 = vmatprep.subr.mxu0 0.0
  %354 = vmatpush2.msra.mxu0 0.0
  %355 = vmatprep.subr.mxu0 0.0
  %356 = vmatpush2.msra.mxu0 0.0
  %357 = vmatprep.subr.mxu0 0.0
  %358 = vmatpush2.msra.mxu0 0.0
  %359 = vmatprep.subr.mxu0 0.0
  %360 = vmatpush2.msra.mxu0 0.0
  %361 = vmatprep.subr.mxu0 0.0
  %362 = vmatpush2.msra.mxu0 0.0
  %363 = vmatprep.subr.mxu0 0.0
  %364 = vmatpush2.msra.mxu0 0.0
  %365 = vmatprep.subr.mxu0 0.0
  %366 = vmatpush2.msra.mxu0 0.0
  %367 = vmatprep.subr.mxu0 0.0
  %368 = vmatpush2.msra.mxu0 0.0
  %369 = vmatprep.mubr.f32.mxu0 0.0
  %370 = vmatmul.mubr.f32.gmra.mxu0 %v225
  %v371 = vpop.f32.mrf.mxu0
  %v372 = vadd.f32 0.0, %v371
  %v373 = vpop.f32.mrf.mxu0
  %374 = vmatprep.mubr.f32.mxu0 0.0
  %375 = vmatmul.mubr.f32.gmra.mxu0 %v226
  %v376 = vpop.f32.mrf.mxu0
  %v377 = vadd.f32 0.0, %v376
  %v378 = vpop.f32.mrf.mxu0
  %379 = vmatprep.mubr.f32.mxu0 0.0
  %380 = vmatmul.mubr.f32.gmra.mxu0 %v227
  %v381 = vpop.f32.mrf.mxu0
  %v382 = vadd.f32 0.0, %v381
  %v383 = vpop.f32.mrf.mxu0
  %384 = vmatprep.mubr.f32.mxu0 0.0
  %385 = vmatmul.mubr.f32.gmra.mxu0 %v228
  %v386 = vpop.f32.mrf.mxu0
  %v387 = vadd.f32 0.0, %v386
  %v388 = vpop.f32.mrf.mxu0
  %389 = vmatprep.mubr.f32.mxu0 0.0
  %390 = vmatmul.mubr.f32.gmra.mxu0 %v229
  %v391 = vpop.f32.mrf.mxu0
  %v392 = vadd.f32 0.0, %v391
  %v393 = vpop.f32.mrf.mxu0
  %394 = vmatprep.mubr.f32.mxu0 0.0
  %395 = vmatmul.mubr.f32.gmra.mxu0 %v230
  %v396 = vpop.f32.mrf.mxu0
  %v397 = vadd.f32 0.0, %v396
  %v398 = vpop.f32.mrf.mxu0
  %399 = vmatprep.mubr.f32.mxu0 0.0
  %400 = vmatmul.mubr.f32.gmra.mxu0 %v231
  %v401 = vpop.f32.mrf.mxu0
  %v402 = vadd.f32 0.0, %v401
  %v403 = vpop.f32.mrf.mxu0
  %404 = vmatprep.mubr.f32.mxu0 0.0
  %405 = vmatmul.mubr.f32.gmra.mxu0 %v232
  %v406 = vpop.f32.mrf.mxu0
  %v407 = vadd.f32 0.0, %v406
  %v408 = vpop.f32.mrf.mxu0
  %409 = vmatprep.mubr.f32.mxu0 0.0
  %410 = vmatmul.mubr.f32.gmra.mxu0 %v233
  %v411 = vpop.f32.mrf.mxu0
  %v412 = vadd.f32 0.0, %v411
  %v413 = vpop.f32.mrf.mxu0
  %414 = vmatprep.mubr.f32.mxu0 0.0
  %415 = vmatmul.mubr.f32.gmra.mxu0 %v234
  %v416 = vpop.f32.mrf.mxu0
  %v417 = vadd.f32 0.0, %v416
  %v418 = vpop.f32.mrf.mxu0
  %419 = vmatprep.mubr.f32.mxu0 0.0
  %420 = vmatmul.mubr.f32.gmra.mxu0 %v235
  %v421 = vpop.f32.mrf.mxu0
  %v422 = vadd.f32 0.0, %v421
  %v423 = vpop.f32.mrf.mxu0
  %424 = vmatprep.mubr.f32.mxu0 0.0
  %425 = vmatmul.mubr.f32.gmra.mxu0 %v236
  %v426 = vpop.f32.mrf.mxu0
  %v427 = vadd.f32 0.0, %v426
  %v428 = vpop.f32.mrf.mxu0
  %429 = vmatprep.mubr.f32.mxu0 0.0
  %430 = vmatmul.mubr.f32.gmra.mxu0 %v237
  %v431 = vpop.f32.mrf.mxu0
  %v432 = vadd.f32 0.0, %v431
  %v433 = vpop.f32.mrf.mxu0
  %434 = vmatprep.mubr.f32.mxu0 0.0
  %435 = vmatmul.mubr.f32.gmra.mxu0 %v238
  %v436 = vpop.f32.mrf.mxu0
  %v437 = vadd.f32 0.0, %v436
  %v438 = vpop.f32.mrf.mxu0
  %439 = vmatprep.mubr.f32.mxu0 0.0
  %440 = vmatmul.mubr.f32.gmra.mxu0 %v239
  %v441 = vpop.f32.mrf.mxu0
  %v442 = vadd.f32 0.0, %v441
  %v443 = vpop.f32.mrf.mxu0
  %444 = vmatprep.mubr.f32.mxu0 0.0
  %445 = vmatmul.mubr.f32.gmra.mxu0 %v240
  %v446 = vpop.f32.mrf.mxu0
  %v447 = vadd.f32 0.0, %v446
  %v448 = vpop.f32.mrf.mxu0
  %449 = vmatprep.mubr.f32.mxu0 0.0
  %450 = vmatmul.mubr.f32.gmra.mxu0 %v241
  %v451 = vpop.f32.mrf.mxu0
  %v452 = vadd.f32 0.0, %v451
  %v453 = vpop.f32.mrf.mxu0
  %454 = vmatprep.mubr.f32.mxu0 0.0
  %455 = vmatmul.mubr.f32.gmra.mxu0 %v242
  %v456 = vpop.f32.mrf.mxu0
  %v457 = vadd.f32 0.0, %v456
  %v458 = vpop.f32.mrf.mxu0
  %459 = vmatprep.mubr.f32.mxu0 0.0
  %460 = vmatmul.mubr.f32.gmra.mxu0 %v243
  %v461 = vpop.f32.mrf.mxu0
  %v462 = vadd.f32 0.0, %v461
  %v463 = vpop.f32.mrf.mxu0
  %464 = vmatprep.mubr.f32.mxu0 0.0
  %465 = vmatmul.mubr.f32.gmra.mxu0 %v244
  %v466 = vpop.f32.mrf.mxu0
  %v467 = vadd.f32 0.0, %v466
  %v468 = vpop.f32.mrf.mxu0
  %469 = vmatprep.mubr.f32.mxu0 0.0
  %470 = vmatmul.mubr.f32.gmra.mxu0 %v245
  %v471 = vpop.f32.mrf.mxu0
  %v472 = vadd.f32 0.0, %v471
  %v473 = vpop.f32.mrf.mxu0
  %474 = vmatprep.mubr.f32.mxu0 0.0
  %475 = vmatmul.mubr.f32.gmra.mxu0 %v246
  %v476 = vpop.f32.mrf.mxu0
  %v477 = vadd.f32 0.0, %v476
  %v478 = vpop.f32.mrf.mxu0
  %479 = vmatprep.mubr.f32.mxu0 0.0
  %480 = vmatmul.mubr.f32.gmra.mxu0 %v247
  %v481 = vpop.f32.mrf.mxu0
  %v482 = vadd.f32 0.0, %v481
  %v483 = vpop.f32.mrf.mxu0
  %484 = vmatprep.mubr.f32.mxu0 0.0
  %485 = vmatmul.mubr.f32.gmra.mxu0 %v248
  %v486 = vpop.f32.mrf.mxu0
  %v487 = vadd.f32 0.0, %v486
  %v488 = vpop.f32.mrf.mxu0
  %489 = vmatprep.mubr.f32.mxu0 0.0
  %490 = vmatmul.mubr.f32.gmra.mxu0 %v249
  %v491 = vpop.f32.mrf.mxu0
  %v492 = vadd.f32 0.0, %v491
  %v493 = vpop.f32.mrf.mxu0
  %494 = vmatprep.mubr.f32.mxu0 0.0
  %495 = vmatmul.mubr.f32.gmra.mxu0 %v250
  %v496 = vpop.f32.mrf.mxu0
  %v497 = vadd.f32 0.0, %v496
  %v498 = vpop.f32.mrf.mxu0
  %499 = vmatprep.mubr.f32.mxu0 0.0
  %500 = vmatmul.mubr.f32.gmra.mxu0 %v251
  %v501 = vpop.f32.mrf.mxu0
  %v502 = vadd.f32 0.0, %v501
  %v503 = vpop.f32.mrf.mxu0
  %504 = vmatprep.mubr.f32.mxu0 0.0
  %505 = vmatmul.mubr.f32.gmra.mxu0 %v252
  %v506 = vpop.f32.mrf.mxu0
  %v507 = vadd.f32 0.0, %v506
  %v508 = vpop.f32.mrf.mxu0
  %509 = vmatprep.mubr.f32.mxu0 0.0
  %510 = vmatmul.mubr.f32.gmra.mxu0 %v253
  %v511 = vpop.f32.mrf.mxu0
  %v512 = vadd.f32 0.0, %v511
  %v513 = vpop.f32.mrf.mxu0
  %514 = vmatprep.mubr.f32.mxu0 0.0
  %515 = vmatmul.mubr.f32.gmra.mxu0 %v254
  %v516 = vpop.f32.mrf.mxu0
  %v517 = vadd.f32 0.0, %v516
  %v518 = vpop.f32.mrf.mxu0
  %519 = vmatprep.mubr.f32.mxu0 0.0
  %520 = vmatmul.mubr.f32.gmra.mxu0 %v255
  %v521 = vpop.f32.mrf.mxu0
  %v522 = vadd.f32 0.0, %v521
  %v523 = vpop.f32.mrf.mxu0
  %524 = vmatprep.mubr.f32.mxu0 0.0
  %525 = vmatmul.mubr.f32.gmra.mxu0 %v256
  %v526 = vpop.f32.mrf.mxu0
  %v527 = vadd.f32 0.0, %v526
  %v528 = vpop.f32.mrf.mxu0
  %529 = vmatprep.mubr.f32.mxu0 0.0
  %530 = vmatmul.mubr.f32.gmra.mxu0 %v257
  %v531 = vpop.f32.mrf.mxu0
  %v532 = vadd.f32 0.0, %v531
  %v533 = vpop.f32.mrf.mxu0
  %534 = vmatprep.mubr.f32.mxu0 0.0
  %535 = vmatmul.mubr.f32.gmra.mxu0 %v258
  %v536 = vpop.f32.mrf.mxu0
  %v537 = vadd.f32 0.0, %v536
  %v538 = vpop.f32.mrf.mxu0
  %539 = vmatprep.mubr.f32.mxu0 0.0
  %540 = vmatmul.mubr.f32.gmra.mxu0 %v259
  %v541 = vpop.f32.mrf.mxu0
  %v542 = vadd.f32 0.0, %v541
  %v543 = vpop.f32.mrf.mxu0
  %544 = vmatprep.mubr.f32.mxu0 0.0
  %545 = vmatmul.mubr.f32.gmra.mxu0 %v260
  %v546 = vpop.f32.mrf.mxu0
  %v547 = vadd.f32 0.0, %v546
  %v548 = vpop.f32.mrf.mxu0
  %549 = vmatprep.mubr.f32.mxu0 0.0
  %550 = vmatmul.mubr.f32.gmra.mxu0 %v261
  %v551 = vpop.f32.mrf.mxu0
  %v552 = vadd.f32 0.0, %v551
  %v553 = vpop.f32.mrf.mxu0
  %554 = vmatprep.mubr.f32.mxu0 0.0
  %555 = vmatmul.mubr.f32.gmra.mxu0 %v262
  %v556 = vpop.f32.mrf.mxu0
  %v557 = vadd.f32 0.0, %v556
  %v558 = vpop.f32.mrf.mxu0
  %559 = vmatprep.mubr.f32.mxu0 0.0
  %560 = vmatmul.mubr.f32.gmra.mxu0 %v263
  %v561 = vpop.f32.mrf.mxu0
  %v562 = vadd.f32 0.0, %v561
  %v563 = vpop.f32.mrf.mxu0
  %564 = vmatprep.mubr.f32.mxu0 0.0
  %565 = vmatmul.mubr.f32.gmra.mxu0 %v264
  %v566 = vpop.f32.mrf.mxu0
  %v567 = vadd.f32 0.0, %v566
  %v568 = vpop.f32.mrf.mxu0
  %569 = vmatprep.mubr.f32.mxu0 0.0
  %570 = vmatmul.mubr.f32.gmra.mxu0 %v265
  %v571 = vpop.f32.mrf.mxu0
  %v572 = vadd.f32 0.0, %v571
  %v573 = vpop.f32.mrf.mxu0
  %574 = vmatprep.mubr.f32.mxu0 0.0
  %575 = vmatmul.mubr.f32.gmra.mxu0 %v266
  %v576 = vpop.f32.mrf.mxu0
  %v577 = vadd.f32 0.0, %v576
  %v578 = vpop.f32.mrf.mxu0
  %579 = vmatprep.mubr.f32.mxu0 0.0
  %580 = vmatmul.mubr.f32.gmra.mxu0 %v267
  %v581 = vpop.f32.mrf.mxu0
  %v582 = vadd.f32 0.0, %v581
  %v583 = vpop.f32.mrf.mxu0
  %584 = vmatprep.mubr.f32.mxu0 0.0
  %585 = vmatmul.mubr.f32.gmra.mxu0 %v268
  %v586 = vpop.f32.mrf.mxu0
  %v587 = vadd.f32 0.0, %v586
  %v588 = vpop.f32.mrf.mxu0
  %589 = vmatprep.mubr.f32.mxu0 0.0
  %590 = vmatmul.mubr.f32.gmra.mxu0 %v269
  %v591 = vpop.f32.mrf.mxu0
  %v592 = vadd.f32 0.0, %v591
  %v593 = vpop.f32.mrf.mxu0
  %594 = vmatprep.mubr.f32.mxu0 0.0
  %595 = vmatmul.mubr.f32.gmra.mxu0 %v270
  %v596 = vpop.f32.mrf.mxu0
  %v597 = vadd.f32 0.0, %v596
  %v598 = vpop.f32.mrf.mxu0
  %599 = vmatprep.mubr.f32.mxu0 0.0
  %600 = vmatmul.mubr.f32.gmra.mxu0 %v271
  %v601 = vpop.f32.mrf.mxu0
  %v602 = vadd.f32 0.0, %v601
  %v603 = vpop.f32.mrf.mxu0
  %604 = vmatprep.mubr.f32.mxu0 0.0
  %605 = vmatmul.mubr.f32.gmra.mxu0 %v272
  %v606 = vpop.f32.mrf.mxu0
  %v607 = vadd.f32 0.0, %v606
  %v608 = vpop.f32.mrf.mxu0
  %609 = vmatprep.mubr.f32.mxu0 0.0
  %610 = vmatmul.mubr.f32.gmra.mxu0 %v273
  %v611 = vpop.f32.mrf.mxu0
  %v612 = vadd.f32 0.0, %v611
  %v613 = vpop.f32.mrf.mxu0
  %614 = vmatprep.mubr.f32.mxu0 0.0
  %615 = vmatmul.mubr.f32.gmra.mxu0 %v274
  %v616 = vpop.f32.mrf.mxu0
  %v617 = vadd.f32 0.0, %v616
  %v618 = vpop.f32.mrf.mxu0
  %619 = vmatprep.mubr.f32.mxu0 0.0
  %620 = vmatmul.mubr.f32.gmra.mxu0 %v275
  %v621 = vpop.f32.mrf.mxu0
  %v622 = vadd.f32 0.0, %v621
  %v623 = vpop.f32.mrf.mxu0
  %624 = vmatprep.mubr.f32.mxu0 0.0
  %625 = vmatmul.mubr.f32.gmra.mxu0 %v276
  %v626 = vpop.f32.mrf.mxu0
  %v627 = vadd.f32 0.0, %v626
  %v628 = vpop.f32.mrf.mxu0
  %629 = vmatprep.mubr.f32.mxu0 0.0
  %630 = vmatmul.mubr.f32.gmra.mxu0 %v277
  %v631 = vpop.f32.mrf.mxu0
  %v632 = vadd.f32 0.0, %v631
  %v633 = vpop.f32.mrf.mxu0
  %634 = vmatprep.mubr.f32.mxu0 0.0
  %635 = vmatmul.mubr.f32.gmra.mxu0 %v278
  %v636 = vpop.f32.mrf.mxu0
  %v637 = vadd.f32 0.0, %v636
  %v638 = vpop.f32.mrf.mxu0
  %639 = vmatprep.mubr.f32.mxu0 0.0
  %640 = vmatmul.mubr.f32.gmra.mxu0 %v279
  %v641 = vpop.f32.mrf.mxu0
  %v642 = vadd.f32 0.0, %v641
  %v643 = vpop.f32.mrf.mxu0
  %644 = vmatprep.mubr.f32.mxu0 0.0
  %645 = vmatmul.mubr.f32.gmra.mxu0 %v280
  %v646 = vpop.f32.mrf.mxu0
  %v647 = vadd.f32 0.0, %v646
  %v648 = vpop.f32.mrf.mxu0
  %649 = vmatprep.mubr.f32.mxu0 0.0
  %650 = vmatmul.mubr.f32.gmra.mxu0 %v281
  %v651 = vpop.f32.mrf.mxu0
  %v652 = vadd.f32 0.0, %v651
  %v653 = vpop.f32.mrf.mxu0
  %654 = vmatprep.mubr.f32.mxu0 0.0
  %655 = vmatmul.mubr.f32.gmra.mxu0 %v282
  %v656 = vpop.f32.mrf.mxu0
  %v657 = vadd.f32 0.0, %v656
  %v658 = vpop.f32.mrf.mxu0
  %659 = vmatprep.mubr.f32.mxu0 0.0
  %660 = vmatmul.mubr.f32.gmra.mxu0 %v283
  %v661 = vpop.f32.mrf.mxu0
  %v662 = vadd.f32 0.0, %v661
  %v663 = vpop.f32.mrf.mxu0
  %664 = vmatprep.mubr.f32.mxu0 0.0
  %665 = vmatmul.mubr.f32.gmra.mxu0 %v284
  %v666 = vpop.f32.mrf.mxu0
  %v667 = vadd.f32 0.0, %v666
  %v668 = vpop.f32.mrf.mxu0
  %669 = vmatprep.mubr.f32.mxu0 0.0
  %670 = vmatmul.mubr.f32.gmra.mxu0 %v285
  %v671 = vpop.f32.mrf.mxu0
  %v672 = vadd.f32 0.0, %v671
  %v673 = vpop.f32.mrf.mxu0
  %674 = vmatprep.mubr.f32.mxu0 0.0
  %675 = vmatmul.mubr.f32.gmra.mxu0 %v286
  %v676 = vpop.f32.mrf.mxu0
  %v677 = vadd.f32 0.0, %v676
  %v678 = vpop.f32.mrf.mxu0
  %679 = vmatprep.mubr.f32.mxu0 0.0
  %680 = vmatmul.mubr.f32.gmra.mxu0 %v287
  %v681 = vpop.f32.mrf.mxu0
  %v682 = vadd.f32 0.0, %v681
  %v683 = vpop.f32.mrf.mxu0
  %684 = vmatprep.mubr.f32.mxu0 0.0
  %685 = vmatmul.mubr.f32.gmra.mxu0 %v288
  %v686 = vpop.f32.mrf.mxu0
  %v687 = vadd.f32 0.0, %v686
  %v688 = vpop.f32.mrf.mxu0
  %689 = vdwg.mxu0
  %690 = vst [vmem:[%s4] sm:$0xff] %v372
  %691 = vst [vmem:[%s4 + $0x8] sm:$0xff] %v377
  %692 = vst [vmem:[%s4 + $0x10] sm:$0xff] %v382
  %693 = vst [vmem:[%s4 + $0x18] sm:$0xff] %v387
  %694 = vst [vmem:[%s4 + $0x20] sm:$0xff] %v392
  %695 = vst [vmem:[%s4 + $0x28] sm:$0xff] %v397
  %696 = vst [vmem:[%s4 + $0x30] sm:$0xff] %v402
  %697 = vst [vmem:[%s4 + $0x38] sm:$0xff] %v407
  %698 = vst [vmem:[%s4 + $0x40] sm:$0xff] %v412
  %699 = vst [vmem:[%s4 + $0x48] sm:$0xff] %v417
  %700 = vst [vmem:[%s4 + $0x50] sm:$0xff] %v422
  %701 = vst [vmem:[%s4 + $0x58] sm:$0xff] %v427
  %702 = vst [vmem:[%s4 + $0x60] sm:$0xff] %v432
  %703 = vst [vmem:[%s4 + $0x68] sm:$0xff] %v437
  %704 = vst [vmem:[%s4 + $0x70] sm:$0xff] %v442
  %705 = vst [vmem:[%s4 + $0x78] sm:$0xff] %v447
  %706 = vst [vmem:[%s4 + $0x80] sm:$0xff] %v452
  %707 = vst [vmem:[%s4 + $0x88] sm:$0xff] %v457
  %708 = vst [vmem:[%s4 + $0x90] sm:$0xff] %v462
  %709 = vst [vmem:[%s4 + $0x98] sm:$0xff] %v467
  %710 = vst [vmem:[%s4 + $0xa0] sm:$0xff] %v472
  %711 = vst [vmem:[%s4 + $0xa8] sm:$0xff] %v477
  %712 = vst [vmem:[%s4 + $0xb0] sm:$0xff] %v482
  %713 = vst [vmem:[%s4 + $0xb8] sm:$0xff] %v487
  %714 = vst [vmem:[%s4 + $0xc0] sm:$0xff] %v492
  %715 = vst [vmem:[%s4 + $0xc8] sm:$0xff] %v497
  %716 = vst [vmem:[%s4 + $0xd0] sm:$0xff] %v502
  %717 = vst [vmem:[%s4 + $0xd8] sm:$0xff] %v507
  %718 = vst [vmem:[%s4 + $0xe0] sm:$0xff] %v512
  %719 = vst [vmem:[%s4 + $0xe8] sm:$0xff] %v517
  %720 = vst [vmem:[%s4 + $0xf0] sm:$0xff] %v522
  %721 = vst [vmem:[%s4 + $0xf8] sm:$0xff] %v527
  %722 = vst [vmem:[%s4 + $0x100] sm:$0xff] %v532
  %723 = vst [vmem:[%s4 + $0x108] sm:$0xff] %v537
  %724 = vst [vmem:[%s4 + $0x110] sm:$0xff] %v542
  %725 = vst [vmem:[%s4 + $0x118] sm:$0xff] %v547
  %726 = vst [vmem:[%s4 + $0x120] sm:$0xff] %v552
  %727 = vst [vmem:[%s4 + $0x128] sm:$0xff] %v557
  %728 = vst [vmem:[%s4 + $0x130] sm:$0xff] %v562
  %729 = vst [vmem:[%s4 + $0x138] sm:$0xff] %v567
  %730 = vst [vmem:[%s4 + $0x140] sm:$0xff] %v572
  %731 = vst [vmem:[%s4 + $0x148] sm:$0xff] %v577
  %732 = vst [vmem:[%s4 + $0x150] sm:$0xff] %v582
  %733 = vst [vmem:[%s4 + $0x158] sm:$0xff] %v587
  %734 = vst [vmem:[%s4 + $0x160] sm:$0xff] %v592
  %735 = vst [vmem:[%s4 + $0x168] sm:$0xff] %v597
  %736 = vst [vmem:[%s4 + $0x170] sm:$0xff] %v602
  %737 = vst [vmem:[%s4 + $0x178] sm:$0xff] %v607
  %738 = vst [vmem:[%s4 + $0x180] sm:$0xff] %v612
  %739 = vst [vmem:[%s4 + $0x188] sm:$0xff] %v617
  %740 = vst [vmem:[%s4 + $0x190] sm:$0xff] %v622
  %741 = vst [vmem:[%s4 + $0x198] sm:$0xff] %v627
  %742 = vst [vmem:[%s4 + $0x1a0] sm:$0xff] %v632
  %743 = vst [vmem:[%s4 + $0x1a8] sm:$0xff] %v637
  %744 = vst [vmem:[%s4 + $0x1b0] sm:$0xff] %v642
  %745 = vst [vmem:[%s4 + $0x1b8] sm:$0xff] %v647
  %746 = vst [vmem:[%s4 + $0x1c0] sm:$0xff] %v652
  %747 = vst [vmem:[%s4 + $0x1c8] sm:$0xff] %v657
  %748 = vst [vmem:[%s4 + $0x1d0] sm:$0xff] %v662
  %749 = vst [vmem:[%s4 + $0x1d8] sm:$0xff] %v667
  %750 = vst [vmem:[%s4 + $0x1e0] sm:$0xff] %v672
  %751 = vst [vmem:[%s4 + $0x1e8] sm:$0xff] %v677
  %752 = vst [vmem:[%s4 + $0x1f0] sm:$0xff] %v682
  %753 = vst [vmem:[%s4 + $0x1f8] sm:$0xff] %v687
  %v754 = vadd.f32 %v372, %v377
  %v755 = vadd.f32 %v754, %v382
  %v756 = vadd.f32 %v755, %v387
  %v757 = vadd.f32 %v756, %v392
  %v758 = vadd.f32 %v757, %v397
  %v759 = vadd.f32 %v758, %v402
  %v760 = vadd.f32 %v759, %v407
  %v761 = vadd.f32 %v760, %v412
  %v762 = vadd.f32 %v761, %v417
  %v763 = vadd.f32 %v762, %v422
  %v764 = vadd.f32 %v763, %v427
  %v765 = vadd.f32 %v764, %v432
  %v766 = vadd.f32 %v765, %v437
  %v767 = vadd.f32 %v766, %v442
  %v768 = vadd.f32 %v767, %v447
  %v769 = vadd.f32 %v768, %v452
  %v770 = vadd.f32 %v769, %v457
  %v771 = vadd.f32 %v770, %v462
  %v772 = vadd.f32 %v771, %v467
  %v773 = vadd.f32 %v772, %v472
  %v774 = vadd.f32 %v773, %v477
  %v775 = vadd.f32 %v774, %v482
  %v776 = vadd.f32 %v775, %v487
  %v777 = vadd.f32 %v776, %v492
  %v778 = vadd.f32 %v777, %v497
  %v779 = vadd.f32 %v778, %v502
  %v780 = vadd.f32 %v779, %v507
  %v781 = vadd.f32 %v780, %v512
  %v782 = vadd.f32 %v781, %v517
  %v783 = vadd.f32 %v782, %v522
  %v784 = vadd.f32 %v783, %v527
  %v785 = vadd.f32 %v784, %v532
  %v786 = vadd.f32 %v785, %v537
  %v787 = vadd.f32 %v786, %v542
  %v788 = vadd.f32 %v787, %v547
  %v789 = vadd.f32 %v788, %v552
  %v790 = vadd.f32 %v789, %v557
  %v791 = vadd.f32 %v790, %v562
  %v792 = vadd.f32 %v791, %v567
  %v793 = vadd.f32 %v792, %v572
  %v794 = vadd.f32 %v793, %v577
  %v795 = vadd.f32 %v794, %v582
  %v796 = vadd.f32 %v795, %v587
  %v797 = vadd.f32 %v796, %v592
  %v798 = vadd.f32 %v797, %v597
  %v799 = vadd.f32 %v798, %v602
  %v800 = vadd.f32 %v799, %v607
  %v801 = vadd.f32 %v800, %v612
  %v802 = vadd.f32 %v801, %v617
  %v803 = vadd.f32 %v802, %v622
  %v804 = vadd.f32 %v803, %v627
  %v805 = vadd.f32 %v804, %v632
  %v806 = vadd.f32 %v805, %v637
  %v807 = vadd.f32 %v806, %v642
  %v808 = vadd.f32 %v807, %v647
  %v809 = vadd.f32 %v808, %v652
  %v810 = vadd.f32 %v809, %v657
  %v811 = vadd.f32 %v810, %v662
  %v812 = vadd.f32 %v811, %v667
  %v813 = vadd.f32 %v812, %v672
  %v814 = vadd.f32 %v813, %v677
  %v815 = vadd.f32 %v814, %v682
  %v816 = vadd.f32 %v815, %v687
  %v817 = vrot.slane %v816, 4
  %v818 = vadd.f32 %v816, %v817
  %v819 = vrot.slane %v818, 2
  %v820 = vadd.f32 %v818, %v819
  %v821 = vrot.slane %v820, 1
  %v822 = vadd.f32 %v820, %v821
  %v823 = vmul.f32 %v372, %v372
  %v824 = vmul.f32 %v377, %v377
  %v825 = vmul.f32 %v382, %v382
  %v826 = vmul.f32 %v387, %v387
  %v827 = vmul.f32 %v392, %v392
  %v828 = vmul.f32 %v397, %v397
  %v829 = vmul.f32 %v402, %v402
  %v830 = vmul.f32 %v407, %v407
  %v831 = vmul.f32 %v412, %v412
  %v832 = vmul.f32 %v417, %v417
  %v833 = vmul.f32 %v422, %v422
  %v834 = vmul.f32 %v427, %v427
  %v835 = vmul.f32 %v432, %v432
  %v836 = vmul.f32 %v437, %v437
  %v837 = vmul.f32 %v442, %v442
  %v838 = vmul.f32 %v447, %v447
  %v839 = vmul.f32 %v452, %v452
  %v840 = vmul.f32 %v457, %v457
  %v841 = vmul.f32 %v462, %v462
  %v842 = vmul.f32 %v467, %v467
  %v843 = vmul.f32 %v472, %v472
  %v844 = vmul.f32 %v477, %v477
  %v845 = vmul.f32 %v482, %v482
  %v846 = vmul.f32 %v487, %v487
  %v847 = vmul.f32 %v492, %v492
  %v848 = vmul.f32 %v497, %v497
  %v849 = vmul.f32 %v502, %v502
  %v850 = vmul.f32 %v507, %v507
  %v851 = vmul.f32 %v512, %v512
  %v852 = vmul.f32 %v517, %v517
  %v853 = vmul.f32 %v522, %v522
  %v854 = vmul.f32 %v527, %v527
  %v855 = vmul.f32 %v532, %v532
  %v856 = vmul.f32 %v537, %v537
  %v857 = vmul.f32 %v542, %v542
  %v858 = vmul.f32 %v547, %v547
  %v859 = vmul.f32 %v552, %v552
  %v860 = vmul.f32 %v557, %v557
  %v861 = vmul.f32 %v562, %v562
  %v862 = vmul.f32 %v567, %v567
  %v863 = vmul.f32 %v572, %v572
  %v864 = vmul.f32 %v577, %v577
  %v865 = vmul.f32 %v582, %v582
  %v866 = vmul.f32 %v587, %v587
  %v867 = vmul.f32 %v592, %v592
  %v868 = vmul.f32 %v597, %v597
  %v869 = vmul.f32 %v602, %v602
  %v870 = vmul.f32 %v607, %v607
  %v871 = vmul.f32 %v612, %v612
  %v872 = vmul.f32 %v617, %v617
  %v873 = vmul.f32 %v622, %v622
  %v874 = vmul.f32 %v627, %v627
  %v875 = vmul.f32 %v632, %v632
  %v876 = vmul.f32 %v637, %v637
  %v877 = vmul.f32 %v642, %v642
  %v878 = vmul.f32 %v647, %v647
  %v879 = vmul.f32 %v652, %v652
  %v880 = vmul.f32 %v657, %v657
  %v881 = vmul.f32 %v662, %v662
  %v882 = vmul.f32 %v667, %v667
  %v883 = vmul.f32 %v672, %v672
  %v884 = vmul.f32 %v677, %v677
  %v885 = vmul.f32 %v682, %v682
  %v886 = vmul.f32 %v687, %v687
  %v887 = vadd.f32 %v823, %v824
  %v888 = vadd.f32 %v887, %v825
  %v889 = vadd.f32 %v888, %v826
  %v890 = vadd.f32 %v889, %v827
  %v891 = vadd.f32 %v890, %v828
  %v892 = vadd.f32 %v891, %v829
  %v893 = vadd.f32 %v892, %v830
  %v894 = vadd.f32 %v893, %v831
  %v895 = vadd.f32 %v894, %v832
  %v896 = vadd.f32 %v895, %v833
  %v897 = vadd.f32 %v896, %v834
  %v898 = vadd.f32 %v897, %v835
  %v899 = vadd.f32 %v898, %v836
  %v900 = vadd.f32 %v899, %v837
  %v901 = vadd.f32 %v900, %v838
  %v902 = vadd.f32 %v901, %v839
  %v903 = vadd.f32 %v902, %v840
  %v904 = vadd.f32 %v903, %v841
  %v905 = vadd.f32 %v904, %v842
  %v906 = vadd.f32 %v905, %v843
  %v907 = vadd.f32 %v906, %v844
  %v908 = vadd.f32 %v907, %v845
  %v909 = vadd.f32 %v908, %v846
  %v910 = vadd.f32 %v909, %v847
  %v911 = vadd.f32 %v910, %v848
  %v912 = vadd.f32 %v911, %v849
  %v913 = vadd.f32 %v912, %v850
  %v914 = vadd.f32 %v913, %v851
  %v915 = vadd.f32 %v914, %v852
  %v916 = vadd.f32 %v915, %v853
  %v917 = vadd.f32 %v916, %v854
  %v918 = vadd.f32 %v917, %v855
  %v919 = vadd.f32 %v918, %v856
  %v920 = vadd.f32 %v919, %v857
  %v921 = vadd.f32 %v920, %v858
  %v922 = vadd.f32 %v921, %v859
  %v923 = vadd.f32 %v922, %v860
  %v924 = vadd.f32 %v923, %v861
  %v925 = vadd.f32 %v924, %v862
  %v926 = vadd.f32 %v925, %v863
  %v927 = vadd.f32 %v926, %v864
  %v928 = vadd.f32 %v927, %v865
  %v929 = vadd.f32 %v928, %v866
  %v930 = vadd.f32 %v929, %v867
  %v931 = vadd.f32 %v930, %v868
  %v932 = vadd.f32 %v931, %v869
  %v933 = vadd.f32 %v932, %v870
  %v934 = vadd.f32 %v933, %v871
  %v935 = vadd.f32 %v934, %v872
  %v936 = vadd.f32 %v935, %v873
  %v937 = vadd.f32 %v936, %v874
  %v938 = vadd.f32 %v937, %v875
  %v939 = vadd.f32 %v938, %v876
  %v940 = vadd.f32 %v939, %v877
  %v941 = vadd.f32 %v940, %v878
  %v942 = vadd.f32 %v941, %v879
  %v943 = vadd.f32 %v942, %v880
  %v944 = vadd.f32 %v943, %v881
  %v945 = vadd.f32 %v944, %v882
  %v946 = vadd.f32 %v945, %v883
  %v947 = vadd.f32 %v946, %v884
  %v948 = vadd.f32 %v947, %v885
  %v949 = vadd.f32 %v948, %v886
  %v950 = vrot.slane %v949, 4
  %v951 = vadd.f32 %v949, %v950
  %v952 = vrot.slane %v951, 2
  %v953 = vadd.f32 %v951, %v952
  %v954 = vrot.slane %v953, 1
  %v955 = vadd.f32 %v953, %v954
  %vm956 = vcmask 1040384
  %v957 = vsel %vm956, %v822, %v955
  %958 = vst [vmem:[%s5] sm:$0x3] %v957
  // Predicated region
  $region18: #{bottleneck_forward_nhwc.6} parent=0 // pred_check
    _
  $region19: #{bottleneck_forward_nhwc.6} parent=0 // pred_check_branch
    %960 = sbr.rel (0) target = $region21
  $region20: #{bottleneck_forward_nhwc.6} parent=0 // pred_region
    _
  $region21: #{bottleneck_forward_nhwc.6} parent=0 // pred_fallthru
    _
  // Predicated region
  $region22: #{bottleneck_forward_nhwc.6} parent=0 // pred_check
    _
  $region23: #{bottleneck_forward_nhwc.6} parent=0 // pred_check_branch
    %962 = sbr.rel (0) target = $region25
  $region24: #{bottleneck_forward_nhwc.6} parent=0 // pred_region
    _
  $region25: #{bottleneck_forward_nhwc.6} parent=0 // pred_fallthru
    _
  // Predicated region
  $region26: #{bottleneck_forward_nhwc.6} parent=0 // pred_check
    _
  $region27: #{bottleneck_forward_nhwc.6} parent=0 // pred_check_branch
    %964 = sbr.rel (0) target = $region29
  $region28: #{bottleneck_forward_nhwc.6} parent=0 // pred_region
    _
  $region29: #{bottleneck_forward_nhwc.6} parent=0 // pred_fallthru
    _
  // Predicated region
  $region30: #{bottleneck_forward_nhwc.6} parent=0 // pred_check
    _
  $region31: #{bottleneck_forward_nhwc.6} parent=0 // pred_check_branch
    %966 = sbr.rel (0) target = $region33
  $region32: #{bottleneck_forward_nhwc.6} parent=0 // pred_region
    _
  $region33: #{bottleneck_forward_nhwc.6} parent=0 // pred_fallthru
    _

// kernel: bottleneck_forward_nhwc.5
$region0: #{bottleneck_forward_nhwc.5}
  #allocation0 [shape = 'u32[]', space=smem, size = 0x4, offset = 0x4, fixed_abs, tag = 'smem constant byte address 0x4 - core index']
  #allocation1 [shape = 'u32[144,128]{1,0:T(1,128)}', space=vmem, size = 0x12000, scoped, tag = 'internal scratch']
  #allocation2 [shape = 'f32[10,18,128]{2,1,0:T(8,128)}', space=vmem, size = 0x1e000, scoped, tag = 'scratch operand']
  #allocation3 [shape = 'f32[10,16,384]{2,1,0:T(8,128)}', space=vmem, size = 0x3c000, scoped, tag = 'scratch operand']
  #allocation4 [shape = 'f32[128,128]{1,0:T(8,128)}', space=vmem, size = 0x10000, scoped, tag = 'scratch operand']
  %s0 = inlined_call_operand.vmem [shape: f32[2,16,16,128], index: 0, kind: input, shape index: {}]
  %s1 = inlined_call_operand.vmem [shape: f32[1,128], index: 1, kind: input, shape index: {}]
  %s2 = inlined_call_operand.vmem [shape: f32[1,128], index: 2, kind: input, shape index: {}]
  %s3 = inlined_call_operand.vmem [shape: f32[3,384,128], index: 3, kind: input, shape index: {}]
  %s4 = inlined_call_operand.vmem [shape: f32[2,16,16,128], index: 4, kind: output, shape index: {0}]
  %s5 = inlined_call_operand.vmem [shape: f32[4,2,128], index: 5, kind: output, shape index: {1}]
  %6 = xla_tuple %s4, %s5
  %s7 = sld [smem:[#allocation0]]
  $region57: #{bottleneck_forward_nhwc.5} parent=0
    _
  %s9 = ssub.s32 1, %s7
  %s10 = scalar_select 0, %s9, %s7
  loop: start=0, step=1, limit=6
  $region2: #{bottleneck_forward_nhwc.5} parent=0 // loop_pre_header
    _
  $region3: #{bottleneck_forward_nhwc.5} parent=0 // loop_header
    %s12 = sphi 0, %s16
    %p13 = scmp.ge.s32.totalorder %s12, 6
    %s19 = sphi 0, %s31
    %s20 = sphi 0, %s27
    %s21 = sphi 0, %s19
    %s22 = sphi 0, %s20
    %s23 = sphi 0, %s21
    %s24 = sphi 0, %s22
    %s34 = sphi 0, %s36
    %s37 = sphi 0, %s34
    %s38 = sphi 0, %s37
    %s54 = sphi 0, %s38
    %s58 = sphi 0, %s58
    %s60 = sphi 0, %s58
    %s61 = sphi 0, %s60
    %s75 = sphi 0, %s61
    %s79 = sphi 0, %s79
    %s81 = sphi 0, %s79
    %s82 = sphi 0, %s81
    %s96 = sphi 0, %s82
    %s100 = sphi 0, %s100
    %s102 = sphi 0, %s100
    %s103 = sphi 0, %s102
    %s117 = sphi 0, %s103
    %s125 = sphi 0, %s127
    %s128 = sphi 0, %s125
    %s129 = sphi 0, %s128
    %s145 = sphi 0, %s129
    %s155 = sphi 0, %s157
    %s158 = sphi 0, %s155
    %s159 = sphi 0, %s158
    %s175 = sphi 0, %s159
  $region4: #{bottleneck_forward_nhwc.5} parent=0 // loop_header_branch
    %15 = sbr.rel (%p13) target = $region8
  $region5: #{bottleneck_forward_nhwc.5} parent=0 // loop_body
    %s17 = ssub.s32 %s12, 1
    %s18 = ssub.s32 %s12, 2
    %s25 = sadd.s32 1, %s20
    %p26 = scmp.ge.s32.totalorder %s25, 2
    %s27 = scalar_select %p26, 0, %s25
    %s28 = sadd.s32 1, %s19
    %s29 = scalar_select %p26, %s28, %s19
    %p30 = scmp.ge.s32.totalorder %s29, 2
    %s31 = scalar_select %p30, 0, %s29
    %s32 = ssub.s32 %s19, %s31
    %p33 = scmp.eq.s32.totalorder %s32, 0
    %s35 = sadd.s32 %s34, 1
    %s36 = scalar_select %p33, %s34, %s35
    %p39 = pneg %p33
    %p40 = scmp.eq.s32.totalorder %s12, 3
    %p41 = por %p39, %p40
    %p42 = scmp.ne.s32.totalorder %s34, %s37
    %p43 = scmp.eq.s32.totalorder %s12, 0
    %p44 = por %p42, %p43
    %p45 = scmp.ne.s32.totalorder %s34, %s37
    %p46 = scmp.eq.s32.totalorder %s17, 3
    %p47 = por %p45, %p46
    %p48 = scmp.ne.s32.totalorder %s37, %s38
    %p49 = scmp.eq.s32.totalorder %s17, 0
    %p50 = por %p48, %p49
    %p51 = scmp.ne.s32.totalorder %s37, %s38
    %p52 = scmp.eq.s32.totalorder %s18, 3
    %p53 = por %p51, %p52
    %p55 = scmp.ne.s32.totalorder %s38, %s54
    %p56 = scmp.eq.s32.totalorder %s18, 0
    %p57 = por %p55, %p56
    %s59 = sadd.s32 %s58, 1
    %p62 = scmp.eq.s32.totalorder %s12, 3
    %p63 = scmp.ne.s32.totalorder %s58, %s60
    %p64 = scmp.eq.s32.totalorder %s12, 0
    %p65 = por %p63, %p64
    %p66 = scmp.ne.s32.totalorder %s58, %s60
    %p67 = scmp.eq.s32.totalorder %s17, 3
    %p68 = por %p66, %p67
    %p69 = scmp.ne.s32.totalorder %s60, %s61
    %p70 = scmp.eq.s32.totalorder %s17, 0
    %p71 = por %p69, %p70
    %p72 = scmp.ne.s32.totalorder %s60, %s61
    %p73 = scmp.eq.s32.totalorder %s18, 3
    %p74 = por %p72, %p73
    %p76 = scmp.ne.s32.totalorder %s61, %s75
    %p77 = scmp.eq.s32.totalorder %s18, 0
    %p78 = por %p76, %p77
    %s80 = sadd.s32 %s79, 1
    %p83 = scmp.eq.s32.totalorder %s12, 3
    %p84 = scmp.ne.s32.totalorder %s79, %s81
    %p85 = scmp.eq.s32.totalorder %s12, 0
    %p86 = por %p84, %p85
    %p87 = scmp.ne.s32.totalorder %s79, %s81
    %p88 = scmp.eq.s32.totalorder %s17, 3
    %p89 = por %p87, %p88
    %p90 = scmp.ne.s32.totalorder %s81, %s82
    %p91 = scmp.eq.s32.totalorder %s17, 0
    %p92 = por %p90, %p91
    %p93 = scmp.ne.s32.totalorder %s81, %s82
    %p94 = scmp.eq.s32.totalorder %s18, 3
    %p95 = por %p93, %p94
    %p97 = scmp.ne.s32.totalorder %s82, %s96
    %p98 = scmp.eq.s32.totalorder %s18, 0
    %p99 = por %p97, %p98
    %s101 = sadd.s32 %s100, 1
    %p104 = scmp.eq.s32.totalorder %s12, 3
    %p105 = scmp.ne.s32.totalorder %s100, %s102
    %p106 = scmp.eq.s32.totalorder %s12, 0
    %p107 = por %p105, %p106
    %p108 = scmp.ne.s32.totalorder %s100, %s102
    %p109 = scmp.eq.s32.totalorder %s17, 3
    %p110 = por %p108, %p109
    %p111 = scmp.ne.s32.totalorder %s102, %s103
    %p112 = scmp.eq.s32.totalorder %s17, 0
    %p113 = por %p111, %p112
    %p114 = scmp.ne.s32.totalorder %s102, %s103
    %p115 = scmp.eq.s32.totalorder %s18, 3
    %p116 = por %p114, %p115
    %p118 = scmp.ne.s32.totalorder %s103, %s117
    %p119 = scmp.eq.s32.totalorder %s18, 0
    %p120 = por %p118, %p119
    %s121 = ssub.s32 %s19, %s31
    %s122 = ssub.s32 %s20, %s27
    %s123 = sor.u32 %s121, %s122
    %p124 = scmp.eq.s32.totalorder %s123, 0
    %s126 = sadd.s32 %s125, 1
    %s127 = scalar_select %p124, %s125, %s126
    %p130 = pneg %p124
    %p131 = scmp.eq.s32.totalorder %s12, 3
    %p132 = por %p130, %p131
    %p133 = scmp.ne.s32.totalorder %s125, %s128
    %p134 = scmp.eq.s32.totalorder %s12, 0
    %p135 = por %p133, %p134
    %p136 = scmp.ne.s32.totalorder %s125, %s128
    %p137 = scmp.eq.s32.totalorder %s17, 3
    %p138 = por %p136, %p137
    %p139 = scmp.ne.s32.totalorder %s128, %s129
    %p140 = scmp.eq.s32.totalorder %s17, 0
    %p141 = por %p139, %p140
    %p142 = scmp.ne.s32.totalorder %s128, %s129
    %p143 = scmp.eq.s32.totalorder %s18, 3
    %p144 = por %p142, %p143
    %p146 = scmp.ne.s32.totalorder %s129, %s145
    %p147 = scmp.eq.s32.totalorder %s18, 0
    %p148 = por %p146, %p147
    %s149 = smul.u32 %s19, 2
    %s150 = sadd.s32 %s149, %s20
    %s151 = smul.u32 %s31, 2
    %s152 = sadd.s32 %s151, %s27
    %s153 = ssub.s32 %s150, %s152
    %p154 = scmp.eq.s32.totalorder %s153, 0
    %s156 = sadd.s32 %s155, 1
    %s157 = scalar_select %p154, %s155, %s156
    %p160 = pneg %p154
    %p161 = scmp.eq.s32.totalorder %s12, 3
    %p162 = por %p160, %p161
    %p163 = scmp.ne.s32.totalorder %s155, %s158
    %p164 = scmp.eq.s32.totalorder %s12, 0
    %p165 = por %p163, %p164
    %p166 = scmp.ne.s32.totalorder %s155, %s158
    %p167 = scmp.eq.s32.totalorder %s17, 3
    %p168 = por %p166, %p167
    %p169 = scmp.ne.s32.totalorder %s158, %s159
    %p170 = scmp.eq.s32.totalorder %s17, 0
    %p171 = por %p169, %p170
    %p172 = scmp.ne.s32.totalorder %s158, %s159
    %p173 = scmp.eq.s32.totalorder %s18, 3
    %p174 = por %p172, %p173
    %p176 = scmp.ne.s32.totalorder %s159, %s175
    %p177 = scmp.eq.s32.totalorder %s18, 0
    %p178 = por %p176, %p177
    %p179 = scmp.le.s32.totalorder 1, %s12
    %p180 = scmp.lt.s32.totalorder %s12, 5
    %p181 = pnand %p179, %p180
    %p182 = pneg %p181
    // Predicated region
    $region9: #{bottleneck_forward_nhwc.5} parent=5 // pred_check
      _
    $region10: #{bottleneck_forward_nhwc.5} parent=5 // pred_check_branch
      %184 = sbr.rel (%p181) target = $region12
    $region11: #{bottleneck_forward_nhwc.5} parent=5 // pred_region
      %s185 = ssub.s32 %s12, 1
      // Predicated region
      $region13: #{bottleneck_forward_nhwc.5} parent=11 // pred_check
        %p186 = pneg %p71
      $region14: #{bottleneck_forward_nhwc.5} parent=11 // pred_check_branch
        %188 = sbr.rel (%p186) target = $region16
      $region15: #{bottleneck_forward_nhwc.5} parent=11 // pred_region
        _
      $region16: #{bottleneck_forward_nhwc.5} parent=11 // pred_fallthru
        _
      // Predicated region
      $region17: #{bottleneck_forward_nhwc.5} parent=11 // pred_check
        %p189 = pneg %p92
      $region18: #{bottleneck_forward_nhwc.5} parent=11 // pred_check_branch
        %191 = sbr.rel (%p189) target = $region20
      $region19: #{bottleneck_forward_nhwc.5} parent=11 // pred_region
        _
      $region20: #{bottleneck_forward_nhwc.5} parent=11 // pred_fallthru
        _
      // Predicated region
      $region21: #{bottleneck_forward_nhwc.5} parent=11 // pred_check
        %p192 = pneg %p113
      $region22: #{bottleneck_forward_nhwc.5} parent=11 // pred_check_branch
        %194 = sbr.rel (%p192) target = $region24
      $region23: #{bottleneck_forward_nhwc.5} parent=11 // pred_region
        _
      $region24: #{bottleneck_forward_nhwc.5} parent=11 // pred_fallthru
        _
    $region12: #{bottleneck_forward_nhwc.5} parent=5 // pred_fallthru
      _
    %p195 = scmp.lt.s32.totalorder %s12, 4
    // Predicated region
    $region25: #{bottleneck_forward_nhwc.5} parent=5 // pred_check
      %p196 = pneg %p195
    $region26: #{bottleneck_forward_nhwc.5} parent=5 // pred_check_branch
      %198 = sbr.rel (%p196) target = $region28
    $region27: #{bottleneck_forward_nhwc.5} parent=5 // pred_region
      // Predicated region
      $region29: #{bottleneck_forward_nhwc.5} parent=27 // pred_check
        %p199 = pneg %p44
      $region30: #{bottleneck_forward_nhwc.5} parent=27 // pred_check_branch
        %201 = sbr.rel (%p199) target = $region32
      $region31: #{bottleneck_forward_nhwc.5} parent=27 // pred_region
        %p202 = scmp.lt.s32.totalorder %s19, 1
        %s203 = scalar_select %p202, %s19, 1
        %s204 = smul.addr %s203, 32
        %s205 = smul.addr %s204, 8
        %s206 = scalar_lea.vmem %s0, %s205
      $region32: #{bottleneck_forward_nhwc.5} parent=27 // pred_fallthru
        _
    $region28: #{bottleneck_forward_nhwc.5} parent=5 // pred_fallthru
      _
    %p207 = scmp.le.s32.totalorder 1, %s12
    %p208 = scmp.lt.s32.totalorder %s12, 5
    %p209 = pnand %p207, %p208
    %p210 = pneg %p209
    // Predicated region
    $region33: #{bottleneck_forward_nhwc.5} parent=5 // pred_check
      _
    $region34: #{bottleneck_forward_nhwc.5} parent=5 // pred_check_branch
      %212 = sbr.rel (%p209) target = $region36
    $region35: #{bottleneck_forward_nhwc.5} parent=5 // pred_region
      %s213 = ssub.s32 %s12, 1
      %p214 = scmp.lt.s32.totalorder %s21, 1
      %s215 = scalar_select %p214, %s21, 1
      %s216 = smul.addr %s215, 32
      %s217 = smul.addr %s216, 8
      %s218 = scalar_lea.vmem %s0, %s217
      %p219 = pneg %p50
      %p220 = pneg %p47
      %p221 = pneg %p71
      %p222 = pneg %p68
      %p223 = pneg %p92
      %p224 = pneg %p89
      %p225 = pneg %p113
      %p226 = pneg %p110
      %p227 = pneg %p141
      %p228 = pneg %p138
      %s229 = smul.u32 8, %s22
      %p230 = scmp.lt.s32.totalorder %s21, 1
      %s231 = scalar_select %p230, %s21, 1
      %p232 = scmp.lt.s32.totalorder %s229, 15
      %s233 = scalar_select %p232, %s229, 15
      %s234 = smul.addr %s233, 2
      %s235 = smul.addr %s231, 32
      %s236 = sadd.s32 %s234, %s235
      %s237 = smul.addr %s236, 8
      %s238 = scalar_lea.vmem %s4, %s237
      %p239 = pneg %p171
      %p240 = pneg %p168
      %s241 = smul.u32 %s21, 2
      %s242 = sadd.s32 %s241, %s22
      %p243 = scmp.lt.s32.totalorder %s242, 3
      %s244 = scalar_select %p243, %s242, 3
      %s245 = smul.addr %s244, 2
      %s246 = scalar_lea.vmem %s5, %s245
      %p247 = scmp.lt.s32.totalorder %s21, 1
      %s248 = scalar_select %p247, %s21, 1
      %s249 = smul.addr %s248, 32
      %s250 = smul.addr %s249, 8
      %s251 = scalar_lea.vmem %s0, %s250
      %s252 = smul.u32 8, %s22
      %p253 = scmp.lt.s32.totalorder %s21, 1
      %s254 = scalar_select %p253, %s21, 1
      %p255 = scmp.lt.s32.totalorder %s252, 15
      %s256 = scalar_select %p255, %s252, 15
      %s257 = smul.addr %s256, 2
      %s258 = smul.addr %s254, 32
      %s259 = sadd.s32 %s257, %s258
      %s260 = smul.addr %s259, 8
      %s261 = scalar_lea.vmem %s4, %s260
      %s262 = smul.u32 8, %s22
      %s263 = smul.u32 %s21, 2
      %s264 = sadd.s32 %s263, %s22
      %p265 = scmp.lt.s32.totalorder %s264, 3
      %s266 = scalar_select %p265, %s264, 3
      %s267 = smul.addr %s266, 2
      %s268 = scalar_lea.vmem %s5, %s267
      %s269 = smul.u32 %s21, 2
      %s270 = sadd.s32 %s269, %s22
      %v271 = vld [vmem:[%s1] sm:$0x1]
      %v272 = vld [vmem:[%s2] sm:$0x1]
      %273 = vst [vmem:[#allocation2] sm:$0x1] 0.0
      %274 = vst [vmem:[#allocation2 + $0x18] sm:$0x1] 0.0
      %275 = vst [vmem:[#allocation2 + $0x30] sm:$0x1] 0.0
      %276 = vst [vmem:[#allocation2 + $0x48] sm:$0x1] 0.0
      %277 = vst [vmem:[#allocation2 + $0x60] sm:$0x1] 0.0
      %278 = vst [vmem:[#allocation2 + $0x78] sm:$0x1] 0.0
      %279 = vst [vmem:[#allocation2 + $0x90] sm:$0x1] 0.0
      %280 = vst [vmem:[#allocation2 + $0xa8] sm:$0x1] 0.0
      %281 = vst [vmem:[#allocation2 + $0xc0] sm:$0x1] 0.0
      %282 = vst [vmem:[#allocation2 + $0xd8] sm:$0x1] 0.0
      %283 = vst [vmem:[#allocation2 + $0x11] sm:$0x1] 0.0
      %284 = vst [vmem:[#allocation2 + $0x29] sm:$0x1] 0.0
      %285 = vst [vmem:[#allocation2 + $0x41] sm:$0x1] 0.0
      %286 = vst [vmem:[#allocation2 + $0x59] sm:$0x1] 0.0
      %287 = vst [vmem:[#allocation2 + $0x71] sm:$0x1] 0.0
      %288 = vst [vmem:[#allocation2 + $0x89] sm:$0x1] 0.0
      %289 = vst [vmem:[#allocation2 + $0xa1] sm:$0x1] 0.0
      %290 = vst [vmem:[#allocation2 + $0xb9] sm:$0x1] 0.0
      %291 = vst [vmem:[#allocation2 + $0xd1] sm:$0x1] 0.0
      %292 = vst [vmem:[#allocation2 + $0xe9] sm:$0x1] 0.0
      %s293 = smul.u32 %s22, 8
      %s294 = smul.u32 %s293, 16
      %s295 = scalar_lea.vmem %s251, %s294
      %v296 = vld [vmem:[%s295] sm:$0xff]
      %v297 = vld [vmem:[%s295 + $0x8] sm:$0xff]
      %v298 = vld [vmem:[%s295 + $0x10] sm:$0xff]
      %v299 = vld [vmem:[%s295 + $0x18] sm:$0xff]
      %v300 = vld [vmem:[%s295 + $0x20] sm:$0xff]
      %v301 = vld [vmem:[%s295 + $0x28] sm:$0xff]
      %v302 = vld [vmem:[%s295 + $0x30] sm:$0xff]
      %v303 = vld [vmem:[%s295 + $0x38] sm:$0xff]
      %v304 = vld [vmem:[%s295 + $0x40] sm:$0xff]
      %v305 = vld [vmem:[%s295 + $0x48] sm:$0xff]
      %v306 = vld [vmem:[%s295 + $0x50] sm:$0xff]
      %v307 = vld [vmem:[%s295 + $0x58] sm:$0xff]
      %v308 = vld [vmem:[%s295 + $0x60] sm:$0xff]
      %v309 = vld [vmem:[%s295 + $0x68] sm:$0xff]
      %v310 = vld [vmem:[%s295 + $0x70] sm:$0xff]
      %v311 = vld [vmem:[%s295 + $0x78] sm:$0xff]
      %v313 = vlaneseq
      %v314 = vshrl.u32 %v313, 7
      %v315 = vsub.s32 0, %v314
      %v316 = vrot.slane %v271, %v315
      %v318 = vmul.f32 %v296, %v316
      %v319 = vmul.f32 %v297, %v316
      %v320 = vmul.f32 %v298, %v316
      %v321 = vmul.f32 %v299, %v316
      %v322 = vmul.f32 %v300, %v316
      %v323 = vmul.f32 %v301, %v316
      %v324 = vmul.f32 %v302, %v316
      %v325 = vmul.f32 %v303, %v316
      %v326 = vmul.f32 %v304, %v316
      %v327 = vmul.f32 %v305, %v316
      %v328 = vmul.f32 %v306, %v316
      %v329 = vmul.f32 %v307, %v316
      %v330 = vmul.f32 %v308, %v316
      %v331 = vmul.f32 %v309, %v316
      %v332 = vmul.f32 %v310, %v316
      %v333 = vmul.f32 %v311, %v316
      %v335 = vlaneseq
      %v336 = vshrl.u32 %v335, 7
      %v337 = vsub.s32 0, %v336
      %v338 = vrot.slane %v272, %v337
      %v340 = vadd.f32 %v318, %v338
      %v341 = vadd.f32 %v319, %v338
      %v342 = vadd.f32 %v320, %v338
      %v343 = vadd.f32 %v321, %v338
      %v344 = vadd.f32 %v322, %v338
      %v345 = vadd.f32 %v323, %v338
      %v346 = vadd.f32 %v324, %v338
      %v347 = vadd.f32 %v325, %v338
      %v348 = vadd.f32 %v326, %v338
      %v349 = vadd.f32 %v327, %v338
      %v350 = vadd.f32 %v328, %v338
      %v351 = vadd.f32 %v329, %v338
      %v352 = vadd.f32 %v330, %v338
      %v353 = vadd.f32 %v331, %v338
      %v354 = vadd.f32 %v332, %v338
      %v355 = vadd.f32 %v333, %v338
      %v356 = vmax.f32 %v340, 0.0
      %v357 = vmax.f32 %v341, 0.0
      %v358 = vmax.f32 %v342, 0.0
      %v359 = vmax.f32 %v343, 0.0
      %v360 = vmax.f32 %v344, 0.0
      %v361 = vmax.f32 %v345, 0.0
      %v362 = vmax.f32 %v346, 0.0
      %v363 = vmax.f32 %v347, 0.0
      %v364 = vmax.f32 %v348, 0.0
      %v365 = vmax.f32 %v349, 0.0
      %v366 = vmax.f32 %v350, 0.0
      %v367 = vmax.f32 %v351, 0.0
      %v368 = vmax.f32 %v352, 0.0
      %v369 = vmax.f32 %v353, 0.0
      %v370 = vmax.f32 %v354, 0.0
      %v371 = vmax.f32 %v355, 0.0
      %s372 = scalar_lea.vmem [#allocation2], 24
      %373 = vst [vmem:[%s372 + $0x1] sm:$0xff] %v356
      %374 = vst [vmem:[%s372 + $0x9] sm:$0xff] %v357
      %375 = vst [vmem:[%s372 + $0x19] sm:$0xff] %v358
      %376 = vst [vmem:[%s372 + $0x21] sm:$0xff] %v359
      %377 = vst [vmem:[%s372 + $0x31] sm:$0xff] %v360
      %378 = vst [vmem:[%s372 + $0x39] sm:$0xff] %v361
      %379 = vst [vmem:[%s372 + $0x49] sm:$0xff] %v362
      %380 = vst [vmem:[%s372 + $0x51] sm:$0xff] %v363
      %381 = vst [vmem:[%s372 + $0x61] sm:$0xff] %v364
      %382 = vst [vmem:[%s372 + $0x69] sm:$0xff] %v365
      %383 = vst [vmem:[%s372 + $0x79] sm:$0xff] %v366
      %384 = vst [vmem:[%s372 + $0x81] sm:$0xff] %v367
      %385 = vst [vmem:[%s372 + $0x91] sm:$0xff] %v368
      %386 = vst [vmem:[%s372 + $0x99] sm:$0xff] %v369
      %387 = vst [vmem:[%s372 + $0xa9] sm:$0xff] %v370
      %388 = vst [vmem:[%s372 + $0xb1] sm:$0xff] %v371
      %s389 = ssub.s32 %s293, 1
      %p390 = scmp.gt.s32.totalorder %s389, 0
      %s391 = scalar_select %p390, %s389, 0
      %s392 = smul.u32 %s391, 16
      %s393 = scalar_lea.vmem %s251, %s392
      %v394 = vld [vmem:[%s393] sm:$0xff]
      %v395 = vld [vmem:[%s393 + $0x8] sm:$0xff]
      %v396 = vmul.f32 %v394, %v316
      %v397 = vmul.f32 %v395, %v316
      %v398 = vadd.f32 %v396, %v338
      %v399 = vadd.f32 %v397, %v338
      %v400 = vmax.f32 %v398, 0.0
      %v401 = vmax.f32 %v399, 0.0
      %p402 = scmp.gt.s32.totalorder %s22, 0
      %s403 = scalar_select %p402, 1, 0
      %v404 = vstv %s403
      %vm405 = vcmp.eq.s32.totalorder %v404, 1
      %v406 = vsel %vm405, %v400, 0.0
      %v407 = vsel %vm405, %v401, 0.0
      %408 = vst [vmem:[#allocation2 + $0x1] sm:$0xff] %v406
      %409 = vst [vmem:[#allocation2 + $0x9] sm:$0xff] %v407
      %s410 = sadd.s32 %s293, 8
      %p411 = scmp.lt.s32.totalorder %s410, 15
      %s412 = scalar_select %p411, %s410, 15
      %s413 = smul.u32 %s412, 16
      %s414 = scalar_lea.vmem %s251, %s413
      %v415 = vld [vmem:[%s414] sm:$0xff]
      %v416 = vld [vmem:[%s414 + $0x8] sm:$0xff]
      %v417 = vmul.f32 %v415, %v316
      %v418 = vmul.f32 %v416, %v316
      %v419 = vadd.f32 %v417, %v338
      %v420 = vadd.f32 %v418, %v338
      %v421 = vmax.f32 %v419, 0.0
      %v422 = vmax.f32 %v420, 0.0
      %p423 = scmp.lt.s32.totalorder %s22, 1
      %s424 = scalar_select %p423, 1, 0
      %v425 = vstv %s424
      %vm426 = vcmp.eq.s32.totalorder %v425, 1
      %v427 = vsel %vm426, %v421, 0.0
      %v428 = vsel %vm426, %v422, 0.0
      %s429 = scalar_lea.vmem [#allocation2], 216
      %430 = vst [vmem:[%s429 + $0x1] sm:$0xff] %v427
      %431 = vst [vmem:[%s429 + $0x9] sm:$0xff] %v428
      %v432 = vld [vmem:[#allocation2] sm:$0xff]
      %v433 = vld [vmem:[#allocation2 + $0x8] sm:$0xff]
      %v434 = vld [vmem:[#allocation2 + $0x18] sm:$0xff]
      %v435 = vld [vmem:[#allocation2 + $0x20] sm:$0xff]
      %v436 = vld [vmem:[#allocation2 + $0x30] sm:$0xff]
      %v437 = vld [vmem:[#allocation2 + $0x38] sm:$0xff]
      %v438 = vld [vmem:[#allocation2 + $0x48] sm:$0xff]
      %v439 = vld [vmem:[#allocation2 + $0x50] sm:$0xff]
      %v440 = vld [vmem:[#allocation2 + $0x60] sm:$0xff]
      %v441 = vld [vmem:[#allocation2 + $0x68] sm:$0xff]
      %v442 = vld [vmem:[#allocation2 + $0x78] sm:$0xff]
      %v443 = vld [vmem:[#allocation2 + $0x80] sm:$0xff]
      %v444 = vld [vmem:[#allocation2 + $0x90] sm:$0xff]
      %v445 = vld [vmem:[#allocation2 + $0x98] sm:$0xff]
      %v446 = vld [vmem:[#allocation2 + $0xa8] sm:$0xff]
      %v447 = vld [vmem:[#allocation2 + $0xb0] sm:$0xff]
      %v448 = vld [vmem:[#allocation2 + $0xc0] sm:$0xff]
      %v449 = vld [vmem:[#allocation2 + $0xc8] sm:$0xff]
      %v450 = vld [vmem:[#allocation2 + $0xd8] sm:$0xff]
      %v451 = vld [vmem:[#allocation2 + $0xe0] sm:$0xff]
      %452 = vst [vmem:[#allocation3] sm:$0xff] %v432
      %453 = vst [vmem:[#allocation3 + $0x18] sm:$0xff] %v433
      %454 = vst [vmem:[#allocation3 + $0x30] sm:$0xff] %v434
      %455 = vst [vmem:[#allocation3 + $0x48] sm:$0xff] %v435
      %456 = vst [vmem:[#allocation3 + $0x60] sm:$0xff] %v436
      %457 = vst [vmem:[#allocation3 + $0x78] sm:$0xff] %v437
      %458 = vst [vmem:[#allocation3 + $0x90] sm:$0xff] %v438
      %459 = vst [vmem:[#allocation3 + $0xa8] sm:$0xff] %v439
      %460 = vst [vmem:[#allocation3 + $0xc0] sm:$0xff] %v440
      %461 = vst [vmem:[#allocation3 + $0xd8] sm:$0xff] %v441
      %462 = vst [vmem:[#allocation3 + $0xf0] sm:$0xff] %v442
      %463 = vst [vmem:[#allocation3 + $0x108] sm:$0xff] %v443
      %464 = vst [vmem:[#allocation3 + $0x120] sm:$0xff] %v444
      %465 = vst [vmem:[#allocation3 + $0x138] sm:$0xff] %v445
      %466 = vst [vmem:[#allocation3 + $0x150] sm:$0xff] %v446
      %467 = vst [vmem:[#allocation3 + $0x168] sm:$0xff] %v447
      %468 = vst [vmem:[#allocation3 + $0x180] sm:$0xff] %v448
      %469 = vst [vmem:[#allocation3 + $0x198] sm:$0xff] %v449
      %470 = vst [vmem:[#allocation3 + $0x1b0] sm:$0xff] %v450
      %471 = vst [vmem:[#allocation3 + $0x1c8] sm:$0xff] %v451
      %v472 = vld [vmem:[#allocation2 + $0x1] sm:$0xff]
      %v473 = vld [vmem:[#allocation2 + $0x9] sm:$0xff]
      %v474 = vld [vmem:[#allocation2 + $0x19] sm:$0xff]
      %v475 = vld [vmem:[#allocation2 + $0x21] sm:$0xff]
      %v476 = vld [vmem:[#allocation2 + $0x31] sm:$0xff]
      %v477 = vld [vmem:[#allocation2 + $0x39] sm:$0xff]
      %v478 = vld [vmem:[#allocation2 + $0x49] sm:$0xff]
      %v479 = vld [vmem:[#allocation2 + $0x51] sm:$0xff]
      %v480 = vld [vmem:[#allocation2 + $0x61] sm:$0xff]
      %v481 = vld [vmem:[#allocation2 + $0x69] sm:$0xff]
      %v482 = vld [vmem:[#allocation2 + $0x79] sm:$0xff]
      %v483 = vld [vmem:[#allocation2 + $0x81] sm:$0xff]
      %v484 = vld [vmem:[#allocation2 + $0x91] sm:$0xff]
      %v485 = vld [vmem:[#allocation2 + $0x99] sm:$0xff]
      %v486 = vld [vmem:[#allocation2 + $0xa9] sm:$0xff]
      %v487 = vld [vmem:[#allocation2 + $0xb1] sm:$0xff]
      %v488 = vld [vmem:[#allocation2 + $0xc1] sm:$0xff]
      %v489 = vld [vmem:[#allocation2 + $0xc9] sm:$0xff]
      %v490 = vld [vmem:[#allocation2 + $0xd9] sm:$0xff]
      %v491 = vld [vmem:[#allocation2 + $0xe1] sm:$0xff]
      %492 = vst [vmem:[#allocation3 + $0x8] sm:$0xff] %v472
      %493 = vst [vmem:[#allocation3 + $0x20] sm:$0xff] %v473
      %494 = vst [vmem:[#allocation3 + $0x38] sm:$0xff] %v474
      %495 = vst [vmem:[#allocation3 + $0x50] sm:$0xff] %v475
      %496 = vst [vmem:[#allocation3 + $0x68] sm:$0xff] %v476
      %497 = vst [vmem:[#allocation3 + $0x80] sm:$0xff] %v477
      %498 = vst [vmem:[#allocation3 + $0x98] sm:$0xff] %v478
      %499 = vst [vmem:[#allocation3 + $0xb0] sm:$0xff] %v479
      %500 = vst [vmem:[#allocation3 + $0xc8] sm:$0xff] %v480
      %501 = vst [vmem:[#allocation3 + $0xe0] sm:$0xff] %v481
      %502 = vst [vmem:[#allocation3 + $0xf8] sm:$0xff] %v482
      %503 = vst [vmem:[#allocation3 + $0x110] sm:$0xff] %v483
      %504 = vst [vmem:[#allocation3 + $0x128] sm:$0xff] %v484
      %505 = vst [vmem:[#allocation3 + $0x140] sm:$0xff] %v485
      %506 = vst [vmem:[#allocation3 + $0x158] sm:$0xff] %v486
      %507 = vst [vmem:[#allocation3 + $0x170] sm:$0xff] %v487
      %508 = vst [vmem:[#allocation3 + $0x188] sm:$0xff] %v488
      %509 = vst [vmem:[#allocation3 + $0x1a0] sm:$0xff] %v489
      %510 = vst [vmem:[#allocation3 + $0x1b8] sm:$0xff] %v490
      %511 = vst [vmem:[#allocation3 + $0x1d0] sm:$0xff] %v491
      %v512 = vld [vmem:[#allocation2 + $0x2] sm:$0xff]
      %v513 = vld [vmem:[#allocation2 + $0xa] sm:$0xff]
      %v514 = vld [vmem:[#allocation2 + $0x1a] sm:$0xff]
      %v515 = vld [vmem:[#allocation2 + $0x22] sm:$0xff]
      %v516 = vld [vmem:[#allocation2 + $0x32] sm:$0xff]
      %v517 = vld [vmem:[#allocation2 + $0x3a] sm:$0xff]
      %v518 = vld [vmem:[#allocation2 + $0x4a] sm:$0xff]
      %v519 = vld [vmem:[#allocation2 + $0x52] sm:$0xff]
      %v520 = vld [vmem:[#allocation2 + $0x62] sm:$0xff]
      %v521 = vld [vmem:[#allocation2 + $0x6a] sm:$0xff]
      %v522 = vld [vmem:[#allocation2 + $0x7a] sm:$0xff]
      %v523 = vld [vmem:[#allocation2 + $0x82] sm:$0xff]
      %v524 = vld [vmem:[#allocation2 + $0x92] sm:$0xff]
      %v525 = vld [vmem:[#allocation2 + $0x9a] sm:$0xff]
      %v526 = vld [vmem:[#allocation2 + $0xaa] sm:$0xff]
      %v527 = vld [vmem:[#allocation2 + $0xb2] sm:$0xff]
      %v528 = vld [vmem:[#allocation2 + $0xc2] sm:$0xff]
      %v529 = vld [vmem:[#allocation2 + $0xca] sm:$0xff]
      %v530 = vld [vmem:[#allocation2 + $0xda] sm:$0xff]
      %v531 = vld [vmem:[#allocation2 + $0xe2] sm:$0xff]
      %532 = vst [vmem:[#allocation3 + $0x10] sm:$0xff] %v512
      %533 = vst [vmem:[#allocation3 + $0x28] sm:$0xff] %v513
      %534 = vst [vmem:[#allocation3 + $0x40] sm:$0xff] %v514
      %535 = vst [vmem:[#allocation3 + $0x58] sm:$0xff] %v515
      %536 = vst [vmem:[#allocation3 + $0x70] sm:$0xff] %v516
      %537 = vst [vmem:[#allocation3 + $0x88] sm:$0xff] %v517
      %538 = vst [vmem:[#allocation3 + $0xa0] sm:$0xff] %v518
      %539 = vst [vmem:[#allocation3 + $0xb8] sm:$0xff] %v519
      %540 = vst [vmem:[#allocation3 + $0xd0] sm:$0xff] %v520
      %541 = vst [vmem:[#allocation3 + $0xe8] sm:$0xff] %v521
      %542 = vst [vmem:[#allocation3 + $0x100] sm:$0xff] %v522
      %543 = vst [vmem:[#allocation3 + $0x118] sm:$0xff] %v523
      %544 = vst [vmem:[#allocation3 + $0x130] sm:$0xff] %v524
      %545 = vst [vmem:[#allocation3 + $0x148] sm:$0xff] %v525
      %546 = vst [vmem:[#allocation3 + $0x160] sm:$0xff] %v526
      %547 = vst [vmem:[#allocation3 + $0x178] sm:$0xff] %v527
      %548 = vst [vmem:[#allocation3 + $0x190] sm:$0xff] %v528
      %549 = vst [vmem:[#allocation3 + $0x1a8] sm:$0xff] %v529
      %550 = vst [vmem:[#allocation3 + $0x1c0] sm:$0xff] %v530
      %551 = vst [vmem:[#allocation3 + $0x1d8] sm:$0xff] %v531
      %v552 = vld [vmem:[#allocation3] sm:$0xff]
      %v553 = vld [vmem:[#allocation3 + $0x8] sm:$0xff]
      %v554 = vld [vmem:[#allocation3 + $0x10] sm:$0xff]
      %v555 = vld [vmem:[#allocation3 + $0x18] sm:$0xff]
      %v556 = vld [vmem:[#allocation3 + $0x20] sm:$0xff]
      %v557 = vld [vmem:[#allocation3 + $0x28] sm:$0xff]
      %v558 = vld [vmem:[#allocation3 + $0x30] sm:$0xff]
      %v559 = vld [vmem:[#allocation3 + $0x38] sm:$0xff]
      %v560 = vld [vmem:[#allocation3 + $0x40] sm:$0xff]
      %v561 = vld [vmem:[#allocation3 + $0x48] sm:$0xff]
      %v562 = vld [vmem:[#allocation3 + $0x50] sm:$0xff]
      %v563 = vld [vmem:[#allocation3 + $0x58] sm:$0xff]
      %v564 = vld [vmem:[#allocation3 + $0x60] sm:$0xff]
      %v565 = vld [vmem:[#allocation3 + $0x68] sm:$0xff]
      %v566 = vld [vmem:[#allocation3 + $0x70] sm:$0xff]
      %v567 = vld [vmem:[#allocation3 + $0x78] sm:$0xff]
      %v568 = vld [vmem:[#allocation3 + $0x80] sm:$0xff]
      %v569 = vld [vmem:[#allocation3 + $0x88] sm:$0xff]
      %v570 = vld [vmem:[#allocation3 + $0x90] sm:$0xff]
      %v571 = vld [vmem:[#allocation3 + $0x98] sm:$0xff]
      %v572 = vld [vmem:[#allocation3 + $0xa0] sm:$0xff]
      %v573 = vld [vmem:[#allocation3 + $0xa8] sm:$0xff]
      %v574 = vld [vmem:[#allocation3 + $0xb0] sm:$0xff]
      %v575 = vld [vmem:[#allocation3 + $0xb8] sm:$0xff]
      %v576 = vld [vmem:[#allocation3 + $0xc0] sm:$0xff]
      %v577 = vld [vmem:[#allocation3 + $0xc8] sm:$0xff]
      %v578 = vld [vmem:[#allocation3 + $0xd0] sm:$0xff]
      %v579 = vld [vmem:[#allocation3 + $0xd8] sm:$0xff]
      %v580 = vld [vmem:[#allocation3 + $0xe0] sm:$0xff]
      %v581 = vld [vmem:[#allocation3 + $0xe8] sm:$0xff]
      %v582 = vld [vmem:[#allocation3 + $0xf0] sm:$0xff]
      %v583 = vld [vmem:[#allocation3 + $0xf8] sm:$0xff]
      %v584 = vld [vmem:[#allocation3 + $0x100] sm:$0xff]
      %v585 = vld [vmem:[#allocation3 + $0x108] sm:$0xff]
      %v586 = vld [vmem:[#allocation3 + $0x110] sm:$0xff]
      %v587 = vld [vmem:[#allocation3 + $0x118] sm:$0xff]
      %v588 = vld [vmem:[#allocation3 + $0x120] sm:$0xff]
      %v589 = vld [vmem:[#allocation3 + $0x128] sm:$0xff]
      %v590 = vld [vmem:[#allocation3 + $0x130] sm:$0xff]
      %v591 = vld [vmem:[#allocation3 + $0x138] sm:$0xff]
      %v592 = vld [vmem:[#allocation3 + $0x140] sm:$0xff]
      %v593 = vld [vmem:[#allocation3 + $0x148] sm:$0xff]
      %v594 = vld [vmem:[#allocation3 + $0x150] sm:$0xff]
      %v595 = vld [vmem:[#allocation3 + $0x158] sm:$0xff]
      %v596 = vld [vmem:[#allocation3 + $0x160] sm:$0xff]
      %v597 = vld [vmem:[#allocation3 + $0x168] sm:$0xff]
      %v598 = vld [vmem:[#allocation3 + $0x170] sm:$0xff]
      %v599 = vld [vmem:[#allocation3 + $0x178] sm:$0xff]
      %v600 = vld [vmem:[%s3] sm:$0xff]
      %v601 = vld [vmem:[%s3 + $0x8] sm:$0xff]
      %v602 = vld [vmem:[%s3 + $0x10] sm:$0xff]
      %v603 = vld [vmem:[%s3 + $0x18] sm:$0xff]
      %v604 = vld [vmem:[%s3 + $0x20] sm:$0xff]
      %v605 = vld [vmem:[%s3 + $0x28] sm:$0xff]
      %v606 = vld [vmem:[%s3 + $0x30] sm:$0xff]
      %v607 = vld [vmem:[%s3 + $0x38] sm:$0xff]
      %v608 = vld [vmem:[%s3 + $0x40] sm:$0xff]
      %v609 = vld [vmem:[%s3 + $0x48] sm:$0xff]
      %v610 = vld [vmem:[%s3 + $0x50] sm:$0xff]
      %v611 = vld [vmem:[%s3 + $0x58] sm:$0xff]
      %v612 = vld [vmem:[%s3 + $0x60] sm:$0xff]
      %v613 = vld [vmem:[%s3 + $0x68] sm:$0xff]
      %v614 = vld [vmem:[%s3 + $0x70] sm:$0xff]
      %v615 = vld [vmem:[%s3 + $0x78] sm:$0xff]
      %v616 = vld [vmem:[%s3 + $0x80] sm:$0xff]
      %v617 = vld [vmem:[%s3 + $0x88] sm:$0xff]
      %v618 = vld [vmem:[%s3 + $0x90] sm:$0xff]
      %v619 = vld [vmem:[%s3 + $0x98] sm:$0xff]
      %v620 = vld [vmem:[%s3 + $0xa0] sm:$0xff]
      %v621 = vld [vmem:[%s3 + $0xa8] sm:$0xff]
      %v622 = vld [vmem:[%s3 + $0xb0] sm:$0xff]
      %v623 = vld [vmem:[%s3 + $0xb8] sm:$0xff]
      %v624 = vld [vmem:[%s3 + $0xc0] sm:$0xff]
      %v625 = vld [vmem:[%s3 + $0xc8] sm:$0xff]
      %v626 = vld [vmem:[%s3 + $0xd0] sm:$0xff]
      %v627 = vld [vmem:[%s3 + $0xd8] sm:$0xff]
      %v628 = vld [vmem:[%s3 + $0xe0] sm:$0xff]
      %v629 = vld [vmem:[%s3 + $0xe8] sm:$0xff]
      %v630 = vld [vmem:[%s3 + $0xf0] sm:$0xff]
      %v631 = vld [vmem:[%s3 + $0xf8] sm:$0xff]
      %v632 = vld [vmem:[%s3 + $0x100] sm:$0xff]
      %v633 = vld [vmem:[%s3 + $0x108] sm:$0xff]
      %v634 = vld [vmem:[%s3 + $0x110] sm:$0xff]
      %v635 = vld [vmem:[%s3 + $0x118] sm:$0xff]
      %v636 = vld [vmem:[%s3 + $0x120] sm:$0xff]
      %v637 = vld [vmem:[%s3 + $0x128] sm:$0xff]
      %v638 = vld [vmem:[%s3 + $0x130] sm:$0xff]
      %v639 = vld [vmem:[%s3 + $0x138] sm:$0xff]
      %v640 = vld [vmem:[%s3 + $0x140] sm:$0xff]
      %v641 = vld [vmem:[%s3 + $0x148] sm:$0xff]
      %v642 = vld [vmem:[%s3 + $0x150] sm:$0xff]
      %v643 = vld [vmem:[%s3 + $0x158] sm:$0xff]
      %v644 = vld [vmem:[%s3 + $0x160] sm:$0xff]
      %v645 = vld [vmem:[%s3 + $0x168] sm:$0xff]
      %v646 = vld [vmem:[%s3 + $0x170] sm:$0xff]
      %v647 = vld [vmem:[%s3 + $0x178] sm:$0xff]
      %648 = vmatprep.subr.mxu0 0.0
      %649 = vmatpush1.msra.mxu0 %v615
      %650 = vmatprep.subr.mxu0 0.0
      %651 = vmatpush1.msra.mxu0 %v614
      %652 = vmatprep.subr.mxu0 0.0
      %653 = vmatpush1.msra.mxu0 %v613
      %654 = vmatprep.subr.mxu0 0.0
      %655 = vmatpush1.msra.mxu0 %v612
      %656 = vmatprep.subr.mxu0 0.0
      %657 = vmatpush1.msra.mxu0 %v611
      %658 = vmatprep.subr.mxu0 0.0
      %659 = vmatpush1.msra.mxu0 %v610
      %660 = vmatprep.subr.mxu0 0.0
      %661 = vmatpush1.msra.mxu0 %v609
      %662 = vmatprep.subr.mxu0 0.0
      %663 = vmatpush1.msra.mxu0 %v608
      %664 = vmatprep.subr.mxu0 0.0
      %665 = vmatpush1.msra.mxu0 %v607
      %666 = vmatprep.subr.mxu0 0.0
      %667 = vmatpush1.msra.mxu0 %v606
      %668 = vmatprep.subr.mxu0 0.0
      %669 = vmatpush1.msra.mxu0 %v605
      %670 = vmatprep.subr.mxu0 0.0
      %671 = vmatpush1.msra.mxu0 %v604
      %672 = vmatprep.subr.mxu0 0.0
      %673 = vmatpush1.msra.mxu0 %v603
      %674 = vmatprep.subr.mxu0 0.0
      %675 = vmatpush1.msra.mxu0 %v602
      %676 = vmatprep.subr.mxu0 0.0
      %677 = vmatpush1.msra.mxu0 %v601
      %678 = vmatprep.subr.mxu0 0.0
      %679 = vmatpush1.msra.mxu0 %v600
      %680 = vmatprep.subr.mxu0 0.0
      %681 = vmatpush2.msra.mxu0 %v631
      %682 = vmatprep.subr.mxu0 0.0
      %683 = vmatpush2.msra.mxu0 %v630
      %684 = vmatprep.subr.mxu0 0.0
      %685 = vmatpush2.msra.mxu0 %v629
      %686 = vmatprep.subr.mxu0 0.0
      %687 = vmatpush2.msra.mxu0 %v628
      %688 = vmatprep.subr.mxu0 0.0
      %689 = vmatpush2.msra.mxu0 %v627
      %690 = vmatprep.subr.mxu0 0.0
      %691 = vmatpush2.msra.mxu0 %v626
      %692 = vmatprep.subr.mxu0 0.0
      %693 = vmatpush2.msra.mxu0 %v625
      %694 = vmatprep.subr.mxu0 0.0
      %695 = vmatpush2.msra.mxu0 %v624
      %696 = vmatprep.subr.mxu0 0.0
      %697 = vmatpush2.msra.mxu0 %v623
      %698 = vmatprep.subr.mxu0 0.0
      %699 = vmatpush2.msra.mxu0 %v622
      %700 = vmatprep.subr.mxu0 0.0
      %701 = vmatpush2.msra.mxu0 %v621
      %702 = vmatprep.subr.mxu0 0.0
      %703 = vmatpush2.msra.mxu0 %v620
      %704 = vmatprep.subr.mxu0 0.0
      %705 = vmatpush2.msra.mxu0 %v619
      %706 = vmatprep.subr.mxu0 0.0
      %707 = vmatpush2.msra.mxu0 %v618
      %708 = vmatprep.subr.mxu0 0.0
      %709 = vmatpush2.msra.mxu0 %v617
      %710 = vmatprep.subr.mxu0 0.0
      %711 = vmatpush2.msra.mxu0 %v616
      %712 = vmatprep.mubr.f32.mxu0 %v553
      %713 = vmatmul.mubr.f32.gmra.mxu0 %v552
      %v714 = vpop.f32.mrf.mxu0
      %v715 = vadd.f32 0.0, %v714
      %v716 = vpop.f32.mrf.mxu0
      %717 = vmatprep.mubr.f32.mxu0 %v556
      %718 = vmatmul.mubr.f32.gmra.mxu0 %v555
      %v719 = vpop.f32.mrf.mxu0
      %v720 = vadd.f32 0.0, %v719
      %v721 = vpop.f32.mrf.mxu0
      %722 = vmatprep.mubr.f32.mxu0 %v559
      %723 = vmatmul.mubr.f32.gmra.mxu0 %v558
      %v724 = vpop.f32.mrf.mxu0
      %v725 = vadd.f32 0.0, %v724
      %v726 = vpop.f32.mrf.mxu0
      %727 = vmatprep.mubr.f32.mxu0 %v562
      %728 = vmatmul.mubr.f32.gmra.mxu0 %v561
      %v729 = vpop.f32.mrf.mxu0
      %v730 = vadd.f32 0.0, %v729
      %v731 = vpop.f32.mrf.mxu0
      %732 = vmatprep.mubr.f32.mxu0 %v565
      %733 = vmatmul.mubr.f32.gmra.mxu0 %v564
      %v734 = vpop.f32.mrf.mxu0
      %v735 = vadd.f32 0.0, %v734
      %v736 = vpop.f32.mrf.mxu0
      %737 = vmatprep.mubr.f32.mxu0 %v568
      %738 = vmatmul.mubr.f32.gmra.mxu0 %v567
      %v739 = vpop.f32.mrf.mxu0
      %v740 = vadd.f32 0.0, %v739
      %v741 = vpop.f32.mrf.mxu0
      %742 = vmatprep.mubr.f32.mxu0 %v571
      %743 = vmatmul.mubr.f32.gmra.mxu0 %v570
      %v744 = vpop.f32.mrf.mxu0
      %v745 = vadd.f32 0.0, %v744
      %v746 = vpop.f32.mrf.mxu0
      %747 = vmatprep.mubr.f32.mxu0 %v574
      %748 = vmatmul.mubr.f32.gmra.mxu0 %v573
      %v749 = vpop.f32.mrf.mxu0
      %v750 = vadd.f32 0.0, %v749
      %v751 = vpop.f32.mrf.mxu0
      %752 = vmatprep.mubr.f32.mxu0 %v577
      %753 = vmatmul.mubr.f32.gmra.mxu0 %v576
      %v754 = vpop.f32.mrf.mxu0
      %v755 = vadd.f32 0.0, %v754
      %v756 = vpop.f32.mrf.mxu0
      %757 = vmatprep.mubr.f32.mxu0 %v580
      %758 = vmatmul.mubr.f32.gmra.mxu0 %v579
      %v759 = vpop.f32.mrf.mxu0
      %v760 = vadd.f32 0.0, %v759
      %v761 = vpop.f32.mrf.mxu0
      %762 = vmatprep.mubr.f32.mxu0 %v583
      %763 = vmatmul.mubr.f32.gmra.mxu0 %v582
      %v764 = vpop.f32.mrf.mxu0
      %v765 = vadd.f32 0.0, %v764
      %v766 = vpop.f32.mrf.mxu0
      %767 = vmatprep.mubr.f32.mxu0 %v586
      %768 = vmatmul.mubr.f32.gmra.mxu0 %v585
      %v769 = vpop.f32.mrf.mxu0
      %v770 = vadd.f32 0.0, %v769
      %v771 = vpop.f32.mrf.mxu0
      %772 = vmatprep.mubr.f32.mxu0 %v589
      %773 = vmatmul.mubr.f32.gmra.mxu0 %v588
      %v774 = vpop.f32.mrf.mxu0
      %v775 = vadd.f32 0.0, %v774
      %v776 = vpop.f32.mrf.mxu0
      %777 = vmatprep.mubr.f32.mxu0 %v592
      %778 = vmatmul.mubr.f32.gmra.mxu0 %v591
      %v779 = vpop.f32.mrf.mxu0
      %v780 = vadd.f32 0.0, %v779
      %v781 = vpop.f32.mrf.mxu0
      %782 = vmatprep.mubr.f32.mxu0 %v595
      %783 = vmatmul.mubr.f32.gmra.mxu0 %v594
      %v784 = vpop.f32.mrf.mxu0
      %v785 = vadd.f32 0.0, %v784
      %v786 = vpop.f32.mrf.mxu0
      %787 = vmatprep.mubr.f32.mxu0 %v598
      %788 = vmatmul.mubr.f32.gmra.mxu0 %v597
      %v789 = vpop.f32.mrf.mxu0
      %v790 = vadd.f32 0.0, %v789
      %v791 = vpop.f32.mrf.mxu0
      %792 = vdwg.mxu0
      %793 = vmatprep.subr.mxu0 0.0
      %794 = vmatpush1.msra.mxu0 %v647
      %795 = vmatprep.subr.mxu0 0.0
      %796 = vmatpush1.msra.mxu0 %v646
      %797 = vmatprep.subr.mxu0 0.0
      %798 = vmatpush1.msra.mxu0 %v645
      %799 = vmatprep.subr.mxu0 0.0
      %800 = vmatpush1.msra.mxu0 %v644
      %801 = vmatprep.subr.mxu0 0.0
      %802 = vmatpush1.msra.mxu0 %v643
      %803 = vmatprep.subr.mxu0 0.0
      %804 = vmatpush1.msra.mxu0 %v642
      %805 = vmatprep.subr.mxu0 0.0
      %806 = vmatpush1.msra.mxu0 %v641
      %807 = vmatprep.subr.mxu0 0.0
      %808 = vmatpush1.msra.mxu0 %v640
      %809 = vmatprep.subr.mxu0 0.0
      %810 = vmatpush1.msra.mxu0 %v639
      %811 = vmatprep.subr.mxu0 0.0
      %812 = vmatpush1.msra.mxu0 %v638
      %813 = vmatprep.subr.mxu0 0.0
      %814 = vmatpush1.msra.mxu0 %v637
      %815 = vmatprep.subr.mxu0 0.0
      %816 = vmatpush1.msra.mxu0 %v636
      %817 = vmatprep.subr.mxu0 0.0
      %818 = vmatpush1.msra.mxu0 %v635
      %819 = vmatprep.subr.mxu0 0.0
      %820 = vmatpush1.msra.mxu0 %v634
      %821 = vmatprep.subr.mxu0 0.0
      %822 = vmatpush1.msra.mxu0 %v633
      %823 = vmatprep.subr.mxu0 0.0
      %824 = vmatpush1.msra.mxu0 %v632
      %825 = vmatprep.subr.mxu0 0.0
      %826 = vmatpush2.msra.mxu0 0.0
      %827 = vmatprep.subr.mxu0 0.0
      %828 = vmatpush2.msra.mxu0 0.0
      %829 = vmatprep.subr.mxu0 0.0
      %830 = vmatpush2.msra.mxu0 0.0
      %831 = vmatprep.subr.mxu0 0.0
      %832 = vmatpush2.msra.mxu0 0.0
      %833 = vmatprep.subr.mxu0 0.0
      %834 = vmatpush2.msra.mxu0 0.0
      %835 = vmatprep.subr.mxu0 0.0
      %836 = vmatpush2.msra.mxu0 0.0
      %837 = vmatprep.subr.mxu0 0.0
      %838 = vmatpush2.msra.mxu0 0.0
      %839 = vmatprep.subr.mxu0 0.0
      %840 = vmatpush2.msra.mxu0 0.0
      %841 = vmatprep.subr.mxu0 0.0
      %842 = vmatpush2.msra.mxu0 0.0
      %843 = vmatprep.subr.mxu0 0.0
      %844 = vmatpush2.msra.mxu0 0.0
      %845 = vmatprep.subr.mxu0 0.0
      %846 = vmatpush2.msra.mxu0 0.0
      %847 = vmatprep.subr.mxu0 0.0
      %848 = vmatpush2.msra.mxu0 0.0
      %849 = vmatprep.subr.mxu0 0.0
      %850 = vmatpush2.msra.mxu0 0.0
      %851 = vmatprep.subr.mxu0 0.0
      %852 = vmatpush2.msra.mxu0 0.0
      %853 = vmatprep.subr.mxu0 0.0
      %854 = vmatpush2.msra.mxu0 0.0
      %855 = vmatprep.subr.mxu0 0.0
      %856 = vmatpush2.msra.mxu0 0.0
      %857 = vmatprep.mubr.f32.mxu0 0.0
      %858 = vmatmul.mubr.f32.gmra.mxu0 %v554
      %v859 = vpop.f32.mrf.mxu0
      %v860 = vadd.f32 %v715, %v859
      %v861 = vpop.f32.mrf.mxu0
      %862 = vmatprep.mubr.f32.mxu0 0.0
      %863 = vmatmul.mubr.f32.gmra.mxu0 %v557
      %v864 = vpop.f32.mrf.mxu0
      %v865 = vadd.f32 %v720, %v864
      %v866 = vpop.f32.mrf.mxu0
      %867 = vmatprep.mubr.f32.mxu0 0.0
      %868 = vmatmul.mubr.f32.gmra.mxu0 %v560
      %v869 = vpop.f32.mrf.mxu0
      %v870 = vadd.f32 %v725, %v869
      %v871 = vpop.f32.mrf.mxu0
      %872 = vmatprep.mubr.f32.mxu0 0.0
      %873 = vmatmul.mubr.f32.gmra.mxu0 %v563
      %v874 = vpop.f32.mrf.mxu0
      %v875 = vadd.f32 %v730, %v874
      %v876 = vpop.f32.mrf.mxu0
      %877 = vmatprep.mubr.f32.mxu0 0.0
      %878 = vmatmul.mubr.f32.gmra.mxu0 %v566
      %v879 = vpop.f32.mrf.mxu0
      %v880 = vadd.f32 %v735, %v879
      %v881 = vpop.f32.mrf.mxu0
      %882 = vmatprep.mubr.f32.mxu0 0.0
      %883 = vmatmul.mubr.f32.gmra.mxu0 %v569
      %v884 = vpop.f32.mrf.mxu0
      %v885 = vadd.f32 %v740, %v884
      %v886 = vpop.f32.mrf.mxu0
      %887 = vmatprep.mubr.f32.mxu0 0.0
      %888 = vmatmul.mubr.f32.gmra.mxu0 %v572
      %v889 = vpop.f32.mrf.mxu0
      %v890 = vadd.f32 %v745, %v889
      %v891 = vpop.f32.mrf.mxu0
      %892 = vmatprep.mubr.f32.mxu0 0.0
      %893 = vmatmul.mubr.f32.gmra.mxu0 %v575
      %v894 = vpop.f32.mrf.mxu0
      %v895 = vadd.f32 %v750, %v894
      %v896 = vpop.f32.mrf.mxu0
      %897 = vmatprep.mubr.f32.mxu0 0.0
      %898 = vmatmul.mubr.f32.gmra.mxu0 %v578
      %v899 = vpop.f32.mrf.mxu0
      %v900 = vadd.f32 %v755, %v899
      %v901 = vpop.f32.mrf.mxu0
      %902 = vmatprep.mubr.f32.mxu0 0.0
      %903 = vmatmul.mubr.f32.gmra.mxu0 %v581
      %v904 = vpop.f32.mrf.mxu0
      %v905 = vadd.f32 %v760, %v904
      %v906 = vpop.f32.mrf.mxu0
      %907 = vmatprep.mubr.f32.mxu0 0.0
      %908 = vmatmul.mubr.f32.gmra.mxu0 %v584
      %v909 = vpop.f32.mrf.mxu0
      %v910 = vadd.f32 %v765, %v909
      %v911 = vpop.f32.mrf.mxu0
      %912 = vmatprep.mubr.f32.mxu0 0.0
      %913 = vmatmul.mubr.f32.gmra.mxu0 %v587
      %v914 = vpop.f32.mrf.mxu0
      %v915 = vadd.f32 %v770, %v914
      %v916 = vpop.f32.mrf.mxu0
      %917 = vmatprep.mubr.f32.mxu0 0.0
      %918 = vmatmul.mubr.f32.gmra.mxu0 %v590
      %v919 = vpop.f32.mrf.mxu0
      %v920 = vadd.f32 %v775, %v919
      %v921 = vpop.f32.mrf.mxu0
      %922 = vmatprep.mubr.f32.mxu0 0.0
      %923 = vmatmul.mubr.f32.gmra.mxu0 %v593
      %v924 = vpop.f32.mrf.mxu0
      %v925 = vadd.f32 %v780, %v924
      %v926 = vpop.f32.mrf.mxu0
      %927 = vmatprep.mubr.f32.mxu0 0.0
      %928 = vmatmul.mubr.f32.gmra.mxu0 %v596
      %v929 = vpop.f32.mrf.mxu0
      %v930 = vadd.f32 %v785, %v929
      %v931 = vpop.f32.mrf.mxu0
      %932 = vmatprep.mubr.f32.mxu0 0.0
      %933 = vmatmul.mubr.f32.gmra.mxu0 %v599
      %v934 = vpop.f32.mrf.mxu0
      %v935 = vadd.f32 %v790, %v934
      %v936 = vpop.f32.mrf.mxu0
      %937 = vdwg.mxu0
      %938 = vst [vmem:[#allocation4] sm:$0xff] %v860
      %939 = vst [vmem:[#allocation4 + $0x8] sm:$0xff] %v865
      %940 = vst [vmem:[#allocation4 + $0x10] sm:$0xff] %v870
      %941 = vst [vmem:[#allocation4 + $0x18] sm:$0xff] %v875
      %942 = vst [vmem:[#allocation4 + $0x20] sm:$0xff] %v880
      %943 = vst [vmem:[#allocation4 + $0x28] sm:$0xff] %v885
      %944 = vst [vmem:[#allocation4 + $0x30] sm:$0xff] %v890
      %945 = vst [vmem:[#allocation4 + $0x38] sm:$0xff] %v895
      %946 = vst [vmem:[#allocation4 + $0x40] sm:$0xff] %v900
      %947 = vst [vmem:[#allocation4 + $0x48] sm:$0xff] %v905
      %948 = vst [vmem:[#allocation4 + $0x50] sm:$0xff] %v910
      %949 = vst [vmem:[#allocation4 + $0x58] sm:$0xff] %v915
      %950 = vst [vmem:[#allocation4 + $0x60] sm:$0xff] %v920
      %951 = vst [vmem:[#allocation4 + $0x68] sm:$0xff] %v925
      %952 = vst [vmem:[#allocation4 + $0x70] sm:$0xff] %v930
      %953 = vst [vmem:[#allocation4 + $0x78] sm:$0xff] %v935
      %v954 = vld [vmem:[#allocation4] sm:$0xff]
      %v955 = vld [vmem:[#allocation4 + $0x8] sm:$0xff]
      %v956 = vld [vmem:[#allocation4 + $0x10] sm:$0xff]
      %v957 = vld [vmem:[#allocation4 + $0x18] sm:$0xff]
      %v958 = vld [vmem:[#allocation4 + $0x20] sm:$0xff]
      %v959 = vld [vmem:[#allocation4 + $0x28] sm:$0xff]
      %v960 = vld [vmem:[#allocation4 + $0x30] sm:$0xff]
      %v961 = vld [vmem:[#allocation4 + $0x38] sm:$0xff]
      %v962 = vld [vmem:[#allocation4 + $0x40] sm:$0xff]
      %v963 = vld [vmem:[#allocation4 + $0x48] sm:$0xff]
      %v964 = vld [vmem:[#allocation4 + $0x50] sm:$0xff]
      %v965 = vld [vmem:[#allocation4 + $0x58] sm:$0xff]
      %v966 = vld [vmem:[#allocation4 + $0x60] sm:$0xff]
      %v967 = vld [vmem:[#allocation4 + $0x68] sm:$0xff]
      %v968 = vld [vmem:[#allocation4 + $0x70] sm:$0xff]
      %v969 = vld [vmem:[#allocation4 + $0x78] sm:$0xff]
      %s970 = scalar_lea.vmem [#allocation3], 48
      %v971 = vld [vmem:[%s970] sm:$0xff]
      %v972 = vld [vmem:[%s970 + $0x8] sm:$0xff]
      %v973 = vld [vmem:[%s970 + $0x10] sm:$0xff]
      %v974 = vld [vmem:[%s970 + $0x18] sm:$0xff]
      %v975 = vld [vmem:[%s970 + $0x20] sm:$0xff]
      %v976 = vld [vmem:[%s970 + $0x28] sm:$0xff]
      %v977 = vld [vmem:[%s970 + $0x30] sm:$0xff]
      %v978 = vld [vmem:[%s970 + $0x38] sm:$0xff]
      %v979 = vld [vmem:[%s970 + $0x40] sm:$0xff]
      %v980 = vld [vmem:[%s970 + $0x48] sm:$0xff]
      %v981 = vld [vmem:[%s970 + $0x50] sm:$0xff]
      %v982 = vld [vmem:[%s970 + $0x58] sm:$0xff]
      %v983 = vld [vmem:[%s970 + $0x60] sm:$0xff]
      %v984 = vld [vmem:[%s970 + $0x68] sm:$0xff]
      %v985 = vld [vmem:[%s970 + $0x70] sm:$0xff]
      %v986 = vld [vmem:[%s970 + $0x78] sm:$0xff]
      %v987 = vld [vmem:[%s970 + $0x80] sm:$0xff]
      %v988 = vld [vmem:[%s970 + $0x88] sm:$0xff]
      %v989 = vld [vmem:[%s970 + $0x90] sm:$0xff]
      %v990 = vld [vmem:[%s970 + $0x98] sm:$0xff]
      %v991 = vld [vmem:[%s970 + $0xa0] sm:$0xff]
      %v992 = vld [vmem:[%s970 + $0xa8] sm:$0xff]
      %v993 = vld [vmem:[%s970 + $0xb0] sm:$0xff]
      %v994 = vld [vmem:[%s970 + $0xb8] sm:$0xff]
      %v995 = vld [vmem:[%s970 + $0xc0] sm:$0xff]
      %v996 = vld [vmem:[%s970 + $0xc8] sm:$0xff]
      %v997 = vld [vmem:[%s970 + $0xd0] sm:$0xff]
      %v998 = vld [vmem:[%s970 + $0xd8] sm:$0xff]
      %v999 = vld [vmem:[%s970 + $0xe0] sm:$0xff]
      %v1000 = vld [vmem:[%s970 + $0xe8] sm:$0xff]
      %v1001 = vld [vmem:[%s970 + $0xf0] sm:$0xff]
      %v1002 = vld [vmem:[%s970 + $0xf8] sm:$0xff]
      %v1003 = vld [vmem:[%s970 + $0x100] sm:$0xff]
      %v1004 = vld [vmem:[%s970 + $0x108] sm:$0xff]
      %v1005 = vld [vmem:[%s970 + $0x110] sm:$0xff]
      %v1006 = vld [vmem:[%s970 + $0x118] sm:$0xff]
      %v1007 = vld [vmem:[%s970 + $0x120] sm:$0xff]
      %v1008 = vld [vmem:[%s970 + $0x128] sm:$0xff]
      %v1009 = vld [vmem:[%s970 + $0x130] sm:$0xff]
      %v1010 = vld [vmem:[%s970 + $0x138] sm:$0xff]
      %v1011 = vld [vmem:[%s970 + $0x140] sm:$0xff]
      %v1012 = vld [vmem:[%s970 + $0x148] sm:$0xff]
      %v1013 = vld [vmem:[%s970 + $0x150] sm:$0xff]
      %v1014 = vld [vmem:[%s970 + $0x158] sm:$0xff]
      %v1015 = vld [vmem:[%s970 + $0x160] sm:$0xff]
      %v1016 = vld [vmem:[%s970 + $0x168] sm:$0xff]
      %v1017 = vld [vmem:[%s970 + $0x170] sm:$0xff]
      %v1018 = vld [vmem:[%s970 + $0x178] sm:$0xff]
      %s1019 = scalar_lea.vmem %s3, 384
      %v1020 = vld [vmem:[%s1019] sm:$0xff]
      %v1021 = vld [vmem:[%s1019 + $0x8] sm:$0xff]
      %v1022 = vld [vmem:[%s1019 + $0x10] sm:$0xff]
      %v1023 = vld [vmem:[%s1019 + $0x18] sm:$0xff]
      %v1024 = vld [vmem:[%s1019 + $0x20] sm:$0xff]
      %v1025 = vld [vmem:[%s1019 + $0x28] sm:$0xff]
      %v1026 = vld [vmem:[%s1019 + $0x30] sm:$0xff]
      %v1027 = vld [vmem:[%s1019 + $0x38] sm:$0xff]
      %v1028 = vld [vmem:[%s1019 + $0x40] sm:$0xff]
      %v1029 = vld [vmem:[%s1019 + $0x48] sm:$0xff]
      %v1030 = vld [vmem:[%s1019 + $0x50] sm:$0xff]
      %v1031 = vld [vmem:[%s1019 + $0x58] sm:$0xff]
      %v1032 = vld [vmem:[%s1019 + $0x60] sm:$0xff]
      %v1033 = vld [vmem:[%s1019 + $0x68] sm:$0xff]
      %v1034 = vld [vmem:[%s1019 + $0x70] sm:$0xff]
      %v1035 = vld [vmem:[%s1019 + $0x78] sm:$0xff]
      %v1036 = vld [vmem:[%s1019 + $0x80] sm:$0xff]
      %v1037 = vld [vmem:[%s1019 + $0x88] sm:$0xff]
      %v1038 = vld [vmem:[%s1019 + $0x90] sm:$0xff]
      %v1039 = vld [vmem:[%s1019 + $0x98] sm:$0xff]
      %v1040 = vld [vmem:[%s1019 + $0xa0] sm:$0xff]
      %v1041 = vld [vmem:[%s1019 + $0xa8] sm:$0xff]
      %v1042 = vld [vmem:[%s1019 + $0xb0] sm:$0xff]
      %v1043 = vld [vmem:[%s1019 + $0xb8] sm:$0xff]
      %v1044 = vld [vmem:[%s1019 + $0xc0] sm:$0xff]
      %v1045 = vld [vmem:[%s1019 + $0xc8] sm:$0xff]
      %v1046 = vld [vmem:[%s1019 + $0xd0] sm:$0xff]
      %v1047 = vld [vmem:[%s1019 + $0xd8] sm:$0xff]
      %v1048 = vld [vmem:[%s1019 + $0xe0] sm:$0xff]
      %v1049 = vld [vmem:[%s1019 + $0xe8] sm:$0xff]
      %v1050 = vld [vmem:[%s1019 + $0xf0] sm:$0xff]
      %v1051 = vld [vmem:[%s1019 + $0xf8] sm:$0xff]
      %v1052 = vld [vmem:[%s1019 + $0x100] sm:$0xff]
      %v1053 = vld [vmem:[%s1019 + $0x108] sm:$0xff]
      %v1054 = vld [vmem:[%s1019 + $0x110] sm:$0xff]
      %v1055 = vld [vmem:[%s1019 + $0x118] sm:$0xff]
      %v1056 = vld [vmem:[%s1019 + $0x120] sm:$0xff]
      %v1057 = vld [vmem:[%s1019 + $0x128] sm:$0xff]
      %v1058 = vld [vmem:[%s1019 + $0x130] sm:$0xff]
      %v1059 = vld [vmem:[%s1019 + $0x138] sm:$0xff]
      %v1060 = vld [vmem:[%s1019 + $0x140] sm:$0xff]
      %v1061 = vld [vmem:[%s1019 + $0x148] sm:$0xff]
      %v1062 = vld [vmem:[%s1019 + $0x150] sm:$0xff]
      %v1063 = vld [vmem:[%s1019 + $0x158] sm:$0xff]
      %v1064 = vld [vmem:[%s1019 + $0x160] sm:$0xff]
      %v1065 = vld [vmem:[%s1019 + $0x168] sm:$0xff]
      %v1066 = vld [vmem:[%s1019 + $0x170] sm:$0xff]
      %v1067 = vld [vmem:[%s1019 + $0x178] sm:$0xff]
      %1068 = vmatprep.subr.mxu0 0.0
      %1069 = vmatpush1.msra.mxu0 %v1035
      %1070 = vmatprep.subr.mxu0 0.0
      %1071 = vmatpush1.msra.mxu0 %v1034
      %1072 = vmatprep.subr.mxu0 0.0
      %1073 = vmatpush1.msra.mxu0 %v1033
      %1074 = vmatprep.subr.mxu0 0.0
      %1075 = vmatpush1.msra.mxu0 %v1032
      %1076 = vmatprep.subr.mxu0 0.0
      %1077 = vmatpush1.msra.mxu0 %v1031
      %1078 = vmatprep.subr.mxu0 0.0
      %1079 = vmatpush1.msra.mxu0 %v1030
      %1080 = vmatprep.subr.mxu0 0.0
      %1081 = vmatpush1.msra.mxu0 %v1029
      %1082 = vmatprep.subr.mxu0 0.0
      %1083 = vmatpush1.msra.mxu0 %v1028
      %1084 = vmatprep.subr.mxu0 0.0
      %1085 = vmatpush1.msra.mxu0 %v1027
      %1086 = vmatprep.subr.mxu0 0.0
      %1087 = vmatpush1.msra.mxu0 %v1026
      %1088 = vmatprep.subr.mxu0 0.0
      %1089 = vmatpush1.msra.mxu0 %v1025
      %1090 = vmatprep.subr.mxu0 0.0
      %1091 = vmatpush1.msra.mxu0 %v1024
      %1092 = vmatprep.subr.mxu0 0.0
      %1093 = vmatpush1.msra.mxu0 %v1023
      %1094 = vmatprep.subr.mxu0 0.0
      %1095 = vmatpush1.msra.mxu0 %v1022
      %1096 = vmatprep.subr.mxu0 0.0
      %1097 = vmatpush1.msra.mxu0 %v1021
      %1098 = vmatprep.subr.mxu0 0.0
      %1099 = vmatpush1.msra.mxu0 %v1020
      %1100 = vmatprep.subr.mxu0 0.0
      %1101 = vmatpush2.msra.mxu0 %v1051
      %1102 = vmatprep.subr.mxu0 0.0
      %1103 = vmatpush2.msra.mxu0 %v1050
      %1104 = vmatprep.subr.mxu0 0.0
      %1105 = vmatpush2.msra.mxu0 %v1049
      %1106 = vmatprep.subr.mxu0 0.0
      %1107 = vmatpush2.msra.mxu0 %v1048
      %1108 = vmatprep.subr.mxu0 0.0
      %1109 = vmatpush2.msra.mxu0 %v1047
      %1110 = vmatprep.subr.mxu0 0.0
      %1111 = vmatpush2.msra.mxu0 %v1046
      %1112 = vmatprep.subr.mxu0 0.0
      %1113 = vmatpush2.msra.mxu0 %v1045
      %1114 = vmatprep.subr.mxu0 0.0
      %1115 = vmatpush2.msra.mxu0 %v1044
      %1116 = vmatprep.subr.mxu0 0.0
      %1117 = vmatpush2.msra.mxu0 %v1043
      %1118 = vmatprep.subr.mxu0 0.0
      %1119 = vmatpush2.msra.mxu0 %v1042
      %1120 = vmatprep.subr.mxu0 0.0
      %1121 = vmatpush2.msra.mxu0 %v1041
      %1122 = vmatprep.subr.mxu0 0.0
      %1123 = vmatpush2.msra.mxu0 %v1040
      %1124 = vmatprep.subr.mxu0 0.0
      %1125 = vmatpush2.msra.mxu0 %v1039
      %1126 = vmatprep.subr.mxu0 0.0
      %1127 = vmatpush2.msra.mxu0 %v1038
      %1128 = vmatprep.subr.mxu0 0.0
      %1129 = vmatpush2.msra.mxu0 %v1037
      %1130 = vmatprep.subr.mxu0 0.0
      %1131 = vmatpush2.msra.mxu0 %v1036
      %1132 = vmatprep.mubr.f32.mxu0 %v972
      %1133 = vmatmul.mubr.f32.gmra.mxu0 %v971
      %v1134 = vpop.f32.mrf.mxu0
      %v1135 = vadd.f32 0.0, %v1134
      %v1136 = vpop.f32.mrf.mxu0
      %1137 = vmatprep.mubr.f32.mxu0 %v975
      %1138 = vmatmul.mubr.f32.gmra.mxu0 %v974
      %v1139 = vpop.f32.mrf.mxu0
      %v1140 = vadd.f32 0.0, %v1139
      %v1141 = vpop.f32.mrf.mxu0
      %1142 = vmatprep.mubr.f32.mxu0 %v978
      %1143 = vmatmul.mubr.f32.gmra.mxu0 %v977
      %v1144 = vpop.f32.mrf.mxu0
      %v1145 = vadd.f32 0.0, %v1144
      %v1146 = vpop.f32.mrf.mxu0
      %1147 = vmatprep.mubr.f32.mxu0 %v981
      %1148 = vmatmul.mubr.f32.gmra.mxu0 %v980
      %v1149 = vpop.f32.mrf.mxu0
      %v1150 = vadd.f32 0.0, %v1149
      %v1151 = vpop.f32.mrf.mxu0
      %1152 = vmatprep.mubr.f32.mxu0 %v984
      %1153 = vmatmul.mubr.f32.gmra.mxu0 %v983
      %v1154 = vpop.f32.mrf.mxu0
      %v1155 = vadd.f32 0.0, %v1154
      %v1156 = vpop.f32.mrf.mxu0
      %1157 = vmatprep.mubr.f32.mxu0 %v987
      %1158 = vmatmul.mubr.f32.gmra.mxu0 %v986
      %v1159 = vpop.f32.mrf.mxu0
      %v1160 = vadd.f32 0.0, %v1159
      %v1161 = vpop.f32.mrf.mxu0
      %1162 = vmatprep.mubr.f32.mxu0 %v990
      %1163 = vmatmul.mubr.f32.gmra.mxu0 %v989
      %v1164 = vpop.f32.mrf.mxu0
      %v1165 = vadd.f32 0.0, %v1164
      %v1166 = vpop.f32.mrf.mxu0
      %1167 = vmatprep.mubr.f32.mxu0 %v993
      %1168 = vmatmul.mubr.f32.gmra.mxu0 %v992
      %v1169 = vpop.f32.mrf.mxu0
      %v1170 = vadd.f32 0.0, %v1169
      %v1171 = vpop.f32.mrf.mxu0
      %1172 = vmatprep.mubr.f32.mxu0 %v996
      %1173 = vmatmul.mubr.f32.gmra.mxu0 %v995
      %v1174 = vpop.f32.mrf.mxu0
      %v1175 = vadd.f32 0.0, %v1174
      %v1176 = vpop.f32.mrf.mxu0
      %1177 = vmatprep.mubr.f32.mxu0 %v999
      %1178 = vmatmul.mubr.f32.gmra.mxu0 %v998
      %v1179 = vpop.f32.mrf.mxu0
      %v1180 = vadd.f32 0.0, %v1179
      %v1181 = vpop.f32.mrf.mxu0
      %1182 = vmatprep.mubr.f32.mxu0 %v1002
      %1183 = vmatmul.mubr.f32.gmra.mxu0 %v1001
      %v1184 = vpop.f32.mrf.mxu0
      %v1185 = vadd.f32 0.0, %v1184
      %v1186 = vpop.f32.mrf.mxu0
      %1187 = vmatprep.mubr.f32.mxu0 %v1005
      %1188 = vmatmul.mubr.f32.gmra.mxu0 %v1004
      %v1189 = vpop.f32.mrf.mxu0
      %v1190 = vadd.f32 0.0, %v1189
      %v1191 = vpop.f32.mrf.mxu0
      %1192 = vmatprep.mubr.f32.mxu0 %v1008
      %1193 = vmatmul.mubr.f32.gmra.mxu0 %v1007
      %v1194 = vpop.f32.mrf.mxu0
      %v1195 = vadd.f32 0.0, %v1194
      %v1196 = vpop.f32.mrf.mxu0
      %1197 = vmatprep.mubr.f32.mxu0 %v1011
      %1198 = vmatmul.mubr.f32.gmra.mxu0 %v1010
      %v1199 = vpop.f32.mrf.mxu0
      %v1200 = vadd.f32 0.0, %v1199
      %v1201 = vpop.f32.mrf.mxu0
      %1202 = vmatprep.mubr.f32.mxu0 %v1014
      %1203 = vmatmul.mubr.f32.gmra.mxu0 %v1013
      %v1204 = vpop.f32.mrf.mxu0
      %v1205 = vadd.f32 0.0, %v1204
      %v1206 = vpop.f32.mrf.mxu0
      %1207 = vmatprep.mubr.f32.mxu0 %v1017
      %1208 = vmatmul.mubr.f32.gmra.mxu0 %v1016
      %v1209 = vpop.f32.mrf.mxu0
      %v1210 = vadd.f32 0.0, %v1209
      %v1211 = vpop.f32.mrf.mxu0
      %1212 = vdwg.mxu0
      %1213 = vmatprep.subr.mxu0 0.0
      %1214 = vmatpush1.msra.mxu0 %v1067
      %1215 = vmatprep.subr.mxu0 0.0
      %1216 = vmatpush1.msra.mxu0 %v1066
      %1217 = vmatprep.subr.mxu0 0.0
      %1218 = vmatpush1.msra.mxu0 %v1065
      %1219 = vmatprep.subr.mxu0 0.0
      %1220 = vmatpush1.msra.mxu0 %v1064
      %1221 = vmatprep.subr.mxu0 0.0
      %1222 = vmatpush1.msra.mxu0 %v1063
      %1223 = vmatprep.subr.mxu0 0.0
      %1224 = vmatpush1.msra.mxu0 %v1062
      %1225 = vmatprep.subr.mxu0 0.0
      %1226 = vmatpush1.msra.mxu0 %v1061
      %1227 = vmatprep.subr.mxu0 0.0
      %1228 = vmatpush1.msra.mxu0 %v1060
      %1229 = vmatprep.subr.mxu0 0.0
      %1230 = vmatpush1.msra.mxu0 %v1059
      %1231 = vmatprep.subr.mxu0 0.0
      %1232 = vmatpush1.msra.mxu0 %v1058
      %1233 = vmatprep.subr.mxu0 0.0
      %1234 = vmatpush1.msra.mxu0 %v1057
      %1235 = vmatprep.subr.mxu0 0.0
      %1236 = vmatpush1.msra.mxu0 %v1056
      %1237 = vmatprep.subr.mxu0 0.0
      %1238 = vmatpush1.msra.mxu0 %v1055
      %1239 = vmatprep.subr.mxu0 0.0
      %1240 = vmatpush1.msra.mxu0 %v1054
      %1241 = vmatprep.subr.mxu0 0.0
      %1242 = vmatpush1.msra.mxu0 %v1053
      %1243 = vmatprep.subr.mxu0 0.0
      %1244 = vmatpush1.msra.mxu0 %v1052
      %1245 = vmatprep.subr.mxu0 0.0
      %1246 = vmatpush2.msra.mxu0 0.0
      %1247 = vmatprep.subr.mxu0 0.0
      %1248 = vmatpush2.msra.mxu0 0.0
      %1249 = vmatprep.subr.mxu0 0.0
      %1250 = vmatpush2.msra.mxu0 0.0
      %1251 = vmatprep.subr.mxu0 0.0
      %1252 = vmatpush2.msra.mxu0 0.0
      %1253 = vmatprep.subr.mxu0 0.0
      %1254 = vmatpush2.msra.mxu0 0.0
      %1255 = vmatprep.subr.mxu0 0.0
      %1256 = vmatpush2.msra.mxu0 0.0
      %1257 = vmatprep.subr.mxu0 0.0
      %1258 = vmatpush2.msra.mxu0 0.0
      %1259 = vmatprep.subr.mxu0 0.0
      %1260 = vmatpush2.msra.mxu0 0.0
      %1261 = vmatprep.subr.mxu0 0.0
      %1262 = vmatpush2.msra.mxu0 0.0
      %1263 = vmatprep.subr.mxu0 0.0
      %1264 = vmatpush2.msra.mxu0 0.0
      %1265 = vmatprep.subr.mxu0 0.0
      %1266 = vmatpush2.msra.mxu0 0.0
      %1267 = vmatprep.subr.mxu0 0.0
      %1268 = vmatpush2.msra.mxu0 0.0
      %1269 = vmatprep.subr.mxu0 0.0
      %1270 = vmatpush2.msra.mxu0 0.0
      %1271 = vmatprep.subr.mxu0 0.0
      %1272 = vmatpush2.msra.mxu0 0.0
      %1273 = vmatprep.subr.mxu0 0.0
      %1274 = vmatpush2.msra.mxu0 0.0
      %1275 = vmatprep.subr.mxu0 0.0
      %1276 = vmatpush2.msra.mxu0 0.0
      %1277 = vmatprep.mubr.f32.mxu0 0.0
      %1278 = vmatmul.mubr.f32.gmra.mxu0 %v973
      %v1279 = vpop.f32.mrf.mxu0
      %v1280 = vadd.f32 %v1135, %v1279
      %v1281 = vpop.f32.mrf.mxu0
      %1282 = vmatprep.mubr.f32.mxu0 0.0
      %1283 = vmatmul.mubr.f32.gmra.mxu0 %v976
      %v1284 = vpop.f32.mrf.mxu0
      %v1285 = vadd.f32 %v1140, %v1284
      %v1286 = vpop.f32.mrf.mxu0
      %1287 = vmatprep.mubr.f32.mxu0 0.0
      %1288 = vmatmul.mubr.f32.gmra.mxu0 %v979
      %v1289 = vpop.f32.mrf.mxu0
      %v1290 = vadd.f32 %v1145, %v1289
      %v1291 = vpop.f32.mrf.mxu0
      %1292 = vmatprep.mubr.f32.mxu0 0.0
      %1293 = vmatmul.mubr.f32.gmra.mxu0 %v982
      %v1294 = vpop.f32.mrf.mxu0
      %v1295 = vadd.f32 %v1150, %v1294
      %v1296 = vpop.f32.mrf.mxu0
      %1297 = vmatprep.mubr.f32.mxu0 0.0
      %1298 = vmatmul.mubr.f32.gmra.mxu0 %v985
      %v1299 = vpop.f32.mrf.mxu0
      %v1300 = vadd.f32 %v1155, %v1299
      %v1301 = vpop.f32.mrf.mxu0
      %1302 = vmatprep.mubr.f32.mxu0 0.0
      %1303 = vmatmul.mubr.f32.gmra.mxu0 %v988
      %v1304 = vpop.f32.mrf.mxu0
      %v1305 = vadd.f32 %v1160, %v1304
      %v1306 = vpop.f32.mrf.mxu0
      %1307 = vmatprep.mubr.f32.mxu0 0.0
      %1308 = vmatmul.mubr.f32.gmra.mxu0 %v991
      %v1309 = vpop.f32.mrf.mxu0
      %v1310 = vadd.f32 %v1165, %v1309
      %v1311 = vpop.f32.mrf.mxu0
      %1312 = vmatprep.mubr.f32.mxu0 0.0
      %1313 = vmatmul.mubr.f32.gmra.mxu0 %v994
      %v1314 = vpop.f32.mrf.mxu0
      %v1315 = vadd.f32 %v1170, %v1314
      %v1316 = vpop.f32.mrf.mxu0
      %1317 = vmatprep.mubr.f32.mxu0 0.0
      %1318 = vmatmul.mubr.f32.gmra.mxu0 %v997
      %v1319 = vpop.f32.mrf.mxu0
      %v1320 = vadd.f32 %v1175, %v1319
      %v1321 = vpop.f32.mrf.mxu0
      %1322 = vmatprep.mubr.f32.mxu0 0.0
      %1323 = vmatmul.mubr.f32.gmra.mxu0 %v1000
      %v1324 = vpop.f32.mrf.mxu0
      %v1325 = vadd.f32 %v1180, %v1324
      %v1326 = vpop.f32.mrf.mxu0
      %1327 = vmatprep.mubr.f32.mxu0 0.0
      %1328 = vmatmul.mubr.f32.gmra.mxu0 %v1003
      %v1329 = vpop.f32.mrf.mxu0
      %v1330 = vadd.f32 %v1185, %v1329
      %v1331 = vpop.f32.mrf.mxu0
      %1332 = vmatprep.mubr.f32.mxu0 0.0
      %1333 = vmatmul.mubr.f32.gmra.mxu0 %v1006
      %v1334 = vpop.f32.mrf.mxu0
      %v1335 = vadd.f32 %v1190, %v1334
      %v1336 = vpop.f32.mrf.mxu0
      %1337 = vmatprep.mubr.f32.mxu0 0.0
      %1338 = vmatmul.mubr.f32.gmra.mxu0 %v1009
      %v1339 = vpop.f32.mrf.mxu0
      %v1340 = vadd.f32 %v1195, %v1339
      %v1341 = vpop.f32.mrf.mxu0
      %1342 = vmatprep.mubr.f32.mxu0 0.0
      %1343 = vmatmul.mubr.f32.gmra.mxu0 %v1012
      %v1344 = vpop.f32.mrf.mxu0
      %v1345 = vadd.f32 %v1200, %v1344
      %v1346 = vpop.f32.mrf.mxu0
      %1347 = vmatprep.mubr.f32.mxu0 0.0
      %1348 = vmatmul.mubr.f32.gmra.mxu0 %v1015
      %v1349 = vpop.f32.mrf.mxu0
      %v1350 = vadd.f32 %v1205, %v1349
      %v1351 = vpop.f32.mrf.mxu0
      %1352 = vmatprep.mubr.f32.mxu0 0.0
      %1353 = vmatmul.mubr.f32.gmra.mxu0 %v1018
      %v1354 = vpop.f32.mrf.mxu0
      %v1355 = vadd.f32 %v1210, %v1354
      %v1356 = vpop.f32.mrf.mxu0
      %1357 = vdwg.mxu0
      %v1358 = vadd.f32 %v954, %v1280
      %v1359 = vadd.f32 %v955, %v1285
      %v1360 = vadd.f32 %v956, %v1290
      %v1361 = vadd.f32 %v957, %v1295
      %v1362 = vadd.f32 %v958, %v1300
      %v1363 = vadd.f32 %v959, %v1305
      %v1364 = vadd.f32 %v960, %v1310
      %v1365 = vadd.f32 %v961, %v1315
      %v1366 = vadd.f32 %v962, %v1320
      %v1367 = vadd.f32 %v963, %v1325
      %v1368 = vadd.f32 %v964, %v1330
      %v1369 = vadd.f32 %v965, %v1335
      %v1370 = vadd.f32 %v966, %v1340
      %v1371 = vadd.f32 %v967, %v1345
      %v1372 = vadd.f32 %v968, %v1350
      %v1373 = vadd.f32 %v969, %v1355
      %1374 = vst [vmem:[#allocation4] sm:$0xff] %v1358
      %1375 = vst [vmem:[#allocation4 + $0x8] sm:$0xff] %v1359
      %1376 = vst [vmem:[#allocation4 + $0x10] sm:$0xff] %v1360
      %1377 = vst [vmem:[#allocation4 + $0x18] sm:$0xff] %v1361
      %1378 = vst [vmem:[#allocation4 + $0x20] sm:$0xff] %v1362
      %1379 = vst [vmem:[#allocation4 + $0x28] sm:$0xff] %v1363
      %1380 = vst [vmem:[#allocation4 + $0x30] sm:$0xff] %v1364
      %1381 = vst [vmem:[#allocation4 + $0x38] sm:$0xff] %v1365
      %1382 = vst [vmem:[#allocation4 + $0x40] sm:$0xff] %v1366
      %1383 = vst [vmem:[#allocation4 + $0x48] sm:$0xff] %v1367
      %1384 = vst [vmem:[#allocation4 + $0x50] sm:$0xff] %v1368
      %1385 = vst [vmem:[#allocation4 + $0x58] sm:$0xff] %v1369
      %1386 = vst [vmem:[#allocation4 + $0x60] sm:$0xff] %v1370
      %1387 = vst [vmem:[#allocation4 + $0x68] sm:$0xff] %v1371
      %1388 = vst [vmem:[#allocation4 + $0x70] sm:$0xff] %v1372
      %1389 = vst [vmem:[#allocation4 + $0x78] sm:$0xff] %v1373
      %v1390 = vld [vmem:[#allocation4] sm:$0xff]
      %v1391 = vld [vmem:[#allocation4 + $0x8] sm:$0xff]
      %v1392 = vld [vmem:[#allocation4 + $0x10] sm:$0xff]
      %v1393 = vld [vmem:[#allocation4 + $0x18] sm:$0xff]
      %v1394 = vld [vmem:[#allocation4 + $0x20] sm:$0xff]
      %v1395 = vld [vmem:[#allocation4 + $0x28] sm:$0xff]
      %v1396 = vld [vmem:[#allocation4 + $0x30] sm:$0xff]
      %v1397 = vld [vmem:[#allocation4 + $0x38] sm:$0xff]
      %v1398 = vld [vmem:[#allocation4 + $0x40] sm:$0xff]
      %v1399 = vld [vmem:[#allocation4 + $0x48] sm:$0xff]
      %v1400 = vld [vmem:[#allocation4 + $0x50] sm:$0xff]
      %v1401 = vld [vmem:[#allocation4 + $0x58] sm:$0xff]
      %v1402 = vld [vmem:[#allocation4 + $0x60] sm:$0xff]
      %v1403 = vld [vmem:[#allocation4 + $0x68] sm:$0xff]
      %v1404 = vld [vmem:[#allocation4 + $0x70] sm:$0xff]
      %v1405 = vld [vmem:[#allocation4 + $0x78] sm:$0xff]
      %s1406 = scalar_lea.vmem [#allocation3], 96
      %v1407 = vld [vmem:[%s1406] sm:$0xff]
      %v1408 = vld [vmem:[%s1406 + $0x8] sm:$0xff]
      %v1409 = vld [vmem:[%s1406 + $0x10] sm:$0xff]
      %v1410 = vld [vmem:[%s1406 + $0x18] sm:$0xff]
      %v1411 = vld [vmem:[%s1406 + $0x20] sm:$0xff]
      %v1412 = vld [vmem:[%s1406 + $0x28] sm:$0xff]
      %v1413 = vld [vmem:[%s1406 + $0x30] sm:$0xff]
      %v1414 = vld [vmem:[%s1406 + $0x38] sm:$0xff]
      %v1415 = vld [vmem:[%s1406 + $0x40] sm:$0xff]
      %v1416 = vld [vmem:[%s1406 + $0x48] sm:$0xff]
      %v1417 = vld [vmem:[%s1406 + $0x50] sm:$0xff]
      %v1418 = vld [vmem:[%s1406 + $0x58] sm:$0xff]
      %v1419 = vld [vmem:[%s1406 + $0x60] sm:$0xff]
      %v1420 = vld [vmem:[%s1406 + $0x68] sm:$0xff]
      %v1421 = vld [vmem:[%s1406 + $0x70] sm:$0xff]
      %v1422 = vld [vmem:[%s1406 + $0x78] sm:$0xff]
      %v1423 = vld [vmem:[%s1406 + $0x80] sm:$0xff]
      %v1424 = vld [vmem:[%s1406 + $0x88] sm:$0xff]
      %v1425 = vld [vmem:[%s1406 + $0x90] sm:$0xff]
      %v1426 = vld [vmem:[%s1406 + $0x98] sm:$0xff]
      %v1427 = vld [vmem:[%s1406 + $0xa0] sm:$0xff]
      %v1428 = vld [vmem:[%s1406 + $0xa8] sm:$0xff]
      %v1429 = vld [vmem:[%s1406 + $0xb0] sm:$0xff]
      %v1430 = vld [vmem:[%s1406 + $0xb8] sm:$0xff]
      %v1431 = vld [vmem:[%s1406 + $0xc0] sm:$0xff]
      %v1432 = vld [vmem:[%s1406 + $0xc8] sm:$0xff]
      %v1433 = vld [vmem:[%s1406 + $0xd0] sm:$0xff]
      %v1434 = vld [vmem:[%s1406 + $0xd8] sm:$0xff]
      %v1435 = vld [vmem:[%s1406 + $0xe0] sm:$0xff]
      %v1436 = vld [vmem:[%s1406 + $0xe8] sm:$0xff]
      %v1437 = vld [vmem:[%s1406 + $0xf0] sm:$0xff]
      %v1438 = vld [vmem:[%s1406 + $0xf8] sm:$0xff]
      %v1439 = vld [vmem:[%s1406 + $0x100] sm:$0xff]
      %v1440 = vld [vmem:[%s1406 + $0x108] sm:$0xff]
      %v1441 = vld [vmem:[%s1406 + $0x110] sm:$0xff]
      %v1442 = vld [vmem:[%s1406 + $0x118] sm:$0xff]
      %v1443 = vld [vmem:[%s1406 + $0x120] sm:$0xff]
      %v1444 = vld [vmem:[%s1406 + $0x128] sm:$0xff]
      %v1445 = vld [vmem:[%s1406 + $0x130] sm:$0xff]
      %v1446 = vld [vmem:[%s1406 + $0x138] sm:$0xff]
      %v1447 = vld [vmem:[%s1406 + $0x140] sm:$0xff]
      %v1448 = vld [vmem:[%s1406 + $0x148] sm:$0xff]
      %v1449 = vld [vmem:[%s1406 + $0x150] sm:$0xff]
      %v1450 = vld [vmem:[%s1406 + $0x158] sm:$0xff]
      %v1451 = vld [vmem:[%s1406 + $0x160] sm:$0xff]
      %v1452 = vld [vmem:[%s1406 + $0x168] sm:$0xff]
      %v1453 = vld [vmem:[%s1406 + $0x170] sm:$0xff]
      %v1454 = vld [vmem:[%s1406 + $0x178] sm:$0xff]
      %s1455 = scalar_lea.vmem %s3, 768
      %v1456 = vld [vmem:[%s1455] sm:$0xff]
      %v1457 = vld [vmem:[%s1455 + $0x8] sm:$0xff]
      %v1458 = vld [vmem:[%s1455 + $0x10] sm:$0xff]
      %v1459 = vld [vmem:[%s1455 + $0x18] sm:$0xff]
      %v1460 = vld [vmem:[%s1455 + $0x20] sm:$0xff]
      %v1461 = vld [vmem:[%s1455 + $0x28] sm:$0xff]
      %v1462 = vld [vmem:[%s1455 + $0x30] sm:$0xff]
      %v1463 = vld [vmem:[%s1455 + $0x38] sm:$0xff]
      %v1464 = vld [vmem:[%s1455 + $0x40] sm:$0xff]
      %v1465 = vld [vmem:[%s1455 + $0x48] sm:$0xff]
      %v1466 = vld [vmem:[%s1455 + $0x50] sm:$0xff]
      %v1467 = vld [vmem:[%s1455 + $0x58] sm:$0xff]
      %v1468 = vld [vmem:[%s1455 + $0x60] sm:$0xff]
      %v1469 = vld [vmem:[%s1455 + $0x68] sm:$0xff]
      %v1470 = vld [vmem:[%s1455 + $0x70] sm:$0xff]
      %v1471 = vld [vmem:[%s1455 + $0x78] sm:$0xff]
      %v1472 = vld [vmem:[%s1455 + $0x80] sm:$0xff]
      %v1473 = vld [vmem:[%s1455 + $0x88] sm:$0xff]
      %v1474 = vld [vmem:[%s1455 + $0x90] sm:$0xff]
      %v1475 = vld [vmem:[%s1455 + $0x98] sm:$0xff]
      %v1476 = vld [vmem:[%s1455 + $0xa0] sm:$0xff]
      %v1477 = vld [vmem:[%s1455 + $0xa8] sm:$0xff]
      %v1478 = vld [vmem:[%s1455 + $0xb0] sm:$0xff]
      %v1479 = vld [vmem:[%s1455 + $0xb8] sm:$0xff]
      %v1480 = vld [vmem:[%s1455 + $0xc0] sm:$0xff]
      %v1481 = vld [vmem:[%s1455 + $0xc8] sm:$0xff]
      %v1482 = vld [vmem:[%s1455 + $0xd0] sm:$0xff]
      %v1483 = vld [vmem:[%s1455 + $0xd8] sm:$0xff]
      %v1484 = vld [vmem:[%s1455 + $0xe0] sm:$0xff]
      %v1485 = vld [vmem:[%s1455 + $0xe8] sm:$0xff]
      %v1486 = vld [vmem:[%s1455 + $0xf0] sm:$0xff]
      %v1487 = vld [vmem:[%s1455 + $0xf8] sm:$0xff]
      %v1488 = vld [vmem:[%s1455 + $0x100] sm:$0xff]
      %v1489 = vld [vmem:[%s1455 + $0x108] sm:$0xff]
      %v1490 = vld [vmem:[%s1455 + $0x110] sm:$0xff]
      %v1491 = vld [vmem:[%s1455 + $0x118] sm:$0xff]
      %v1492 = vld [vmem:[%s1455 + $0x120] sm:$0xff]
      %v1493 = vld [vmem:[%s1455 + $0x128] sm:$0xff]
      %v1494 = vld [vmem:[%s1455 + $0x130] sm:$0xff]
      %v1495 = vld [vmem:[%s1455 + $0x138] sm:$0xff]
      %v1496 = vld [vmem:[%s1455 + $0x140] sm:$0xff]
      %v1497 = vld [vmem:[%s1455 + $0x148] sm:$0xff]
      %v1498 = vld [vmem:[%s1455 + $0x150] sm:$0xff]
      %v1499 = vld [vmem:[%s1455 + $0x158] sm:$0xff]
      %v1500 = vld [vmem:[%s1455 + $0x160] sm:$0xff]
      %v1501 = vld [vmem:[%s1455 + $0x168] sm:$0xff]
      %v1502 = vld [vmem:[%s1455 + $0x170] sm:$0xff]
      %v1503 = vld [vmem:[%s1455 + $0x178] sm:$0xff]
      %1504 = vmatprep.subr.mxu0 0.0
      %1505 = vmatpush1.msra.mxu0 %v1471
      %1506 = vmatprep.subr.mxu0 0.0
      %1507 = vmatpush1.msra.mxu0 %v1470
      %1508 = vmatprep.subr.mxu0 0.0
      %1509 = vmatpush1.msra.mxu0 %v1469
      %1510 = vmatprep.subr.mxu0 0.0
      %1511 = vmatpush1.msra.mxu0 %v1468
      %1512 = vmatprep.subr.mxu0 0.0
      %1513 = vmatpush1.msra.mxu0 %v1467
      %1514 = vmatprep.subr.mxu0 0.0
      %1515 = vmatpush1.msra.mxu0 %v1466
      %1516 = vmatprep.subr.mxu0 0.0
      %1517 = vmatpush1.msra.mxu0 %v1465
      %1518 = vmatprep.subr.mxu0 0.0
      %1519 = vmatpush1.msra.mxu0 %v1464
      %1520 = vmatprep.subr.mxu0 0.0
      %1521 = vmatpush1.msra.mxu0 %v1463
      %1522 = vmatprep.subr.mxu0 0.0
      %1523 = vmatpush1.msra.mxu0 %v1462
      %1524 = vmatprep.subr.mxu0 0.0
      %1525 = vmatpush1.msra.mxu0 %v1461
      %1526 = vmatprep.subr.mxu0 0.0
      %1527 = vmatpush1.msra.mxu0 %v1460
      %1528 = vmatprep.subr.mxu0 0.0
      %1529 = vmatpush1.msra.mxu0 %v1459
      %1530 = vmatprep.subr.mxu0 0.0
      %1531 = vmatpush1.msra.mxu0 %v1458
      %1532 = vmatprep.subr.mxu0 0.0
      %1533 = vmatpush1.msra.mxu0 %v1457
      %1534 = vmatprep.subr.mxu0 0.0
      %1535 = vmatpush1.msra.mxu0 %v1456
      %1536 = vmatprep.subr.mxu0 0.0
      %1537 = vmatpush2.msra.mxu0 %v1487
      %1538 = vmatprep.subr.mxu0 0.0
      %1539 = vmatpush2.msra.mxu0 %v1486
      %1540 = vmatprep.subr.mxu0 0.0
      %1541 = vmatpush2.msra.mxu0 %v1485
      %1542 = vmatprep.subr.mxu0 0.0
      %1543 = vmatpush2.msra.mxu0 %v1484
      %1544 = vmatprep.subr.mxu0 0.0
      %1545 = vmatpush2.msra.mxu0 %v1483
      %1546 = vmatprep.subr.mxu0 0.0
      %1547 = vmatpush2.msra.mxu0 %v1482
      %1548 = vmatprep.subr.mxu0 0.0
      %1549 = vmatpush2.msra.mxu0 %v1481
      %1550 = vmatprep.subr.mxu0 0.0
      %1551 = vmatpush2.msra.mxu0 %v1480
      %1552 = vmatprep.subr.mxu0 0.0
      %1553 = vmatpush2.msra.mxu0 %v1479
      %1554 = vmatprep.subr.mxu0 0.0
      %1555 = vmatpush2.msra.mxu0 %v1478
      %1556 = vmatprep.subr.mxu0 0.0
      %1557 = vmatpush2.msra.mxu0 %v1477
      %1558 = vmatprep.subr.mxu0 0.0
      %1559 = vmatpush2.msra.mxu0 %v1476
      %1560 = vmatprep.subr.mxu0 0.0
      %1561 = vmatpush2.msra.mxu0 %v1475
      %1562 = vmatprep.subr.mxu0 0.0
      %1563 = vmatpush2.msra.mxu0 %v1474
      %1564 = vmatprep.subr.mxu0 0.0
      %1565 = vmatpush2.msra.mxu0 %v1473
      %1566 = vmatprep.subr.mxu0 0.0
      %1567 = vmatpush2.msra.mxu0 %v1472
      %1568 = vmatprep.mubr.f32.mxu0 %v1408
      %1569 = vmatmul.mubr.f32.gmra.mxu0 %v1407
      %v1570 = vpop.f32.mrf.mxu0
      %v1571 = vadd.f32 0.0, %v1570
      %v1572 = vpop.f32.mrf.mxu0
      %1573 = vmatprep.mubr.f32.mxu0 %v1411
      %1574 = vmatmul.mubr.f32.gmra.mxu0 %v1410
      %v1575 = vpop.f32.mrf.mxu0
      %v1576 = vadd.f32 0.0, %v1575
      %v1577 = vpop.f32.mrf.mxu0
      %1578 = vmatprep.mubr.f32.mxu0 %v1414
      %1579 = vmatmul.mubr.f32.gmra.mxu0 %v1413
      %v1580 = vpop.f32.mrf.mxu0
      %v1581 = vadd.f32 0.0, %v1580
      %v1582 = vpop.f32.mrf.mxu0
      %1583 = vmatprep.mubr.f32.mxu0 %v1417
      %1584 = vmatmul.mubr.f32.gmra.mxu0 %v1416
      %v1585 = vpop.f32.mrf.mxu0
      %v1586 = vadd.f32 0.0, %v1585
      %v1587 = vpop.f32.mrf.mxu0
      %1588 = vmatprep.mubr.f32.mxu0 %v1420
      %1589 = vmatmul.mubr.f32.gmra.mxu0 %v1419
      %v1590 = vpop.f32.mrf.mxu0
      %v1591 = vadd.f32 0.0, %v1590
      %v1592 = vpop.f32.mrf.mxu0
      %1593 = vmatprep.mubr.f32.mxu0 %v1423
      %1594 = vmatmul.mubr.f32.gmra.mxu0 %v1422
      %v1595 = vpop.f32.mrf.mxu0
      %v1596 = vadd.f32 0.0, %v1595
      %v1597 = vpop.f32.mrf.mxu0
      %1598 = vmatprep.mubr.f32.mxu0 %v1426
      %1599 = vmatmul.mubr.f32.gmra.mxu0 %v1425
      %v1600 = vpop.f32.mrf.mxu0
      %v1601 = vadd.f32 0.0, %v1600
      %v1602 = vpop.f32.mrf.mxu0
      %1603 = vmatprep.mubr.f32.mxu0 %v1429
      %1604 = vmatmul.mubr.f32.gmra.mxu0 %v1428
      %v1605 = vpop.f32.mrf.mxu0
      %v1606 = vadd.f32 0.0, %v1605
      %v1607 = vpop.f32.mrf.mxu0
      %1608 = vmatprep.mubr.f32.mxu0 %v1432
      %1609 = vmatmul.mubr.f32.gmra.mxu0 %v1431
      %v1610 = vpop.f32.mrf.mxu0
      %v1611 = vadd.f32 0.0, %v1610
      %v1612 = vpop.f32.mrf.mxu0
      %1613 = vmatprep.mubr.f32.mxu0 %v1435
      %1614 = vmatmul.mubr.f32.gmra.mxu0 %v1434
      %v1615 = vpop.f32.mrf.mxu0
      %v1616 = vadd.f32 0.0, %v1615
      %v1617 = vpop.f32.mrf.mxu0
      %1618 = vmatprep.mubr.f32.mxu0 %v1438
      %1619 = vmatmul.mubr.f32.gmra.mxu0 %v1437
      %v1620 = vpop.f32.mrf.mxu0
      %v1621 = vadd.f32 0.0, %v1620
      %v1622 = vpop.f32.mrf.mxu0
      %1623 = vmatprep.mubr.f32.mxu0 %v1441
      %1624 = vmatmul.mubr.f32.gmra.mxu0 %v1440
      %v1625 = vpop.f32.mrf.mxu0
      %v1626 = vadd.f32 0.0, %v1625
      %v1627 = vpop.f32.mrf.mxu0
      %1628 = vmatprep.mubr.f32.mxu0 %v1444
      %1629 = vmatmul.mubr.f32.gmra.mxu0 %v1443
      %v1630 = vpop.f32.mrf.mxu0
      %v1631 = vadd.f32 0.0, %v1630
      %v1632 = vpop.f32.mrf.mxu0
      %1633 = vmatprep.mubr.f32.mxu0 %v1447
      %1634 = vmatmul.mubr.f32.gmra.mxu0 %v1446
      %v1635 = vpop.f32.mrf.mxu0
      %v1636 = vadd.f32 0.0, %v1635
      %v1637 = vpop.f32.mrf.mxu0
      %1638 = vmatprep.mubr.f32.mxu0 %v1450
      %1639 = vmatmul.mubr.f32.gmra.mxu0 %v1449
      %v1640 = vpop.f32.mrf.mxu0
      %v1641 = vadd.f32 0.0, %v1640
      %v1642 = vpop.f32.mrf.mxu0
      %1643 = vmatprep.mubr.f32.mxu0 %v1453
      %1644 = vmatmul.mubr.f32.gmra.mxu0 %v1452
      %v1645 = vpop.f32.mrf.mxu0
      %v1646 = vadd.f32 0.0, %v1645
      %v1647 = vpop.f32.mrf.mxu0
      %1648 = vdwg.mxu0
      %1649 = vmatprep.subr.mxu0 0.0
      %1650 = vmatpush1.msra.mxu0 %v1503
      %1651 = vmatprep.subr.mxu0 0.0
      %1652 = vmatpush1.msra.mxu0 %v1502
      %1653 = vmatprep.subr.mxu0 0.0
      %1654 = vmatpush1.msra.mxu0 %v1501
      %1655 = vmatprep.subr.mxu0 0.0
      %1656 = vmatpush1.msra.mxu0 %v1500
      %1657 = vmatprep.subr.mxu0 0.0
      %1658 = vmatpush1.msra.mxu0 %v1499
      %1659 = vmatprep.subr.mxu0 0.0
      %1660 = vmatpush1.msra.mxu0 %v1498
      %1661 = vmatprep.subr.mxu0 0.0
      %1662 = vmatpush1.msra.mxu0 %v1497
      %1663 = vmatprep.subr.mxu0 0.0
      %1664 = vmatpush1.msra.mxu0 %v1496
      %1665 = vmatprep.subr.mxu0 0.0
      %1666 = vmatpush1.msra.mxu0 %v1495
      %1667 = vmatprep.subr.mxu0 0.0
      %1668 = vmatpush1.msra.mxu0 %v1494
      %1669 = vmatprep.subr.mxu0 0.0
      %1670 = vmatpush1.msra.mxu0 %v1493
      %1671 = vmatprep.subr.mxu0 0.0
      %1672 = vmatpush1.msra.mxu0 %v1492
      %1673 = vmatprep.subr.mxu0 0.0
      %1674 = vmatpush1.msra.mxu0 %v1491
      %1675 = vmatprep.subr.mxu0 0.0
      %1676 = vmatpush1.msra.mxu0 %v1490
      %1677 = vmatprep.subr.mxu0 0.0
      %1678 = vmatpush1.msra.mxu0 %v1489
      %1679 = vmatprep.subr.mxu0 0.0
      %1680 = vmatpush1.msra.mxu0 %v1488
      %1681 = vmatprep.subr.mxu0 0.0
      %1682 = vmatpush2.msra.mxu0 0.0
      %1683 = vmatprep.subr.mxu0 0.0
      %1684 = vmatpush2.msra.mxu0 0.0
      %1685 = vmatprep.subr.mxu0 0.0
      %1686 = vmatpush2.msra.mxu0 0.0
      %1687 = vmatprep.subr.mxu0 0.0
      %1688 = vmatpush2.msra.mxu0 0.0
      %1689 = vmatprep.subr.mxu0 0.0
      %1690 = vmatpush2.msra.mxu0 0.0
      %1691 = vmatprep.subr.mxu0 0.0
      %1692 = vmatpush2.msra.mxu0 0.0
      %1693 = vmatprep.subr.mxu0 0.0
      %1694 = vmatpush2.msra.mxu0 0.0
      %1695 = vmatprep.subr.mxu0 0.0
      %1696 = vmatpush2.msra.mxu0 0.0
      %1697 = vmatprep.subr.mxu0 0.0
      %1698 = vmatpush2.msra.mxu0 0.0
      %1699 = vmatprep.subr.mxu0 0.0
      %1700 = vmatpush2.msra.mxu0 0.0
      %1701 = vmatprep.subr.mxu0 0.0
      %1702 = vmatpush2.msra.mxu0 0.0
      %1703 = vmatprep.subr.mxu0 0.0
      %1704 = vmatpush2.msra.mxu0 0.0
      %1705 = vmatprep.subr.mxu0 0.0
      %1706 = vmatpush2.msra.mxu0 0.0
      %1707 = vmatprep.subr.mxu0 0.0
      %1708 = vmatpush2.msra.mxu0 0.0
      %1709 = vmatprep.subr.mxu0 0.0
      %1710 = vmatpush2.msra.mxu0 0.0
      %1711 = vmatprep.subr.mxu0 0.0
      %1712 = vmatpush2.msra.mxu0 0.0
      %1713 = vmatprep.mubr.f32.mxu0 0.0
      %1714 = vmatmul.mubr.f32.gmra.mxu0 %v1409
      %v1715 = vpop.f32.mrf.mxu0
      %v1716 = vadd.f32 %v1571, %v1715
      %v1717 = vpop.f32.mrf.mxu0
      %1718 = vmatprep.mubr.f32.mxu0 0.0
      %1719 = vmatmul.mubr.f32.gmra.mxu0 %v1412
      %v1720 = vpop.f32.mrf.mxu0
      %v1721 = vadd.f32 %v1576, %v1720
      %v1722 = vpop.f32.mrf.mxu0
      %1723 = vmatprep.mubr.f32.mxu0 0.0
      %1724 = vmatmul.mubr.f32.gmra.mxu0 %v1415
      %v1725 = vpop.f32.mrf.mxu0
      %v1726 = vadd.f32 %v1581, %v1725
      %v1727 = vpop.f32.mrf.mxu0
      %1728 = vmatprep.mubr.f32.mxu0 0.0
      %1729 = vmatmul.mubr.f32.gmra.mxu0 %v1418
      %v1730 = vpop.f32.mrf.mxu0
      %v1731 = vadd.f32 %v1586, %v1730
      %v1732 = vpop.f32.mrf.mxu0
      %1733 = vmatprep.mubr.f32.mxu0 0.0
      %1734 = vmatmul.mubr.f32.gmra.mxu0 %v1421
      %v1735 = vpop.f32.mrf.mxu0
      %v1736 = vadd.f32 %v1591, %v1735
      %v1737 = vpop.f32.mrf.mxu0
      %1738 = vmatprep.mubr.f32.mxu0 0.0
      %1739 = vmatmul.mubr.f32.gmra.mxu0 %v1424
      %v1740 = vpop.f32.mrf.mxu0
      %v1741 = vadd.f32 %v1596, %v1740
      %v1742 = vpop.f32.mrf.mxu0
      %1743 = vmatprep.mubr.f32.mxu0 0.0
      %1744 = vmatmul.mubr.f32.gmra.mxu0 %v1427
      %v1745 = vpop.f32.mrf.mxu0
      %v1746 = vadd.f32 %v1601, %v1745
      %v1747 = vpop.f32.mrf.mxu0
      %1748 = vmatprep.mubr.f32.mxu0 0.0
      %1749 = vmatmul.mubr.f32.gmra.mxu0 %v1430
      %v1750 = vpop.f32.mrf.mxu0
      %v1751 = vadd.f32 %v1606, %v1750
      %v1752 = vpop.f32.mrf.mxu0
      %1753 = vmatprep.mubr.f32.mxu0 0.0
      %1754 = vmatmul.mubr.f32.gmra.mxu0 %v1433
      %v1755 = vpop.f32.mrf.mxu0
      %v1756 = vadd.f32 %v1611, %v1755
      %v1757 = vpop.f32.mrf.mxu0
      %1758 = vmatprep.mubr.f32.mxu0 0.0
      %1759 = vmatmul.mubr.f32.gmra.mxu0 %v1436
      %v1760 = vpop.f32.mrf.mxu0
      %v1761 = vadd.f32 %v1616, %v1760
      %v1762 = vpop.f32.mrf.mxu0
      %1763 = vmatprep.mubr.f32.mxu0 0.0
      %1764 = vmatmul.mubr.f32.gmra.mxu0 %v1439
      %v1765 = vpop.f32.mrf.mxu0
      %v1766 = vadd.f32 %v1621, %v1765
      %v1767 = vpop.f32.mrf.mxu0
      %1768 = vmatprep.mubr.f32.mxu0 0.0
      %1769 = vmatmul.mubr.f32.gmra.mxu0 %v1442
      %v1770 = vpop.f32.mrf.mxu0
      %v1771 = vadd.f32 %v1626, %v1770
      %v1772 = vpop.f32.mrf.mxu0
      %1773 = vmatprep.mubr.f32.mxu0 0.0
      %1774 = vmatmul.mubr.f32.gmra.mxu0 %v1445
      %v1775 = vpop.f32.mrf.mxu0
      %v1776 = vadd.f32 %v1631, %v1775
      %v1777 = vpop.f32.mrf.mxu0
      %1778 = vmatprep.mubr.f32.mxu0 0.0
      %1779 = vmatmul.mubr.f32.gmra.mxu0 %v1448
      %v1780 = vpop.f32.mrf.mxu0
      %v1781 = vadd.f32 %v1636, %v1780
      %v1782 = vpop.f32.mrf.mxu0
      %1783 = vmatprep.mubr.f32.mxu0 0.0
      %1784 = vmatmul.mubr.f32.gmra.mxu0 %v1451
      %v1785 = vpop.f32.mrf.mxu0
      %v1786 = vadd.f32 %v1641, %v1785
      %v1787 = vpop.f32.mrf.mxu0
      %1788 = vmatprep.mubr.f32.mxu0 0.0
      %1789 = vmatmul.mubr.f32.gmra.mxu0 %v1454
      %v1790 = vpop.f32.mrf.mxu0
      %v1791 = vadd.f32 %v1646, %v1790
      %v1792 = vpop.f32.mrf.mxu0
      %1793 = vdwg.mxu0
      %v1794 = vadd.f32 %v1390, %v1716
      %v1795 = vadd.f32 %v1391, %v1721
      %v1796 = vadd.f32 %v1392, %v1726
      %v1797 = vadd.f32 %v1393, %v1731
      %v1798 = vadd.f32 %v1394, %v1736
      %v1799 = vadd.f32 %v1395, %v1741
      %v1800 = vadd.f32 %v1396, %v1746
      %v1801 = vadd.f32 %v1397, %v1751
      %v1802 = vadd.f32 %v1398, %v1756
      %v1803 = vadd.f32 %v1399, %v1761
      %v1804 = vadd.f32 %v1400, %v1766
      %v1805 = vadd.f32 %v1401, %v1771
      %v1806 = vadd.f32 %v1402, %v1776
      %v1807 = vadd.f32 %v1403, %v1781
      %v1808 = vadd.f32 %v1404, %v1786
      %v1809 = vadd.f32 %v1405, %v1791
      %1810 = vst [vmem:[#allocation4] sm:$0xff] %v1794
      %1811 = vst [vmem:[#allocation4 + $0x8] sm:$0xff] %v1795
      %1812 = vst [vmem:[#allocation4 + $0x10] sm:$0xff] %v1796
      %1813 = vst [vmem:[#allocation4 + $0x18] sm:$0xff] %v1797
      %1814 = vst [vmem:[#allocation4 + $0x20] sm:$0xff] %v1798
      %1815 = vst [vmem:[#allocation4 + $0x28] sm:$0xff] %v1799
      %1816 = vst [vmem:[#allocation4 + $0x30] sm:$0xff] %v1800
      %1817 = vst [vmem:[#allocation4 + $0x38] sm:$0xff] %v1801
      %1818 = vst [vmem:[#allocation4 + $0x40] sm:$0xff] %v1802
      %1819 = vst [vmem:[#allocation4 + $0x48] sm:$0xff] %v1803
      %1820 = vst [vmem:[#allocation4 + $0x50] sm:$0xff] %v1804
      %1821 = vst [vmem:[#allocation4 + $0x58] sm:$0xff] %v1805
      %1822 = vst [vmem:[#allocation4 + $0x60] sm:$0xff] %v1806
      %1823 = vst [vmem:[#allocation4 + $0x68] sm:$0xff] %v1807
      %1824 = vst [vmem:[#allocation4 + $0x70] sm:$0xff] %v1808
      %1825 = vst [vmem:[#allocation4 + $0x78] sm:$0xff] %v1809
      %v1826 = vld [vmem:[#allocation4] sm:$0xff]
      %v1827 = vld [vmem:[#allocation4 + $0x8] sm:$0xff]
      %v1828 = vld [vmem:[#allocation4 + $0x10] sm:$0xff]
      %v1829 = vld [vmem:[#allocation4 + $0x18] sm:$0xff]
      %v1830 = vld [vmem:[#allocation4 + $0x20] sm:$0xff]
      %v1831 = vld [vmem:[#allocation4 + $0x28] sm:$0xff]
      %v1832 = vld [vmem:[#allocation4 + $0x30] sm:$0xff]
      %v1833 = vld [vmem:[#allocation4 + $0x38] sm:$0xff]
      %v1834 = vld [vmem:[#allocation4 + $0x40] sm:$0xff]
      %v1835 = vld [vmem:[#allocation4 + $0x48] sm:$0xff]
      %v1836 = vld [vmem:[#allocation4 + $0x50] sm:$0xff]
      %v1837 = vld [vmem:[#allocation4 + $0x58] sm:$0xff]
      %v1838 = vld [vmem:[#allocation4 + $0x60] sm:$0xff]
      %v1839 = vld [vmem:[#allocation4 + $0x68] sm:$0xff]
      %v1840 = vld [vmem:[#allocation4 + $0x70] sm:$0xff]
      %v1841 = vld [vmem:[#allocation4 + $0x78] sm:$0xff]
      %1842 = vst [vmem:[%s261] sm:$0xff] %v1826
      %1843 = vst [vmem:[%s261 + $0x8] sm:$0xff] %v1827
      %1844 = vst [vmem:[%s261 + $0x10] sm:$0xff] %v1828
      %1845 = vst [vmem:[%s261 + $0x18] sm:$0xff] %v1829
      %1846 = vst [vmem:[%s261 + $0x20] sm:$0xff] %v1830
      %1847 = vst [vmem:[%s261 + $0x28] sm:$0xff] %v1831
      %1848 = vst [vmem:[%s261 + $0x30] sm:$0xff] %v1832
      %1849 = vst [vmem:[%s261 + $0x38] sm:$0xff] %v1833
      %1850 = vst [vmem:[%s261 + $0x40] sm:$0xff] %v1834
      %1851 = vst [vmem:[%s261 + $0x48] sm:$0xff] %v1835
      %1852 = vst [vmem:[%s261 + $0x50] sm:$0xff] %v1836
      %1853 = vst [vmem:[%s261 + $0x58] sm:$0xff] %v1837
      %1854 = vst [vmem:[%s261 + $0x60] sm:$0xff] %v1838
      %1855 = vst [vmem:[%s261 + $0x68] sm:$0xff] %v1839
      %1856 = vst [vmem:[%s261 + $0x70] sm:$0xff] %v1840
      %1857 = vst [vmem:[%s261 + $0x78] sm:$0xff] %v1841
      %v1858 = vadd.f32 %v1826, %v1828
      %v1859 = vadd.f32 %v1858, %v1830
      %v1860 = vadd.f32 %v1859, %v1832
      %v1861 = vadd.f32 %v1860, %v1834
      %v1862 = vadd.f32 %v1861, %v1836
      %v1863 = vadd.f32 %v1862, %v1838
      %v1864 = vadd.f32 %v1863, %v1840
      %v1865 = vadd.f32 %v1827, %v1829
      %v1866 = vadd.f32 %v1865, %v1831
      %v1867 = vadd.f32 %v1866, %v1833
      %v1868 = vadd.f32 %v1867, %v1835
      %v1869 = vadd.f32 %v1868, %v1837
      %v1870 = vadd.f32 %v1869, %v1839
      %v1871 = vadd.f32 %v1870, %v1841
      %v1872 = vadd.f32 %v1864, %v1871
      %v1873 = vrot.slane %v1872, 4
      %v1874 = vadd.f32 %v1872, %v1873
      %v1875 = vrot.slane %v1874, 2
      %v1876 = vadd.f32 %v1874, %v1875
      %v1877 = vrot.slane %v1876, 1
      %v1878 = vadd.f32 %v1876, %v1877
      %v1879 = vmul.f32 %v1826, %v1826
      %v1880 = vmul.f32 %v1827, %v1827
      %v1881 = vmul.f32 %v1828, %v1828
      %v1882 = vmul.f32 %v1829, %v1829
      %v1883 = vmul.f32 %v1830, %v1830
      %v1884 = vmul.f32 %v1831, %v1831
      %v1885 = vmul.f32 %v1832, %v1832
      %v1886 = vmul.f32 %v1833, %v1833
      %v1887 = vmul.f32 %v1834, %v1834
      %v1888 = vmul.f32 %v1835, %v1835
      %v1889 = vmul.f32 %v1836, %v1836
      %v1890 = vmul.f32 %v1837, %v1837
      %v1891 = vmul.f32 %v1838, %v1838
      %v1892 = vmul.f32 %v1839, %v1839
      %v1893 = vmul.f32 %v1840, %v1840
      %v1894 = vmul.f32 %v1841, %v1841
      %v1895 = vadd.f32 %v1879, %v1881
      %v1896 = vadd.f32 %v1895, %v1883
      %v1897 = vadd.f32 %v1896, %v1885
      %v1898 = vadd.f32 %v1897, %v1887
      %v1899 = vadd.f32 %v1898, %v1889
      %v1900 = vadd.f32 %v1899, %v1891
      %v1901 = vadd.f32 %v1900, %v1893
      %v1902 = vadd.f32 %v1880, %v1882
      %v1903 = vadd.f32 %v1902, %v1884
      %v1904 = vadd.f32 %v1903, %v1886
      %v1905 = vadd.f32 %v1904, %v1888
      %v1906 = vadd.f32 %v1905, %v1890
      %v1907 = vadd.f32 %v1906, %v1892
      %v1908 = vadd.f32 %v1907, %v1894
      %v1909 = vadd.f32 %v1901, %v1908
      %v1910 = vrot.slane %v1909, 4
      %v1911 = vadd.f32 %v1909, %v1910
      %v1912 = vrot.slane %v1911, 2
      %v1913 = vadd.f32 %v1911, %v1912
      %v1914 = vrot.slane %v1913, 1
      %v1915 = vadd.f32 %v1913, %v1914
      %vm1916 = vcmask 1040384
      %v1917 = vsel %vm1916, %v1878, %v1915
      %1918 = vst [vmem:[%s268] sm:$0x3] %v1917
      %s1919 = smul.u32 8, %s22
      %p1920 = scmp.lt.s32.totalorder %s21, 1
      %s1921 = scalar_select %p1920, %s21, 1
      %p1922 = scmp.lt.s32.totalorder %s1919, 15
      %s1923 = scalar_select %p1922, %s1919, 15
      %s1924 = smul.addr %s1923, 2
      %s1925 = smul.addr %s1921, 32
      %s1926 = sadd.s32 %s1924, %s1925
      %s1927 = smul.addr %s1926, 8
      %s1928 = scalar_lea.vmem %s4, %s1927
      %s1929 = smul.u32 %s21, 2
      %s1930 = sadd.s32 %s1929, %s22
      %p1931 = scmp.lt.s32.totalorder %s1930, 3
      %s1932 = scalar_select %p1931, %s1930, 3
      %s1933 = smul.addr %s1932, 2
      %s1934 = scalar_lea.vmem %s5, %s1933
      // Predicated region
      $region37: #{bottleneck_forward_nhwc.5} parent=35 // pred_check
        %p1935 = pneg %p138
      $region38: #{bottleneck_forward_nhwc.5} parent=35 // pred_check_branch
        %1937 = sbr.rel (%p1935) target = $region40
      $region39: #{bottleneck_forward_nhwc.5} parent=35 // pred_region
        %s1938 = smul.u32 8, %s22
      $region40: #{bottleneck_forward_nhwc.5} parent=35 // pred_fallthru
        _
      // Predicated region
      $region41: #{bottleneck_forward_nhwc.5} parent=35 // pred_check
        %p1939 = pneg %p168
      $region42: #{bottleneck_forward_nhwc.5} parent=35 // pred_check_branch
        %1941 = sbr.rel (%p1939) target = $region44
      $region43: #{bottleneck_forward_nhwc.5} parent=35 // pred_region
        %s1942 = smul.u32 %s21, 2
        %s1943 = sadd.s32 %s1942, %s22
      $region44: #{bottleneck_forward_nhwc.5} parent=35 // pred_fallthru
        _
    $region36: #{bottleneck_forward_nhwc.5} parent=5 // pred_fallthru
      _
    %p1944 = scmp.le.s32.totalorder 2, %s12
    // Predicated region
    $region45: #{bottleneck_forward_nhwc.5} parent=5 // pred_check
      %p1945 = pneg %p1944
    $region46: #{bottleneck_forward_nhwc.5} parent=5 // pred_check_branch
      %1947 = sbr.rel (%p1945) target = $region48
    $region47: #{bottleneck_forward_nhwc.5} parent=5 // pred_region
      %s1948 = ssub.s32 %s12, 2
      // Predicated region
      $region49: #{bottleneck_forward_nhwc.5} parent=47 // pred_check
        %p1949 = pneg %p144
      $region50: #{bottleneck_forward_nhwc.5} parent=47 // pred_check_branch
        %1951 = sbr.rel (%p1949) target = $region52
      $region51: #{bottleneck_forward_nhwc.5} parent=47 // pred_region
        %s1952 = smul.u32 8, %s24
        %p1953 = scmp.lt.s32.totalorder %s23, 1
        %s1954 = scalar_select %p1953, %s23, 1
        %p1955 = scmp.lt.s32.totalorder %s1952, 15
        %s1956 = scalar_select %p1955, %s1952, 15
        %s1957 = smul.addr %s1956, 2
        %s1958 = smul.addr %s1954, 32
        %s1959 = sadd.s32 %s1957, %s1958
        %s1960 = smul.addr %s1959, 8
        %s1961 = scalar_lea.vmem %s4, %s1960
      $region52: #{bottleneck_forward_nhwc.5} parent=47 // pred_fallthru
        _
      // Predicated region
      $region53: #{bottleneck_forward_nhwc.5} parent=47 // pred_check
        %p1962 = pneg %p174
      $region54: #{bottleneck_forward_nhwc.5} parent=47 // pred_check_branch
        %1964 = sbr.rel (%p1962) target = $region56
      $region55: #{bottleneck_forward_nhwc.5} parent=47 // pred_region
        %s1965 = smul.u32 %s23, 2
        %s1966 = sadd.s32 %s1965, %s24
        %p1967 = scmp.lt.s32.totalorder %s1966, 3
        %s1968 = scalar_select %p1967, %s1966, 3
        %s1969 = smul.addr %s1968, 2
        %s1970 = scalar_lea.vmem %s5, %s1969
      $region56: #{bottleneck_forward_nhwc.5} parent=47 // pred_fallthru
        _
    $region48: #{bottleneck_forward_nhwc.5} parent=5 // pred_fallthru
      _
  $region6: #{bottleneck_forward_nhwc.5} parent=0 // loop_footer
    %s16 = sadd.s32 1, %s12
  $region7: #{bottleneck_forward_nhwc.5} parent=0 // loop_footer_branch
    %11 = sbr.rel target = $region3
  $region8: #{bottleneck_forward_nhwc.5} parent=0 // loop_exit
    _

</llo_original>
